<compile_context>
chip_gen: v7x
topology: tpu7x:2x2x1
jax: 0.10.0
libtpu: 0.0.40
codegen_flags: <defaults>
</compile_context>

<pallas_src>
import functools

import jax
import jax.numpy as jnp
from jax import lax
from jax.experimental import pallas as pl
from jax.experimental.pallas import tpu as pltpu

PAD = 2        # shared spatial pad ring (largest conv half-width: 5x5 -> 2)
MARGIN = 128   # lane margin around the group buffer: covers the largest shift
               # (2*Wp+2) and keeps the interior window 128-lane aligned


# ---------------------------------------------------------------------------
# The fused InceptionA kernel (one grid step == one group of B images)
# ---------------------------------------------------------------------------
def _inception_a_kernel(row_stride, S, BL, cp,
                        x_ref, mask_ref, w1_ref, wpool_ref, w5_ref, w3a_ref,
                        w3b_ref, bmid_ref, bout_ref, o_ref,
                        s5_buf, s3_buf, t3_buf, col_buf):
    maskf = mask_ref[...]                     # (1, BL) f32: 1.0 on real pixels only

    # Zero ONLY the margin lanes of the shifted-read scratch buffers (interiors are
    # fully rewritten every step).  Done unconditionally (not @pl.when(step==0)) so
    # it stays correct if the parallel grid is split across TensorCores with
    # per-core scratch; it is only ~16 KB of stores per step.
    for buf in (s5_buf, s3_buf, t3_buf):
        z = jnp.zeros((buf.shape[0], S), buf.dtype)
        buf[:, :S] = z
        buf[:, S + BL:] = z

    def stash(buf, val):                      # interior store: aligned, full tiles
        buf[:, S:S + BL] = val.astype(buf.dtype)

    def conv(src_ref, w_ref, cin, pad):
        """KxK conv as im2col-in-VMEM + ONE MXU matmul (contraction = K*K*cin)."""
        r = 0
        for dy in range(-pad, pad + 1):
            for dx in range(-pad, pad + 1):
                s = dy * row_stride + dx
                col_buf[r:r + cin, :] = src_ref[:, S + s:S + s + BL]
                r += cin
        return jnp.dot(w_ref[...], col_buf[0:r, :],
                       preferred_element_type=jnp.float32)

    # ---- stage 1: the three 1x1 convs on x fused into ONE matmul ------------
    y = jnp.dot(w1_ref[...], x_ref[:, S:S + BL], preferred_element_type=jnp.float32)
    o_ref[0:8, :] = jnp.maximum(y[0:8] + bout_ref[0:8], 0.0)          # branch1x1
    s5 = maskf * jnp.maximum(y[8:16] + bmid_ref[0:8], 0.0)            # branch5x5_1
    s3 = maskf * jnp.maximum(y[16:24] + bmid_ref[8:16], 0.0)          # branch3x3dbl_1

    # ---- branch_pool: avg_pool(3,1,1,count_include_pad) commuted into the 1x1
    # conv -> a single 3x3 matmul on x (weight already divided by 9 per tap) ----
    bp = conv(x_ref, wpool_ref, x_ref.shape[0], 1)
    o_ref[56:56 + cp, :] = jnp.maximum(bp + bout_ref[56:56 + cp], 0.0)

    # ---- branch5x5: 1x1 -> 5x5 (contraction depth 200) -----------------------
    stash(s5_buf, s5)
    b5 = conv(s5_buf, w5_ref, 8, 2)
    o_ref[8:24, :] = jnp.maximum(b5 + bout_ref[8:24], 0.0)

    # ---- branch3x3dbl: 1x1 -> 3x3 -> 3x3 (contraction 72 / 144) ---------------
    stash(s3_buf, s3)
    t3 = maskf * jnp.maximum(conv(s3_buf, w3a_ref, 8, 1) + bmid_ref[16:32], 0.0)
    stash(t3_buf, t3)
    b3 = conv(t3_buf, w3b_ref, 16, 1)
    o_ref[24:56, :] = jnp.maximum(b3 + bout_ref[24:56], 0.0)


# ---------------------------------------------------------------------------
# Weight preparation: fold eval-mode BN scale, im2col-friendly layouts
# ---------------------------------------------------------------------------
def _prep_params(p, cin_p):
    def fold(d):
        return d["w"] * d["scale"][:, None, None, None]

    def conv_mat(w):                   # (Cout,Cin,K,K) -> (Cout, K*K*Cin), tap-major
        co, ci, k, _ = w.shape
        return jnp.transpose(w, (0, 2, 3, 1)).reshape(co, k * k * ci)

    cin = p["branch1x1"]["w"].shape[1]
    cp = p["branch_pool"]["w"].shape[0]

    # the three 1x1 convs applied directly to x, fused along Cout
    w1 = jnp.concatenate([fold(p["branch1x1"]).reshape(8, cin),
                          fold(p["branch5x5_1"]).reshape(8, cin),
                          fold(p["branch3x3dbl_1"]).reshape(8, cin)], axis=0)
    w1 = jnp.pad(w1, ((0, 0), (0, cin_p - cin))).astype(jnp.bfloat16)

    # avg_pool(3,1,1) then 1x1 == one 3x3 conv with weight W/9 on every tap (exact)
    wpool = jnp.broadcast_to(
        fold(p["branch_pool"]).reshape(cp, 1, 1, cin) / 9.0, (cp, 3, 3, cin))
    wpool = jnp.pad(wpool, ((0, 0), (0, 0), (0, 0), (0, cin_p - cin)))
    wpool = wpool.reshape(cp, 9 * cin_p).astype(jnp.bfloat16)

    w5 = conv_mat(fold(p["branch5x5_2"])).astype(jnp.bfloat16)       # (16, 200)
    w3a = conv_mat(fold(p["branch3x3dbl_2"])).astype(jnp.bfloat16)   # (16, 72)
    w3b = conv_mat(fold(p["branch3x3dbl_3"])).astype(jnp.bfloat16)   # (32, 144)

    bmid = jnp.concatenate([p["branch5x5_1"]["bias"],
                            p["branch3x3dbl_1"]["bias"],
                            p["branch3x3dbl_2"]["bias"]]).reshape(-1, 1).astype(jnp.float32)
    bout = jnp.concatenate([p["branch1x1"]["bias"],
                            p["branch5x5_2"]["bias"],
                            p["branch3x3dbl_3"]["bias"],
                            p["branch_pool"]["bias"]]).reshape(-1, 1).astype(jnp.float32)
    return w1, wpool, w5, w3a, w3b, bmid, bout


def _images_per_step(n):
    b = 1
    for cand in (8, 4, 2):
        if n % cand == 0:
            b = cand
            break
    if b == n and n > 1:      # keep >=2 grid steps where possible (v7x has 2 TCs)
        b //= 2
    return max(b, 1)


# ---------------------------------------------------------------------------
# InceptionA forward (Pallas path).  Input/output: NCHW (PyTorch convention).
# ---------------------------------------------------------------------------
def inception_a(x_nchw, params):
    n, cin, h, w = x_nchw.shape
    cp = params["branch_pool"]["w"].shape[0]
    c_out = 56 + cp
    hp, wp = h + 2 * PAD, w + 2 * PAD
    L = hp * wp
    lseg = ((L + 127) // 128) * 128            # per-image lane segment (128-aligned)
    S = MARGIN
    assert S >= PAD * wp + PAD, "lane margin must cover the largest conv shift"

    B = _images_per_step(n)
    G = n // B
    BL = B * lseg
    lw = S + BL + S
    cin_p = ((cin + 7) // 8) * 8               # sublane-align the 1x1 contraction dim

    # channel-major, flat spatially-padded layout; B images lane-concatenated
    xf = jnp.pad(x_nchw, ((0, 0), (0, cin_p - cin), (PAD, PAD), (PAD, PAD)))
    xf = jnp.pad(xf.reshape(n, cin_p, L), ((0, 0), (0, 0), (0, lseg - L)))
    xf = xf.reshape(G, B, cin_p, lseg).transpose(0, 2, 1, 3).reshape(G, cin_p, BL)
    xf = jnp.pad(xf, ((0, 0), (0, 0), (S, S))).astype(jnp.bfloat16)   # (G, cin_p, lw)

    rows = (jnp.arange(hp) >= PAD) & (jnp.arange(hp) < PAD + h)
    cols = (jnp.arange(wp) >= PAD) & (jnp.arange(wp) < PAD + w)
    m = (rows[:, None] & cols[None, :]).astype(jnp.float32).reshape(L)
    mask = jnp.tile(jnp.pad(m, (0, lseg - L)), B).reshape(1, BL)

    w1, wpool, w5, w3a, w3b, bmid, bout = _prep_params(params, cin_p)
    col_rows = max(25 * 8, 9 * 16, 9 * cin_p)  # shared im2col buffer (largest conv)

    kernel = functools.partial(_inception_a_kernel, wp, S, BL, cp)

    flops = 2 * n * lseg * (24 * cin_p + cp * 9 * cin_p
                            + 16 * 200 + 16 * 72 + 32 * 144)
    bytes_accessed = (xf.size * 2 + G * c_out * BL * 4
                      + 2 * (w1.size + wpool.size + w5.size + w3a.size + w3b.size)
                      + 4 * (bmid.size + bout.size) + 4 * mask.size)

    out = pl.pallas_call(
        kernel,
        out_shape=jax.ShapeDtypeStruct((G, c_out, BL), jnp.float32),
        grid_spec=pltpu.PrefetchScalarGridSpec(
            num_scalar_prefetch=0,
            grid=(G,),
            in_specs=[
                pl.BlockSpec((None, cin_p, lw), lambda i: (i, 0, 0)),
                pl.BlockSpec((1, BL), lambda i: (0, 0)),
                pl.BlockSpec(w1.shape, lambda i: (0, 0)),
                pl.BlockSpec(wpool.shape, lambda i: (0, 0)),
                pl.BlockSpec(w5.shape, lambda i: (0, 0)),
                pl.BlockSpec(w3a.shape, lambda i: (0, 0)),
                pl.BlockSpec(w3b.shape, lambda i: (0, 0)),
                pl.BlockSpec(bmid.shape, lambda i: (0, 0)),
                pl.BlockSpec(bout.shape, lambda i: (0, 0)),
            ],
            out_specs=pl.BlockSpec((None, c_out, BL), lambda i: (i, 0, 0)),
            scratch_shapes=[
                pltpu.VMEM((8, lw), jnp.bfloat16),          # branch5x5_1 activation
                pltpu.VMEM((8, lw), jnp.bfloat16),          # branch3x3dbl_1 activation
                pltpu.VMEM((16, lw), jnp.bfloat16),         # branch3x3dbl_2 activation
                pltpu.VMEM((col_rows, BL), jnp.bfloat16),   # shared im2col buffer
            ],
        ),
        compiler_params=pltpu.CompilerParams(
            dimension_semantics=("parallel",),
            vmem_limit_bytes=32 * 1024 * 1024),             # fits v7x 64MiB / v5e-v6e
        cost_estimate=pl.CostEstimate(flops=int(flops), transcendentals=0,
                                      bytes_accessed=int(bytes_accessed)),
    )(xf, mask, w1, wpool, w5, w3a, w3b, bmid, bout)

    # TODO(synk): keep the padded flat layout (and/or bf16) downstream to skip this
    # crop round-trip; f32 NCHW kept here to match the PyTorch interface exactly.
    out = out.reshape(G, c_out, B, lseg).transpose(0, 2, 1, 3).reshape(n, c_out, lseg)
    out = out[:, :, :L].reshape(n, c_out, hp, wp)[:, :, PAD:PAD + h, PAD:PAD + w]
    return out                                              # NCHW, == torch.cat(dim=1)


# ---------------------------------------------------------------------------
# Parameter init (deterministic, synthetic)
# ---------------------------------------------------------------------------
def init_basic_conv(key, cin, cout, k):
    kw, kg, kb, km, kv = jax.random.split(key, 5)
    w = 0.1 * jax.random.normal(kw, (cout, cin, k, k), jnp.float32)
    gamma = 1.0 + 0.1 * jax.random.normal(kg, (cout,), jnp.float32)
    beta = 0.1 * jax.random.normal(kb, (cout,), jnp.float32)
    mean = 0.1 * jax.random.normal(km, (cout,), jnp.float32)
    var = jax.random.uniform(kv, (cout,), jnp.float32, minval=0.5, maxval=1.5)
    eps = 1e-3
    scale = gamma / jnp.sqrt(var + eps)
    bias = beta - mean * scale
    return {"w": w, "scale": scale, "bias": bias}


def init_inception_a(key, in_channels, pool_features):
    keys = jax.random.split(key, 7)
    return {
        "branch1x1": init_basic_conv(keys[0], in_channels, 8, 1),
        "branch5x5_1": init_basic_conv(keys[1], in_channels, 8, 1),
        "branch5x5_2": init_basic_conv(keys[2], 8, 16, 5),
        "branch3x3dbl_1": init_basic_conv(keys[3], in_channels, 8, 1),
        "branch3x3dbl_2": init_basic_conv(keys[4], 8, 16, 3),
        "branch3x3dbl_3": init_basic_conv(keys[5], 16, 32, 3),
        "branch_pool": init_basic_conv(keys[6], in_channels, pool_features, 1),
    }


# ---------------------------------------------------------------------------
# Pure-JAX f32 reference (correctness sanity check)
# ---------------------------------------------------------------------------
def _ref_conv_bn_relu(x_nchw, w, scale, bias, pad):
    y = lax.conv_general_dilated(
        x_nchw, w, window_strides=(1, 1), padding=[(pad, pad), (pad, pad)],
        dimension_numbers=("NCHW", "OIHW", "NCHW"),
        precision=jax.lax.Precision.HIGHEST)
    y = y * scale[None, :, None, None] + bias[None, :, None, None]
    return jnp.maximum(y, 0.0)


def _ref_inception_a(x, p):
    b1 = _ref_conv_bn_relu(x, p["branch1x1"]["w"], p["branch1x1"]["scale"],
                           p["branch1x1"]["bias"], 0)
    b5 = _ref_conv_bn_relu(x, p["branch5x5_1"]["w"], p["branch5x5_1"]["scale"],
                           p["branch5x5_1"]["bias"], 0)
    b5 = _ref_conv_bn_relu(b5, p["branch5x5_2"]["w"], p["branch5x5_2"]["scale"],
                           p["branch5x5_2"]["bias"], 2)
    b3 = _ref_conv_bn_relu(x, p["branch3x3dbl_1"]["w"], p["branch3x3dbl_1"]["scale"],
                           p["branch3x3dbl_1"]["bias"], 0)
    b3 = _ref_conv_bn_relu(b3, p["branch3x3dbl_2"]["w"], p["branch3x3dbl_2"]["scale"],
                           p["branch3x3dbl_2"]["bias"], 1)
    b3 = _ref_conv_bn_relu(b3, p["branch3x3dbl_3"]["w"], p["branch3x3dbl_3"]["scale"],
                           p["branch3x3dbl_3"]["bias"], 1)
    pooled = lax.reduce_window(x, 0.0, lax.add, (1, 1, 3, 3), (1, 1, 1, 1),
                               [(0, 0), (0, 0), (1, 1), (1, 1)]) / 9.0
    bp = _ref_conv_bn_relu(pooled, p["branch_pool"]["w"], p["branch_pool"]["scale"],
                           p["branch_pool"]["bias"], 0)
    return jnp.concatenate([b1, b5, b3, bp], axis=1)


if __name__ == "__main__":
    key = jax.random.PRNGKey(0)
    kx, kp = jax.random.split(key)

    batch, in_channels, spatial, pool_features = 2, 4, 16, 8
    x = jax.random.normal(kx, (batch, in_channels, spatial, spatial), jnp.float32)
    params = init_inception_a(kp, in_channels, pool_features)

    out = jax.jit(inception_a)(x, params)
    out = jax.block_until_ready(out)

    expected_channels = 8 + 16 + 32 + pool_features
    assert out.shape == (batch, expected_channels, spatial, spatial), out.shape

    ref = jax.block_until_ready(_ref_inception_a(x, params))
    max_err = float(jnp.max(jnp.abs(out - ref)))
    # bf16 MXU operands with f32 accumulation -> tolerance reflects bf16 rounding.
    assert max_err < 3e-2, f"max abs error {max_err}"

    print("KERNEL_OK")
</pallas_src>

<mosaic_0001>
module attributes {stable_mosaic.version = 11 : i64} {
  func.func @_inception_a_kernel(%arg0: i32, %arg1: memref<1x8x768xbf16, #tpu.memory_space<vmem>>, %arg2: memref<1x512xf32, #tpu.memory_space<vmem>>, %arg3: memref<24x8xbf16, #tpu.memory_space<vmem>>, %arg4: memref<8x72xbf16, #tpu.memory_space<vmem>>, %arg5: memref<16x200xbf16, #tpu.memory_space<vmem>>, %arg6: memref<16x72xbf16, #tpu.memory_space<vmem>>, %arg7: memref<32x144xbf16, #tpu.memory_space<vmem>>, %arg8: memref<32x1xf32, #tpu.memory_space<vmem>>, %arg9: memref<64x1xf32, #tpu.memory_space<vmem>>, %arg10: memref<1x64x512xf32, #tpu.memory_space<vmem>>, %arg11: memref<8x768xbf16, #tpu.memory_space<vmem>>, %arg12: memref<8x768xbf16, #tpu.memory_space<vmem>>, %arg13: memref<16x768xbf16, #tpu.memory_space<vmem>>, %arg14: memref<200x512xbf16, #tpu.memory_space<vmem>>) attributes {dimension_semantics = [#tpu.dimension_semantics<parallel>], iteration_bounds = array<i64: 2>, scalar_prefetch = 0 : i64, scratch_operands = 4 : i64, tpu.core_type = #tpu.core_type<tc>, window_params = [{transform_indices = @transform_0, window_bounds = array<i64: 1, 8, 768>}, {pipeline_mode = #tpu.pipeline_mode<synchronous>, transform_indices = @transform_1, window_bounds = array<i64: 1, 512>}, {pipeline_mode = #tpu.pipeline_mode<synchronous>, transform_indices = @transform_2, window_bounds = array<i64: 24, 8>}, {pipeline_mode = #tpu.pipeline_mode<synchronous>, transform_indices = @transform_3, window_bounds = array<i64: 8, 72>}, {pipeline_mode = #tpu.pipeline_mode<synchronous>, transform_indices = @transform_4, window_bounds = array<i64: 16, 200>}, {pipeline_mode = #tpu.pipeline_mode<synchronous>, transform_indices = @transform_5, window_bounds = array<i64: 16, 72>}, {pipeline_mode = #tpu.pipeline_mode<synchronous>, transform_indices = @transform_6, window_bounds = array<i64: 32, 144>}, {pipeline_mode = #tpu.pipeline_mode<synchronous>, transform_indices = @transform_7, window_bounds = array<i64: 32, 1>}, {pipeline_mode = #tpu.pipeline_mode<synchronous>, transform_indices = @transform_8, window_bounds = array<i64: 64, 1>}, {transform_indices = @transform_9, window_bounds = array<i64: 1, 64, 512>}]} {
    %c0 = arith.constant 0 : index
    %c0_0 = arith.constant 0 : index
    %0 = vector.load %arg2[%c0, %c0_0] : memref<1x512xf32, #tpu.memory_space<vmem>>, vector<1x512xf32>
    %cst = arith.constant 0.000000e+00 : bf16
    %1 = vector.broadcast %cst : bf16 to vector<8x128xbf16>
    %c0_1 = arith.constant 0 : index
    %c0_2 = arith.constant 0 : index
    %2 = vector.load %arg11[%c0_1, %c0_2] : memref<8x768xbf16, #tpu.memory_space<vmem>>, vector<8x128xbf16>
    tpu.vector_store %arg11[%c0_1, %c0_2], %1 {strides = array<i32>} : memref<8x768xbf16, #tpu.memory_space<vmem>>, vector<8x128xbf16>,
    %c0_3 = arith.constant 0 : index
    %c640 = arith.constant 640 : index
    %3 = vector.load %arg11[%c0_3, %c640] : memref<8x768xbf16, #tpu.memory_space<vmem>>, vector<8x128xbf16>
    tpu.vector_store %arg11[%c0_3, %c640], %1 {strides = array<i32>} : memref<8x768xbf16, #tpu.memory_space<vmem>>, vector<8x128xbf16>,
    %cst_4 = arith.constant 0.000000e+00 : bf16
    %4 = vector.broadcast %cst_4 : bf16 to vector<8x128xbf16>
    %c0_5 = arith.constant 0 : index
    %c0_6 = arith.constant 0 : index
    %5 = vector.load %arg12[%c0_5, %c0_6] : memref<8x768xbf16, #tpu.memory_space<vmem>>, vector<8x128xbf16>
    tpu.vector_store %arg12[%c0_5, %c0_6], %4 {strides = array<i32>} : memref<8x768xbf16, #tpu.memory_space<vmem>>, vector<8x128xbf16>,
    %c0_7 = arith.constant 0 : index
    %c640_8 = arith.constant 640 : index
    %6 = vector.load %arg12[%c0_7, %c640_8] : memref<8x768xbf16, #tpu.memory_space<vmem>>, vector<8x128xbf16>
    tpu.vector_store %arg12[%c0_7, %c640_8], %4 {strides = array<i32>} : memref<8x768xbf16, #tpu.memory_space<vmem>>, vector<8x128xbf16>,
    %cst_9 = arith.constant 0.000000e+00 : bf16
    %7 = vector.broadcast %cst_9 : bf16 to vector<16x128xbf16>
    %c0_10 = arith.constant 0 : index
    %c0_11 = arith.constant 0 : index
    %8 = vector.load %arg13[%c0_10, %c0_11] : memref<16x768xbf16, #tpu.memory_space<vmem>>, vector<16x128xbf16>
    tpu.vector_store %arg13[%c0_10, %c0_11], %7 {strides = array<i32>} : memref<16x768xbf16, #tpu.memory_space<vmem>>, vector<16x128xbf16>,
    %c0_12 = arith.constant 0 : index
    %c640_13 = arith.constant 640 : index
    %9 = vector.load %arg13[%c0_12, %c640_13] : memref<16x768xbf16, #tpu.memory_space<vmem>>, vector<16x128xbf16>
    tpu.vector_store %arg13[%c0_12, %c640_13], %7 {strides = array<i32>} : memref<16x768xbf16, #tpu.memory_space<vmem>>, vector<16x128xbf16>,
    %c0_14 = arith.constant 0 : index
    %c0_15 = arith.constant 0 : index
    %10 = vector.load %arg3[%c0_14, %c0_15] : memref<24x8xbf16, #tpu.memory_space<vmem>>, vector<24x8xbf16>
    %c0_16 = arith.constant 0 : index
    %c0_17 = arith.constant 0 : index
    %c128 = arith.constant 128 : index
    %11 = vector.load %arg1[%c0_16, %c0_17, %c128] : memref<1x8x768xbf16, #tpu.memory_space<vmem>>, vector<1x8x512xbf16>
    %12 = vector.shape_cast %11 : vector<1x8x512xbf16> to vector<8x512xbf16>
    %cst_18 = arith.constant dense<0.000000e+00> : vector<24x512xf32>
    %13 = tpu.matmul %10, %12, %cst_18 {dimension_numbers = #tpu.dot_dimension_numbers<[1], [0], [0], [1], [0, 0, 1, 1], [], []>} : vector<24x8xbf16>, vector<8x512xbf16>, vector<24x512xf32> -> vector<24x512xf32>
    %14 = vector.extract_strided_slice %13 {offsets = [0, 0], sizes = [8, 512], strides = [1, 1]} : vector<24x512xf32> to vector<8x512xf32>
    %c0_19 = arith.constant 0 : index
    %c0_20 = arith.constant 0 : index
    %15 = vector.load %arg9[%c0_19, %c0_20] : memref<64x1xf32, #tpu.memory_space<vmem>>, vector<8x1xf32>
    %16 = vector.broadcast %15 : vector<8x1xf32> to vector<8x512xf32>
    %17 = arith.addf %14, %16 : vector<8x512xf32>
    %cst_21 = arith.constant 0.000000e+00 : f32
    %18 = vector.broadcast %cst_21 : f32 to vector<8x512xf32>
    %19 = arith.maximumf %17, %18 : vector<8x512xf32>
    %c0_22 = arith.constant 0 : index
    %c0_23 = arith.constant 0 : index
    %c0_24 = arith.constant 0 : index
    %20 = vector.load %arg10[%c0_22, %c0_23, %c0_24] : memref<1x64x512xf32, #tpu.memory_space<vmem>>, vector<1x8x512xf32>
    %21 = vector.shape_cast %20 : vector<1x8x512xf32> to vector<8x512xf32>
    %22 = vector.shape_cast %19 : vector<8x512xf32> to vector<1x8x512xf32>
    tpu.vector_store %arg10[%c0_22, %c0_23, %c0_24], %22 {strides = array<i32>} : memref<1x64x512xf32, #tpu.memory_space<vmem>>, vector<1x8x512xf32>,
    %23 = vector.extract_strided_slice %13 {offsets = [8, 0], sizes = [8, 512], strides = [1, 1]} : vector<24x512xf32> to vector<8x512xf32>
    %c0_25 = arith.constant 0 : index
    %c0_26 = arith.constant 0 : index
    %24 = vector.load %arg8[%c0_25, %c0_26] : memref<32x1xf32, #tpu.memory_space<vmem>>, vector<8x1xf32>
    %25 = vector.broadcast %24 : vector<8x1xf32> to vector<8x512xf32>
    %26 = arith.addf %23, %25 : vector<8x512xf32>
    %cst_27 = arith.constant 0.000000e+00 : f32
    %27 = vector.broadcast %cst_27 : f32 to vector<8x512xf32>
    %28 = arith.maximumf %26, %27 : vector<8x512xf32>
    %29 = vector.broadcast %0 : vector<1x512xf32> to vector<8x512xf32>
    %30 = arith.mulf %29, %28 : vector<8x512xf32>
    %31 = vector.extract_strided_slice %13 {offsets = [16, 0], sizes = [8, 512], strides = [1, 1]} : vector<24x512xf32> to vector<8x512xf32>
    %c8 = arith.constant 8 : index
    %c0_28 = arith.constant 0 : index
    %32 = vector.load %arg8[%c8, %c0_28] : memref<32x1xf32, #tpu.memory_space<vmem>>, vector<8x1xf32>
    %33 = vector.broadcast %32 : vector<8x1xf32> to vector<8x512xf32>
    %34 = arith.addf %31, %33 : vector<8x512xf32>
    %cst_29 = arith.constant 0.000000e+00 : f32
    %35 = vector.broadcast %cst_29 : f32 to vector<8x512xf32>
    %36 = arith.maximumf %34, %35 : vector<8x512xf32>
    %37 = vector.broadcast %0 : vector<1x512xf32> to vector<8x512xf32>
    %38 = arith.mulf %37, %36 : vector<8x512xf32>
    %c0_30 = arith.constant 0 : index
    %c0_31 = arith.constant 0 : index
    %c107 = arith.constant 107 : index
    %39 = vector.load %arg1[%c0_30, %c0_31, %c107] : memref<1x8x768xbf16, #tpu.memory_space<vmem>>, vector<1x8x512xbf16>
    %40 = vector.shape_cast %39 : vector<1x8x512xbf16> to vector<8x512xbf16>
    %c0_32 = arith.constant 0 : index
    %c0_33 = arith.constant 0 : index
    %41 = vector.load %arg14[%c0_32, %c0_33] : memref<200x512xbf16, #tpu.memory_space<vmem>>, vector<8x512xbf16>
    tpu.vector_store %arg14[%c0_32, %c0_33], %40 {strides = array<i32>} : memref<200x512xbf16, #tpu.memory_space<vmem>>, vector<8x512xbf16>,
    %c0_34 = arith.constant 0 : index
    %c0_35 = arith.constant 0 : index
    %c108 = arith.constant 108 : index
    %42 = vector.load %arg1[%c0_34, %c0_35, %c108] : memref<1x8x768xbf16, #tpu.memory_space<vmem>>, vector<1x8x512xbf16>
    %43 = vector.shape_cast %42 : vector<1x8x512xbf16> to vector<8x512xbf16>
    %c8_36 = arith.constant 8 : index
    %c0_37 = arith.constant 0 : index
    %44 = vector.load %arg14[%c8_36, %c0_37] : memref<200x512xbf16, #tpu.memory_space<vmem>>, vector<8x512xbf16>
    tpu.vector_store %arg14[%c8_36, %c0_37], %43 {strides = array<i32>} : memref<200x512xbf16, #tpu.memory_space<vmem>>, vector<8x512xbf16>,
    %c0_38 = arith.constant 0 : index
    %c0_39 = arith.constant 0 : index
    %c109 = arith.constant 109 : index
    %45 = vector.load %arg1[%c0_38, %c0_39, %c109] : memref<1x8x768xbf16, #tpu.memory_space<vmem>>, vector<1x8x512xbf16>
    %46 = vector.shape_cast %45 : vector<1x8x512xbf16> to vector<8x512xbf16>
    %c16 = arith.constant 16 : index
    %c0_40 = arith.constant 0 : index
    %47 = vector.load %arg14[%c16, %c0_40] : memref<200x512xbf16, #tpu.memory_space<vmem>>, vector<8x512xbf16>
    tpu.vector_store %arg14[%c16, %c0_40], %46 {strides = array<i32>} : memref<200x512xbf16, #tpu.memory_space<vmem>>, vector<8x512xbf16>,
    %c0_41 = arith.constant 0 : index
    %c0_42 = arith.constant 0 : index
    %c127 = arith.constant 127 : index
    %48 = vector.load %arg1[%c0_41, %c0_42, %c127] : memref<1x8x768xbf16, #tpu.memory_space<vmem>>, vector<1x8x512xbf16>
    %49 = vector.shape_cast %48 : vector<1x8x512xbf16> to vector<8x512xbf16>
    %c24 = arith.constant 24 : index
    %c0_43 = arith.constant 0 : index
    %50 = vector.load %arg14[%c24, %c0_43] : memref<200x512xbf16, #tpu.memory_space<vmem>>, vector<8x512xbf16>
    tpu.vector_store %arg14[%c24, %c0_43], %49 {strides = array<i32>} : memref<200x512xbf16, #tpu.memory_space<vmem>>, vector<8x512xbf16>,
    %c0_44 = arith.constant 0 : index
    %c0_45 = arith.constant 0 : index
    %c128_46 = arith.constant 128 : index
    %51 = vector.load %arg1[%c0_44, %c0_45, %c128_46] : memref<1x8x768xbf16, #tpu.memory_space<vmem>>, vector<1x8x512xbf16>
    %52 = vector.shape_cast %51 : vector<1x8x512xbf16> to vector<8x512xbf16>
    %c32 = arith.constant 32 : index
    %c0_47 = arith.constant 0 : index
    %53 = vector.load %arg14[%c32, %c0_47] : memref<200x512xbf16, #tpu.memory_space<vmem>>, vector<8x512xbf16>
    tpu.vector_store %arg14[%c32, %c0_47], %52 {strides = array<i32>} : memref<200x512xbf16, #tpu.memory_space<vmem>>, vector<8x512xbf16>,
    %c0_48 = arith.constant 0 : index
    %c0_49 = arith.constant 0 : index
    %c129 = arith.constant 129 : index
    %54 = vector.load %arg1[%c0_48, %c0_49, %c129] : memref<1x8x768xbf16, #tpu.memory_space<vmem>>, vector<1x8x512xbf16>
    %55 = vector.shape_cast %54 : vector<1x8x512xbf16> to vector<8x512xbf16>
    %c40 = arith.constant 40 : index
    %c0_50 = arith.constant 0 : index
    %56 = vector.load %arg14[%c40, %c0_50] : memref<200x512xbf16, #tpu.memory_space<vmem>>, vector<8x512xbf16>
    tpu.vector_store %arg14[%c40, %c0_50], %55 {strides = array<i32>} : memref<200x512xbf16, #tpu.memory_space<vmem>>, vector<8x512xbf16>,
    %c0_51 = arith.constant 0 : index
    %c0_52 = arith.constant 0 : index
    %c147 = arith.constant 147 : index
    %57 = vector.load %arg1[%c0_51, %c0_52, %c147] : memref<1x8x768xbf16, #tpu.memory_space<vmem>>, vector<1x8x512xbf16>
    %58 = vector.shape_cast %57 : vector<1x8x512xbf16> to vector<8x512xbf16>
    %c48 = arith.constant 48 : index
    %c0_53 = arith.constant 0 : index
    %59 = vector.load %arg14[%c48, %c0_53] : memref<200x512xbf16, #tpu.memory_space<vmem>>, vector<8x512xbf16>
    tpu.vector_store %arg14[%c48, %c0_53], %58 {strides = array<i32>} : memref<200x512xbf16, #tpu.memory_space<vmem>>, vector<8x512xbf16>,
    %c0_54 = arith.constant 0 : index
    %c0_55 = arith.constant 0 : index
    %c148 = arith.constant 148 : index
    %60 = vector.load %arg1[%c0_54, %c0_55, %c148] : memref<1x8x768xbf16, #tpu.memory_space<vmem>>, vector<1x8x512xbf16>
    %61 = vector.shape_cast %60 : vector<1x8x512xbf16> to vector<8x512xbf16>
    %c56 = arith.constant 56 : index
    %c0_56 = arith.constant 0 : index
    %62 = vector.load %arg14[%c56, %c0_56] : memref<200x512xbf16, #tpu.memory_space<vmem>>, vector<8x512xbf16>
    tpu.vector_store %arg14[%c56, %c0_56], %61 {strides = array<i32>} : memref<200x512xbf16, #tpu.memory_space<vmem>>, vector<8x512xbf16>,
    %c0_57 = arith.constant 0 : index
    %c0_58 = arith.constant 0 : index
    %c149 = arith.constant 149 : index
    %63 = vector.load %arg1[%c0_57, %c0_58, %c149] : memref<1x8x768xbf16, #tpu.memory_space<vmem>>, vector<1x8x512xbf16>
    %64 = vector.shape_cast %63 : vector<1x8x512xbf16> to vector<8x512xbf16>
    %c64 = arith.constant 64 : index
    %c0_59 = arith.constant 0 : index
    %65 = vector.load %arg14[%c64, %c0_59] : memref<200x512xbf16, #tpu.memory_space<vmem>>, vector<8x512xbf16>
    tpu.vector_store %arg14[%c64, %c0_59], %64 {strides = array<i32>} : memref<200x512xbf16, #tpu.memory_space<vmem>>, vector<8x512xbf16>,
    %c0_60 = arith.constant 0 : index
    %c0_61 = arith.constant 0 : index
    %66 = vector.load %arg4[%c0_60, %c0_61] : memref<8x72xbf16, #tpu.memory_space<vmem>>, vector<8x72xbf16>
    %c0_62 = arith.constant 0 : index
    %c0_63 = arith.constant 0 : index
    %67 = vector.load %arg14[%c0_62, %c0_63] : memref<200x512xbf16, #tpu.memory_space<vmem>>, vector<72x512xbf16>
    %cst_64 = arith.constant dense<0.000000e+00> : vector<8x512xf32>
    %68 = tpu.matmul %66, %67, %cst_64 {dimension_numbers = #tpu.dot_dimension_numbers<[1], [0], [0], [1], [0, 0, 1, 1], [], []>} : vector<8x72xbf16>, vector<72x512xbf16>, vector<8x512xf32> -> vector<8x512xf32>
    %c56_65 = arith.constant 56 : index
    %c0_66 = arith.constant 0 : index
    %69 = vector.load %arg9[%c56_65, %c0_66] : memref<64x1xf32, #tpu.memory_space<vmem>>, vector<8x1xf32>
    %70 = vector.broadcast %69 : vector<8x1xf32> to vector<8x512xf32>
    %71 = arith.addf %68, %70 : vector<8x512xf32>
    %cst_67 = arith.constant 0.000000e+00 : f32
    %72 = vector.broadcast %cst_67 : f32 to vector<8x512xf32>
    %73 = arith.maximumf %71, %72 : vector<8x512xf32>
    %c0_68 = arith.constant 0 : index
    %c56_69 = arith.constant 56 : index
    %c0_70 = arith.constant 0 : index
    %74 = vector.load %arg10[%c0_68, %c56_69, %c0_70] : memref<1x64x512xf32, #tpu.memory_space<vmem>>, vector<1x8x512xf32>
    %75 = vector.shape_cast %74 : vector<1x8x512xf32> to vector<8x512xf32>
    %76 = vector.shape_cast %73 : vector<8x512xf32> to vector<1x8x512xf32>
    tpu.vector_store %arg10[%c0_68, %c56_69, %c0_70], %76 {strides = array<i32>} : memref<1x64x512xf32, #tpu.memory_space<vmem>>, vector<1x8x512xf32>,
    %77 = arith.truncf %30 : vector<8x512xf32> to vector<8x512xbf16>
    %c0_71 = arith.constant 0 : index
    %c128_72 = arith.constant 128 : index
    %78 = vector.load %arg11[%c0_71, %c128_72] : memref<8x768xbf16, #tpu.memory_space<vmem>>, vector<8x512xbf16>
    tpu.vector_store %arg11[%c0_71, %c128_72], %77 {strides = array<i32>} : memref<8x768xbf16, #tpu.memory_space<vmem>>, vector<8x512xbf16>,
    %c0_73 = arith.constant 0 : index
    %c86 = arith.constant 86 : index
    %79 = vector.load %arg11[%c0_73, %c86] : memref<8x768xbf16, #tpu.memory_space<vmem>>, vector<8x512xbf16>
    %c0_74 = arith.constant 0 : index
    %c0_75 = arith.constant 0 : index
    %80 = vector.load %arg14[%c0_74, %c0_75] : memref<200x512xbf16, #tpu.memory_space<vmem>>, vector<8x512xbf16>
    tpu.vector_store %arg14[%c0_74, %c0_75], %79 {strides = array<i32>} : memref<200x512xbf16, #tpu.memory_space<vmem>>, vector<8x512xbf16>,
    %c0_76 = arith.constant 0 : index
    %c87 = arith.constant 87 : index
    %81 = vector.load %arg11[%c0_76, %c87] : memref<8x768xbf16, #tpu.memory_space<vmem>>, vector<8x512xbf16>
    %c8_77 = arith.constant 8 : index
    %c0_78 = arith.constant 0 : index
    %82 = vector.load %arg14[%c8_77, %c0_78] : memref<200x512xbf16, #tpu.memory_space<vmem>>, vector<8x512xbf16>
    tpu.vector_store %arg14[%c8_77, %c0_78], %81 {strides = array<i32>} : memref<200x512xbf16, #tpu.memory_space<vmem>>, vector<8x512xbf16>,
    %c0_79 = arith.constant 0 : index
    %c88 = arith.constant 88 : index
    %83 = vector.load %arg11[%c0_79, %c88] : memref<8x768xbf16, #tpu.memory_space<vmem>>, vector<8x512xbf16>
    %c16_80 = arith.constant 16 : index
    %c0_81 = arith.constant 0 : index
    %84 = vector.load %arg14[%c16_80, %c0_81] : memref<200x512xbf16, #tpu.memory_space<vmem>>, vector<8x512xbf16>
    tpu.vector_store %arg14[%c16_80, %c0_81], %83 {strides = array<i32>} : memref<200x512xbf16, #tpu.memory_space<vmem>>, vector<8x512xbf16>,
    %c0_82 = arith.constant 0 : index
    %c89 = arith.constant 89 : index
    %85 = vector.load %arg11[%c0_82, %c89] : memref<8x768xbf16, #tpu.memory_space<vmem>>, vector<8x512xbf16>
    %c24_83 = arith.constant 24 : index
    %c0_84 = arith.constant 0 : index
    %86 = vector.load %arg14[%c24_83, %c0_84] : memref<200x512xbf16, #tpu.memory_space<vmem>>, vector<8x512xbf16>
    tpu.vector_store %arg14[%c24_83, %c0_84], %85 {strides = array<i32>} : memref<200x512xbf16, #tpu.memory_space<vmem>>, vector<8x512xbf16>,
    %c0_85 = arith.constant 0 : index
    %c90 = arith.constant 90 : index
    %87 = vector.load %arg11[%c0_85, %c90] : memref<8x768xbf16, #tpu.memory_space<vmem>>, vector<8x512xbf16>
    %c32_86 = arith.constant 32 : index
    %c0_87 = arith.constant 0 : index
    %88 = vector.load %arg14[%c32_86, %c0_87] : memref<200x512xbf16, #tpu.memory_space<vmem>>, vector<8x512xbf16>
    tpu.vector_store %arg14[%c32_86, %c0_87], %87 {strides = array<i32>} : memref<200x512xbf16, #tpu.memory_space<vmem>>, vector<8x512xbf16>,
    %c0_88 = arith.constant 0 : index
    %c106 = arith.constant 106 : index
    %89 = vector.load %arg11[%c0_88, %c106] : memref<8x768xbf16, #tpu.memory_space<vmem>>, vector<8x512xbf16>
    %c40_89 = arith.constant 40 : index
    %c0_90 = arith.constant 0 : index
    %90 = vector.load %arg14[%c40_89, %c0_90] : memref<200x512xbf16, #tpu.memory_space<vmem>>, vector<8x512xbf16>
    tpu.vector_store %arg14[%c40_89, %c0_90], %89 {strides = array<i32>} : memref<200x512xbf16, #tpu.memory_space<vmem>>, vector<8x512xbf16>,
    %c0_91 = arith.constant 0 : index
    %c107_92 = arith.constant 107 : index
    %91 = vector.load %arg11[%c0_91, %c107_92] : memref<8x768xbf16, #tpu.memory_space<vmem>>, vector<8x512xbf16>
    %c48_93 = arith.constant 48 : index
    %c0_94 = arith.constant 0 : index
    %92 = vector.load %arg14[%c48_93, %c0_94] : memref<200x512xbf16, #tpu.memory_space<vmem>>, vector<8x512xbf16>
    tpu.vector_store %arg14[%c48_93, %c0_94], %91 {strides = array<i32>} : memref<200x512xbf16, #tpu.memory_space<vmem>>, vector<8x512xbf16>,
    %c0_95 = arith.constant 0 : index
    %c108_96 = arith.constant 108 : index
    %93 = vector.load %arg11[%c0_95, %c108_96] : memref<8x768xbf16, #tpu.memory_space<vmem>>, vector<8x512xbf16>
    %c56_97 = arith.constant 56 : index
    %c0_98 = arith.constant 0 : index
    %94 = vector.load %arg14[%c56_97, %c0_98] : memref<200x512xbf16, #tpu.memory_space<vmem>>, vector<8x512xbf16>
    tpu.vector_store %arg14[%c56_97, %c0_98], %93 {strides = array<i32>} : memref<200x512xbf16, #tpu.memory_space<vmem>>, vector<8x512xbf16>,
    %c0_99 = arith.constant 0 : index
    %c109_100 = arith.constant 109 : index
    %95 = vector.load %arg11[%c0_99, %c109_100] : memref<8x768xbf16, #tpu.memory_space<vmem>>, vector<8x512xbf16>
    %c64_101 = arith.constant 64 : index
    %c0_102 = arith.constant 0 : index
    %96 = vector.load %arg14[%c64_101, %c0_102] : memref<200x512xbf16, #tpu.memory_space<vmem>>, vector<8x512xbf16>
    tpu.vector_store %arg14[%c64_101, %c0_102], %95 {strides = array<i32>} : memref<200x512xbf16, #tpu.memory_space<vmem>>, vector<8x512xbf16>,
    %c0_103 = arith.constant 0 : index
    %c110 = arith.constant 110 : index
    %97 = vector.load %arg11[%c0_103, %c110] : memref<8x768xbf16, #tpu.memory_space<vmem>>, vector<8x512xbf16>
    %c72 = arith.constant 72 : index
    %c0_104 = arith.constant 0 : index
    %98 = vector.load %arg14[%c72, %c0_104] : memref<200x512xbf16, #tpu.memory_space<vmem>>, vector<8x512xbf16>
    tpu.vector_store %arg14[%c72, %c0_104], %97 {strides = array<i32>} : memref<200x512xbf16, #tpu.memory_space<vmem>>, vector<8x512xbf16>,
    %c0_105 = arith.constant 0 : index
    %c126 = arith.constant 126 : index
    %99 = vector.load %arg11[%c0_105, %c126] : memref<8x768xbf16, #tpu.memory_space<vmem>>, vector<8x512xbf16>
    %c80 = arith.constant 80 : index
    %c0_106 = arith.constant 0 : index
    %100 = vector.load %arg14[%c80, %c0_106] : memref<200x512xbf16, #tpu.memory_space<vmem>>, vector<8x512xbf16>
    tpu.vector_store %arg14[%c80, %c0_106], %99 {strides = array<i32>} : memref<200x512xbf16, #tpu.memory_space<vmem>>, vector<8x512xbf16>,
    %c0_107 = arith.constant 0 : index
    %c127_108 = arith.constant 127 : index
    %101 = vector.load %arg11[%c0_107, %c127_108] : memref<8x768xbf16, #tpu.memory_space<vmem>>, vector<8x512xbf16>
    %c88_109 = arith.constant 88 : index
    %c0_110 = arith.constant 0 : index
    %102 = vector.load %arg14[%c88_109, %c0_110] : memref<200x512xbf16, #tpu.memory_space<vmem>>, vector<8x512xbf16>
    tpu.vector_store %arg14[%c88_109, %c0_110], %101 {strides = array<i32>} : memref<200x512xbf16, #tpu.memory_space<vmem>>, vector<8x512xbf16>,
    %c0_111 = arith.constant 0 : index
    %c128_112 = arith.constant 128 : index
    %103 = vector.load %arg11[%c0_111, %c128_112] : memref<8x768xbf16, #tpu.memory_space<vmem>>, vector<8x512xbf16>
    %c96 = arith.constant 96 : index
    %c0_113 = arith.constant 0 : index
    %104 = vector.load %arg14[%c96, %c0_113] : memref<200x512xbf16, #tpu.memory_space<vmem>>, vector<8x512xbf16>
    tpu.vector_store %arg14[%c96, %c0_113], %103 {strides = array<i32>} : memref<200x512xbf16, #tpu.memory_space<vmem>>, vector<8x512xbf16>,
    %c0_114 = arith.constant 0 : index
    %c129_115 = arith.constant 129 : index
    %105 = vector.load %arg11[%c0_114, %c129_115] : memref<8x768xbf16, #tpu.memory_space<vmem>>, vector<8x512xbf16>
    %c104 = arith.constant 104 : index
    %c0_116 = arith.constant 0 : index
    %106 = vector.load %arg14[%c104, %c0_116] : memref<200x512xbf16, #tpu.memory_space<vmem>>, vector<8x512xbf16>
    tpu.vector_store %arg14[%c104, %c0_116], %105 {strides = array<i32>} : memref<200x512xbf16, #tpu.memory_space<vmem>>, vector<8x512xbf16>,
    %c0_117 = arith.constant 0 : index
    %c130 = arith.constant 130 : index
    %107 = vector.load %arg11[%c0_117, %c130] : memref<8x768xbf16, #tpu.memory_space<vmem>>, vector<8x512xbf16>
    %c112 = arith.constant 112 : index
    %c0_118 = arith.constant 0 : index
    %108 = vector.load %arg14[%c112, %c0_118] : memref<200x512xbf16, #tpu.memory_space<vmem>>, vector<8x512xbf16>
    tpu.vector_store %arg14[%c112, %c0_118], %107 {strides = array<i32>} : memref<200x512xbf16, #tpu.memory_space<vmem>>, vector<8x512xbf16>,
    %c0_119 = arith.constant 0 : index
    %c146 = arith.constant 146 : index
    %109 = vector.load %arg11[%c0_119, %c146] : memref<8x768xbf16, #tpu.memory_space<vmem>>, vector<8x512xbf16>
    %c120 = arith.constant 120 : index
    %c0_120 = arith.constant 0 : index
    %110 = vector.load %arg14[%c120, %c0_120] : memref<200x512xbf16, #tpu.memory_space<vmem>>, vector<8x512xbf16>
    tpu.vector_store %arg14[%c120, %c0_120], %109 {strides = array<i32>} : memref<200x512xbf16, #tpu.memory_space<vmem>>, vector<8x512xbf16>,
    %c0_121 = arith.constant 0 : index
    %c147_122 = arith.constant 147 : index
    %111 = vector.load %arg11[%c0_121, %c147_122] : memref<8x768xbf16, #tpu.memory_space<vmem>>, vector<8x512xbf16>
    %c128_123 = arith.constant 128 : index
    %c0_124 = arith.constant 0 : index
    %112 = vector.load %arg14[%c128_123, %c0_124] : memref<200x512xbf16, #tpu.memory_space<vmem>>, vector<8x512xbf16>
    tpu.vector_store %arg14[%c128_123, %c0_124], %111 {strides = array<i32>} : memref<200x512xbf16, #tpu.memory_space<vmem>>, vector<8x512xbf16>,
    %c0_125 = arith.constant 0 : index
    %c148_126 = arith.constant 148 : index
    %113 = vector.load %arg11[%c0_125, %c148_126] : memref<8x768xbf16, #tpu.memory_space<vmem>>, vector<8x512xbf16>
    %c136 = arith.constant 136 : index
    %c0_127 = arith.constant 0 : index
    %114 = vector.load %arg14[%c136, %c0_127] : memref<200x512xbf16, #tpu.memory_space<vmem>>, vector<8x512xbf16>
    tpu.vector_store %arg14[%c136, %c0_127], %113 {strides = array<i32>} : memref<200x512xbf16, #tpu.memory_space<vmem>>, vector<8x512xbf16>,
    %c0_128 = arith.constant 0 : index
    %c149_129 = arith.constant 149 : index
    %115 = vector.load %arg11[%c0_128, %c149_129] : memref<8x768xbf16, #tpu.memory_space<vmem>>, vector<8x512xbf16>
    %c144 = arith.constant 144 : index
    %c0_130 = arith.constant 0 : index
    %116 = vector.load %arg14[%c144, %c0_130] : memref<200x512xbf16, #tpu.memory_space<vmem>>, vector<8x512xbf16>
    tpu.vector_store %arg14[%c144, %c0_130], %115 {strides = array<i32>} : memref<200x512xbf16, #tpu.memory_space<vmem>>, vector<8x512xbf16>,
    %c0_131 = arith.constant 0 : index
    %c150 = arith.constant 150 : index
    %117 = vector.load %arg11[%c0_131, %c150] : memref<8x768xbf16, #tpu.memory_space<vmem>>, vector<8x512xbf16>
    %c152 = arith.constant 152 : index
    %c0_132 = arith.constant 0 : index
    %118 = vector.load %arg14[%c152, %c0_132] : memref<200x512xbf16, #tpu.memory_space<vmem>>, vector<8x512xbf16>
    tpu.vector_store %arg14[%c152, %c0_132], %117 {strides = array<i32>} : memref<200x512xbf16, #tpu.memory_space<vmem>>, vector<8x512xbf16>,
    %c0_133 = arith.constant 0 : index
    %c166 = arith.constant 166 : index
    %119 = vector.load %arg11[%c0_133, %c166] : memref<8x768xbf16, #tpu.memory_space<vmem>>, vector<8x512xbf16>
    %c160 = arith.constant 160 : index
    %c0_134 = arith.constant 0 : index
    %120 = vector.load %arg14[%c160, %c0_134] : memref<200x512xbf16, #tpu.memory_space<vmem>>, vector<8x512xbf16>
    tpu.vector_store %arg14[%c160, %c0_134], %119 {strides = array<i32>} : memref<200x512xbf16, #tpu.memory_space<vmem>>, vector<8x512xbf16>,
    %c0_135 = arith.constant 0 : index
    %c167 = arith.constant 167 : index
    %121 = vector.load %arg11[%c0_135, %c167] : memref<8x768xbf16, #tpu.memory_space<vmem>>, vector<8x512xbf16>
    %c168 = arith.constant 168 : index
    %c0_136 = arith.constant 0 : index
    %122 = vector.load %arg14[%c168, %c0_136] : memref<200x512xbf16, #tpu.memory_space<vmem>>, vector<8x512xbf16>
    tpu.vector_store %arg14[%c168, %c0_136], %121 {strides = array<i32>} : memref<200x512xbf16, #tpu.memory_space<vmem>>, vector<8x512xbf16>,
    %c0_137 = arith.constant 0 : index
    %c168_138 = arith.constant 168 : index
    %123 = vector.load %arg11[%c0_137, %c168_138] : memref<8x768xbf16, #tpu.memory_space<vmem>>, vector<8x512xbf16>
    %c176 = arith.constant 176 : index
    %c0_139 = arith.constant 0 : index
    %124 = vector.load %arg14[%c176, %c0_139] : memref<200x512xbf16, #tpu.memory_space<vmem>>, vector<8x512xbf16>
    tpu.vector_store %arg14[%c176, %c0_139], %123 {strides = array<i32>} : memref<200x512xbf16, #tpu.memory_space<vmem>>, vector<8x512xbf16>,
    %c0_140 = arith.constant 0 : index
    %c169 = arith.constant 169 : index
    %125 = vector.load %arg11[%c0_140, %c169] : memref<8x768xbf16, #tpu.memory_space<vmem>>, vector<8x512xbf16>
    %c184 = arith.constant 184 : index
    %c0_141 = arith.constant 0 : index
    %126 = vector.load %arg14[%c184, %c0_141] : memref<200x512xbf16, #tpu.memory_space<vmem>>, vector<8x512xbf16>
    tpu.vector_store %arg14[%c184, %c0_141], %125 {strides = array<i32>} : memref<200x512xbf16, #tpu.memory_space<vmem>>, vector<8x512xbf16>,
    %c0_142 = arith.constant 0 : index
    %c170 = arith.constant 170 : index
    %127 = vector.load %arg11[%c0_142, %c170] : memref<8x768xbf16, #tpu.memory_space<vmem>>, vector<8x512xbf16>
    %c192 = arith.constant 192 : index
    %c0_143 = arith.constant 0 : index
    %128 = vector.load %arg14[%c192, %c0_143] : memref<200x512xbf16, #tpu.memory_space<vmem>>, vector<8x512xbf16>
    tpu.vector_store %arg14[%c192, %c0_143], %127 {strides = array<i32>} : memref<200x512xbf16, #tpu.memory_space<vmem>>, vector<8x512xbf16>,
    %c0_144 = arith.constant 0 : index
    %c0_145 = arith.constant 0 : index
    %129 = vector.load %arg5[%c0_144, %c0_145] : memref<16x200xbf16, #tpu.memory_space<vmem>>, vector<16x200xbf16>
    %c0_146 = arith.constant 0 : index
    %c0_147 = arith.constant 0 : index
    %130 = vector.load %arg14[%c0_146, %c0_147] : memref<200x512xbf16, #tpu.memory_space<vmem>>, vector<200x512xbf16>
    %cst_148 = arith.constant dense<0.000000e+00> : vector<16x512xf32>
    %131 = tpu.matmul %129, %130, %cst_148 {dimension_numbers = #tpu.dot_dimension_numbers<[1], [0], [0], [1], [0, 0, 1, 1], [], []>} : vector<16x200xbf16>, vector<200x512xbf16>, vector<16x512xf32> -> vector<16x512xf32>
    %c8_149 = arith.constant 8 : index
    %c0_150 = arith.constant 0 : index
    %132 = vector.load %arg9[%c8_149, %c0_150] : memref<64x1xf32, #tpu.memory_space<vmem>>, vector<16x1xf32>
    %133 = vector.broadcast %132 : vector<16x1xf32> to vector<16x512xf32>
    %134 = arith.addf %131, %133 : vector<16x512xf32>
    %cst_151 = arith.constant 0.000000e+00 : f32
    %135 = vector.broadcast %cst_151 : f32 to vector<16x512xf32>
    %136 = arith.maximumf %134, %135 : vector<16x512xf32>
    %c0_152 = arith.constant 0 : index
    %c8_153 = arith.constant 8 : index
    %c0_154 = arith.constant 0 : index
    %137 = vector.load %arg10[%c0_152, %c8_153, %c0_154] : memref<1x64x512xf32, #tpu.memory_space<vmem>>, vector<1x16x512xf32>
    %138 = vector.shape_cast %137 : vector<1x16x512xf32> to vector<16x512xf32>
    %139 = vector.shape_cast %136 : vector<16x512xf32> to vector<1x16x512xf32>
    tpu.vector_store %arg10[%c0_152, %c8_153, %c0_154], %139 {strides = array<i32>} : memref<1x64x512xf32, #tpu.memory_space<vmem>>, vector<1x16x512xf32>,
    %140 = arith.truncf %38 : vector<8x512xf32> to vector<8x512xbf16>
    %c0_155 = arith.constant 0 : index
    %c128_156 = arith.constant 128 : index
    %141 = vector.load %arg12[%c0_155, %c128_156] : memref<8x768xbf16, #tpu.memory_space<vmem>>, vector<8x512xbf16>
    tpu.vector_store %arg12[%c0_155, %c128_156], %140 {strides = array<i32>} : memref<8x768xbf16, #tpu.memory_space<vmem>>, vector<8x512xbf16>,
    %c0_157 = arith.constant 0 : index
    %c107_158 = arith.constant 107 : index
    %142 = vector.load %arg12[%c0_157, %c107_158] : memref<8x768xbf16, #tpu.memory_space<vmem>>, vector<8x512xbf16>
    %c0_159 = arith.constant 0 : index
    %c0_160 = arith.constant 0 : index
    %143 = vector.load %arg14[%c0_159, %c0_160] : memref<200x512xbf16, #tpu.memory_space<vmem>>, vector<8x512xbf16>
    tpu.vector_store %arg14[%c0_159, %c0_160], %142 {strides = array<i32>} : memref<200x512xbf16, #tpu.memory_space<vmem>>, vector<8x512xbf16>,
    %c0_161 = arith.constant 0 : index
    %c108_162 = arith.constant 108 : index
    %144 = vector.load %arg12[%c0_161, %c108_162] : memref<8x768xbf16, #tpu.memory_space<vmem>>, vector<8x512xbf16>
    %c8_163 = arith.constant 8 : index
    %c0_164 = arith.constant 0 : index
    %145 = vector.load %arg14[%c8_163, %c0_164] : memref<200x512xbf16, #tpu.memory_space<vmem>>, vector<8x512xbf16>
    tpu.vector_store %arg14[%c8_163, %c0_164], %144 {strides = array<i32>} : memref<200x512xbf16, #tpu.memory_space<vmem>>, vector<8x512xbf16>,
    %c0_165 = arith.constant 0 : index
    %c109_166 = arith.constant 109 : index
    %146 = vector.load %arg12[%c0_165, %c109_166] : memref<8x768xbf16, #tpu.memory_space<vmem>>, vector<8x512xbf16>
    %c16_167 = arith.constant 16 : index
    %c0_168 = arith.constant 0 : index
    %147 = vector.load %arg14[%c16_167, %c0_168] : memref<200x512xbf16, #tpu.memory_space<vmem>>, vector<8x512xbf16>
    tpu.vector_store %arg14[%c16_167, %c0_168], %146 {strides = array<i32>} : memref<200x512xbf16, #tpu.memory_space<vmem>>, vector<8x512xbf16>,
    %c0_169 = arith.constant 0 : index
    %c127_170 = arith.constant 127 : index
    %148 = vector.load %arg12[%c0_169, %c127_170] : memref<8x768xbf16, #tpu.memory_space<vmem>>, vector<8x512xbf16>
    %c24_171 = arith.constant 24 : index
    %c0_172 = arith.constant 0 : index
    %149 = vector.load %arg14[%c24_171, %c0_172] : memref<200x512xbf16, #tpu.memory_space<vmem>>, vector<8x512xbf16>
    tpu.vector_store %arg14[%c24_171, %c0_172], %148 {strides = array<i32>} : memref<200x512xbf16, #tpu.memory_space<vmem>>, vector<8x512xbf16>,
    %c0_173 = arith.constant 0 : index
    %c128_174 = arith.constant 128 : index
    %150 = vector.load %arg12[%c0_173, %c128_174] : memref<8x768xbf16, #tpu.memory_space<vmem>>, vector<8x512xbf16>
    %c32_175 = arith.constant 32 : index
    %c0_176 = arith.constant 0 : index
    %151 = vector.load %arg14[%c32_175, %c0_176] : memref<200x512xbf16, #tpu.memory_space<vmem>>, vector<8x512xbf16>
    tpu.vector_store %arg14[%c32_175, %c0_176], %150 {strides = array<i32>} : memref<200x512xbf16, #tpu.memory_space<vmem>>, vector<8x512xbf16>,
    %c0_177 = arith.constant 0 : index
    %c129_178 = arith.constant 129 : index
    %152 = vector.load %arg12[%c0_177, %c129_178] : memref<8x768xbf16, #tpu.memory_space<vmem>>, vector<8x512xbf16>
    %c40_179 = arith.constant 40 : index
    %c0_180 = arith.constant 0 : index
    %153 = vector.load %arg14[%c40_179, %c0_180] : memref<200x512xbf16, #tpu.memory_space<vmem>>, vector<8x512xbf16>
    tpu.vector_store %arg14[%c40_179, %c0_180], %152 {strides = array<i32>} : memref<200x512xbf16, #tpu.memory_space<vmem>>, vector<8x512xbf16>,
    %c0_181 = arith.constant 0 : index
    %c147_182 = arith.constant 147 : index
    %154 = vector.load %arg12[%c0_181, %c147_182] : memref<8x768xbf16, #tpu.memory_space<vmem>>, vector<8x512xbf16>
    %c48_183 = arith.constant 48 : index
    %c0_184 = arith.constant 0 : index
    %155 = vector.load %arg14[%c48_183, %c0_184] : memref<200x512xbf16, #tpu.memory_space<vmem>>, vector<8x512xbf16>
    tpu.vector_store %arg14[%c48_183, %c0_184], %154 {strides = array<i32>} : memref<200x512xbf16, #tpu.memory_space<vmem>>, vector<8x512xbf16>,
    %c0_185 = arith.constant 0 : index
    %c148_186 = arith.constant 148 : index
    %156 = vector.load %arg12[%c0_185, %c148_186] : memref<8x768xbf16, #tpu.memory_space<vmem>>, vector<8x512xbf16>
    %c56_187 = arith.constant 56 : index
    %c0_188 = arith.constant 0 : index
    %157 = vector.load %arg14[%c56_187, %c0_188] : memref<200x512xbf16, #tpu.memory_space<vmem>>, vector<8x512xbf16>
    tpu.vector_store %arg14[%c56_187, %c0_188], %156 {strides = array<i32>} : memref<200x512xbf16, #tpu.memory_space<vmem>>, vector<8x512xbf16>,
    %c0_189 = arith.constant 0 : index
    %c149_190 = arith.constant 149 : index
    %158 = vector.load %arg12[%c0_189, %c149_190] : memref<8x768xbf16, #tpu.memory_space<vmem>>, vector<8x512xbf16>
    %c64_191 = arith.constant 64 : index
    %c0_192 = arith.constant 0 : index
    %159 = vector.load %arg14[%c64_191, %c0_192] : memref<200x512xbf16, #tpu.memory_space<vmem>>, vector<8x512xbf16>
    tpu.vector_store %arg14[%c64_191, %c0_192], %158 {strides = array<i32>} : memref<200x512xbf16, #tpu.memory_space<vmem>>, vector<8x512xbf16>,
    %c0_193 = arith.constant 0 : index
    %c0_194 = arith.constant 0 : index
    %160 = vector.load %arg6[%c0_193, %c0_194] : memref<16x72xbf16, #tpu.memory_space<vmem>>, vector<16x72xbf16>
    %c0_195 = arith.constant 0 : index
    %c0_196 = arith.constant 0 : index
    %161 = vector.load %arg14[%c0_195, %c0_196] : memref<200x512xbf16, #tpu.memory_space<vmem>>, vector<72x512xbf16>
    %cst_197 = arith.constant dense<0.000000e+00> : vector<16x512xf32>
    %162 = tpu.matmul %160, %161, %cst_197 {dimension_numbers = #tpu.dot_dimension_numbers<[1], [0], [0], [1], [0, 0, 1, 1], [], []>} : vector<16x72xbf16>, vector<72x512xbf16>, vector<16x512xf32> -> vector<16x512xf32>
    %c16_198 = arith.constant 16 : index
    %c0_199 = arith.constant 0 : index
    %163 = vector.load %arg8[%c16_198, %c0_199] : memref<32x1xf32, #tpu.memory_space<vmem>>, vector<16x1xf32>
    %164 = vector.broadcast %163 : vector<16x1xf32> to vector<16x512xf32>
    %165 = arith.addf %162, %164 : vector<16x512xf32>
    %cst_200 = arith.constant 0.000000e+00 : f32
    %166 = vector.broadcast %cst_200 : f32 to vector<16x512xf32>
    %167 = arith.maximumf %165, %166 : vector<16x512xf32>
    %168 = vector.broadcast %0 : vector<1x512xf32> to vector<16x512xf32>
    %169 = arith.mulf %168, %167 : vector<16x512xf32>
    %170 = arith.truncf %169 : vector<16x512xf32> to vector<16x512xbf16>
    %c0_201 = arith.constant 0 : index
    %c128_202 = arith.constant 128 : index
    %171 = vector.load %arg13[%c0_201, %c128_202] : memref<16x768xbf16, #tpu.memory_space<vmem>>, vector<16x512xbf16>
    tpu.vector_store %arg13[%c0_201, %c128_202], %170 {strides = array<i32>} : memref<16x768xbf16, #tpu.memory_space<vmem>>, vector<16x512xbf16>,
    %c0_203 = arith.constant 0 : index
    %c107_204 = arith.constant 107 : index
    %172 = vector.load %arg13[%c0_203, %c107_204] : memref<16x768xbf16, #tpu.memory_space<vmem>>, vector<16x512xbf16>
    %c0_205 = arith.constant 0 : index
    %c0_206 = arith.constant 0 : index
    %173 = vector.load %arg14[%c0_205, %c0_206] : memref<200x512xbf16, #tpu.memory_space<vmem>>, vector<16x512xbf16>
    tpu.vector_store %arg14[%c0_205, %c0_206], %172 {strides = array<i32>} : memref<200x512xbf16, #tpu.memory_space<vmem>>, vector<16x512xbf16>,
    %c0_207 = arith.constant 0 : index
    %c108_208 = arith.constant 108 : index
    %174 = vector.load %arg13[%c0_207, %c108_208] : memref<16x768xbf16, #tpu.memory_space<vmem>>, vector<16x512xbf16>
    %c16_209 = arith.constant 16 : index
    %c0_210 = arith.constant 0 : index
    %175 = vector.load %arg14[%c16_209, %c0_210] : memref<200x512xbf16, #tpu.memory_space<vmem>>, vector<16x512xbf16>
    tpu.vector_store %arg14[%c16_209, %c0_210], %174 {strides = array<i32>} : memref<200x512xbf16, #tpu.memory_space<vmem>>, vector<16x512xbf16>,
    %c0_211 = arith.constant 0 : index
    %c109_212 = arith.constant 109 : index
    %176 = vector.load %arg13[%c0_211, %c109_212] : memref<16x768xbf16, #tpu.memory_space<vmem>>, vector<16x512xbf16>
    %c32_213 = arith.constant 32 : index
    %c0_214 = arith.constant 0 : index
    %177 = vector.load %arg14[%c32_213, %c0_214] : memref<200x512xbf16, #tpu.memory_space<vmem>>, vector<16x512xbf16>
    tpu.vector_store %arg14[%c32_213, %c0_214], %176 {strides = array<i32>} : memref<200x512xbf16, #tpu.memory_space<vmem>>, vector<16x512xbf16>,
    %c0_215 = arith.constant 0 : index
    %c127_216 = arith.constant 127 : index
    %178 = vector.load %arg13[%c0_215, %c127_216] : memref<16x768xbf16, #tpu.memory_space<vmem>>, vector<16x512xbf16>
    %c48_217 = arith.constant 48 : index
    %c0_218 = arith.constant 0 : index
    %179 = vector.load %arg14[%c48_217, %c0_218] : memref<200x512xbf16, #tpu.memory_space<vmem>>, vector<16x512xbf16>
    tpu.vector_store %arg14[%c48_217, %c0_218], %178 {strides = array<i32>} : memref<200x512xbf16, #tpu.memory_space<vmem>>, vector<16x512xbf16>,
    %c0_219 = arith.constant 0 : index
    %c128_220 = arith.constant 128 : index
    %180 = vector.load %arg13[%c0_219, %c128_220] : memref<16x768xbf16, #tpu.memory_space<vmem>>, vector<16x512xbf16>
    %c64_221 = arith.constant 64 : index
    %c0_222 = arith.constant 0 : index
    %181 = vector.load %arg14[%c64_221, %c0_222] : memref<200x512xbf16, #tpu.memory_space<vmem>>, vector<16x512xbf16>
    tpu.vector_store %arg14[%c64_221, %c0_222], %180 {strides = array<i32>} : memref<200x512xbf16, #tpu.memory_space<vmem>>, vector<16x512xbf16>,
    %c0_223 = arith.constant 0 : index
    %c129_224 = arith.constant 129 : index
    %182 = vector.load %arg13[%c0_223, %c129_224] : memref<16x768xbf16, #tpu.memory_space<vmem>>, vector<16x512xbf16>
    %c80_225 = arith.constant 80 : index
    %c0_226 = arith.constant 0 : index
    %183 = vector.load %arg14[%c80_225, %c0_226] : memref<200x512xbf16, #tpu.memory_space<vmem>>, vector<16x512xbf16>
    tpu.vector_store %arg14[%c80_225, %c0_226], %182 {strides = array<i32>} : memref<200x512xbf16, #tpu.memory_space<vmem>>, vector<16x512xbf16>,
    %c0_227 = arith.constant 0 : index
    %c147_228 = arith.constant 147 : index
    %184 = vector.load %arg13[%c0_227, %c147_228] : memref<16x768xbf16, #tpu.memory_space<vmem>>, vector<16x512xbf16>
    %c96_229 = arith.constant 96 : index
    %c0_230 = arith.constant 0 : index
    %185 = vector.load %arg14[%c96_229, %c0_230] : memref<200x512xbf16, #tpu.memory_space<vmem>>, vector<16x512xbf16>
    tpu.vector_store %arg14[%c96_229, %c0_230], %184 {strides = array<i32>} : memref<200x512xbf16, #tpu.memory_space<vmem>>, vector<16x512xbf16>,
    %c0_231 = arith.constant 0 : index
    %c148_232 = arith.constant 148 : index
    %186 = vector.load %arg13[%c0_231, %c148_232] : memref<16x768xbf16, #tpu.memory_space<vmem>>, vector<16x512xbf16>
    %c112_233 = arith.constant 112 : index
    %c0_234 = arith.constant 0 : index
    %187 = vector.load %arg14[%c112_233, %c0_234] : memref<200x512xbf16, #tpu.memory_space<vmem>>, vector<16x512xbf16>
    tpu.vector_store %arg14[%c112_233, %c0_234], %186 {strides = array<i32>} : memref<200x512xbf16, #tpu.memory_space<vmem>>, vector<16x512xbf16>,
    %c0_235 = arith.constant 0 : index
    %c149_236 = arith.constant 149 : index
    %188 = vector.load %arg13[%c0_235, %c149_236] : memref<16x768xbf16, #tpu.memory_space<vmem>>, vector<16x512xbf16>
    %c128_237 = arith.constant 128 : index
    %c0_238 = arith.constant 0 : index
    %189 = vector.load %arg14[%c128_237, %c0_238] : memref<200x512xbf16, #tpu.memory_space<vmem>>, vector<16x512xbf16>
    tpu.vector_store %arg14[%c128_237, %c0_238], %188 {strides = array<i32>} : memref<200x512xbf16, #tpu.memory_space<vmem>>, vector<16x512xbf16>,
    %c0_239 = arith.constant 0 : index
    %c0_240 = arith.constant 0 : index
    %190 = vector.load %arg7[%c0_239, %c0_240] : memref<32x144xbf16, #tpu.memory_space<vmem>>, vector<32x144xbf16>
    %c0_241 = arith.constant 0 : index
    %c0_242 = arith.constant 0 : index
    %191 = vector.load %arg14[%c0_241, %c0_242] : memref<200x512xbf16, #tpu.memory_space<vmem>>, vector<144x512xbf16>
    %cst_243 = arith.constant dense<0.000000e+00> : vector<32x512xf32>
    %192 = tpu.matmul %190, %191, %cst_243 {dimension_numbers = #tpu.dot_dimension_numbers<[1], [0], [0], [1], [0, 0, 1, 1], [], []>} : vector<32x144xbf16>, vector<144x512xbf16>, vector<32x512xf32> -> vector<32x512xf32>
    %c24_244 = arith.constant 24 : index
    %c0_245 = arith.constant 0 : index
    %193 = vector.load %arg9[%c24_244, %c0_245] : memref<64x1xf32, #tpu.memory_space<vmem>>, vector<32x1xf32>
    %194 = vector.broadcast %193 : vector<32x1xf32> to vector<32x512xf32>
    %195 = arith.addf %192, %194 : vector<32x512xf32>
    %cst_246 = arith.constant 0.000000e+00 : f32
    %196 = vector.broadcast %cst_246 : f32 to vector<32x512xf32>
    %197 = arith.maximumf %195, %196 : vector<32x512xf32>
    %c0_247 = arith.constant 0 : index
    %c24_248 = arith.constant 24 : index
    %c0_249 = arith.constant 0 : index
    %198 = vector.load %arg10[%c0_247, %c24_248, %c0_249] : memref<1x64x512xf32, #tpu.memory_space<vmem>>, vector<1x32x512xf32>
    %199 = vector.shape_cast %198 : vector<1x32x512xf32> to vector<32x512xf32>
    %200 = vector.shape_cast %197 : vector<32x512xf32> to vector<1x32x512xf32>
    tpu.vector_store %arg10[%c0_247, %c24_248, %c0_249], %200 {strides = array<i32>} : memref<1x64x512xf32, #tpu.memory_space<vmem>>, vector<1x32x512xf32>,
    return
  }
  func.func @transform_0(%arg0: i32) -> (i32, i32, i32) {
    %c0_i32 = arith.constant 0 : i32
    %c0_i32_0 = arith.constant 0 : i32
    %c0_i32_1 = arith.constant 0 : i32
    return %arg0, %c0_i32, %c0_i32_0 : i32, i32, i32
  }
  func.func @transform_1(%arg0: i32) -> (i32, i32) {
    %c0_i32 = arith.constant 0 : i32
    %c0_i32_0 = arith.constant 0 : i32
    %c0_i32_1 = arith.constant 0 : i32
    return %c0_i32, %c0_i32_0 : i32, i32
  }
  func.func @transform_2(%arg0: i32) -> (i32, i32) {
    %c0_i32 = arith.constant 0 : i32
    %c0_i32_0 = arith.constant 0 : i32
    %c0_i32_1 = arith.constant 0 : i32
    return %c0_i32, %c0_i32_0 : i32, i32
  }
  func.func @transform_3(%arg0: i32) -> (i32, i32) {
    %c0_i32 = arith.constant 0 : i32
    %c0_i32_0 = arith.constant 0 : i32
    %c0_i32_1 = arith.constant 0 : i32
    return %c0_i32, %c0_i32_0 : i32, i32
  }
  func.func @transform_4(%arg0: i32) -> (i32, i32) {
    %c0_i32 = arith.constant 0 : i32
    %c0_i32_0 = arith.constant 0 : i32
    %c0_i32_1 = arith.constant 0 : i32
    return %c0_i32, %c0_i32_0 : i32, i32
  }
  func.func @transform_5(%arg0: i32) -> (i32, i32) {
    %c0_i32 = arith.constant 0 : i32
    %c0_i32_0 = arith.constant 0 : i32
    %c0_i32_1 = arith.constant 0 : i32
    return %c0_i32, %c0_i32_0 : i32, i32
  }
  func.func @transform_6(%arg0: i32) -> (i32, i32) {
    %c0_i32 = arith.constant 0 : i32
    %c0_i32_0 = arith.constant 0 : i32
    %c0_i32_1 = arith.constant 0 : i32
    return %c0_i32, %c0_i32_0 : i32, i32
  }
  func.func @transform_7(%arg0: i32) -> (i32, i32) {
    %c0_i32 = arith.constant 0 : i32
    %c0_i32_0 = arith.constant 0 : i32
    %c0_i32_1 = arith.constant 0 : i32
    return %c0_i32, %c0_i32_0 : i32, i32
  }
  func.func @transform_8(%arg0: i32) -> (i32, i32) {
    %c0_i32 = arith.constant 0 : i32
    %c0_i32_0 = arith.constant 0 : i32
    %c0_i32_1 = arith.constant 0 : i32
    return %c0_i32, %c0_i32_0 : i32, i32
  }
  func.func @transform_9(%arg0: i32) -> (i32, i32, i32) {
    %c0_i32 = arith.constant 0 : i32
    %c0_i32_0 = arith.constant 0 : i32
    %c0_i32_1 = arith.constant 0 : i32
    return %arg0, %c0_i32, %c0_i32_0 : i32, i32, i32
  }
}

</mosaic_0001>

<llo_original>
// kernel: inception_a.1
$region0: #{inception_a.1}
  #allocation0 [shape = 'u32[]', space=smem, size = 0x4, offset = 0x4, fixed_abs, tag = 'smem constant byte address 0x4 - core index']
  #allocation1 [shape = 'u32[144,128]{1,0:T(1,128)}', space=vmem, size = 0x12000, scoped, tag = 'internal scratch']
  #allocation2 [shape = 'bf16[8,768]{1,0:T(8,128)(2,1)}', space=vmem, size = 0x3000, scoped, tag = 'scratch operand']
  #allocation3 [shape = 'bf16[8,768]{1,0:T(8,128)(2,1)}', space=vmem, size = 0x3000, scoped, tag = 'scratch operand']
  #allocation4 [shape = 'bf16[16,768]{1,0:T(16,128)(2,1)}', space=vmem, size = 0x6000, scoped, tag = 'scratch operand']
  #allocation5 [shape = 'bf16[200,512]{1,0:T(8,128)(2,1)}', space=vmem, size = 0x32000, scoped, tag = 'scratch operand']
  %s0 = inlined_call_operand.vmem [shape: bf16[2,8,768], index: 0, kind: input, shape index: {}]
  %s1 = inlined_call_operand.vmem [shape: f32[1,512], index: 1, kind: input, shape index: {}]
  %s2 = inlined_call_operand.vmem [shape: bf16[24,8], index: 2, kind: input, shape index: {}]
  %s3 = inlined_call_operand.vmem [shape: bf16[8,72], index: 3, kind: input, shape index: {}]
  %s4 = inlined_call_operand.vmem [shape: bf16[16,200], index: 4, kind: input, shape index: {}]
  %s5 = inlined_call_operand.vmem [shape: bf16[16,72], index: 5, kind: input, shape index: {}]
  %s6 = inlined_call_operand.vmem [shape: bf16[32,144], index: 6, kind: input, shape index: {}]
  %s7 = inlined_call_operand.vmem [shape: f32[32,1], index: 7, kind: input, shape index: {}]
  %s8 = inlined_call_operand.vmem [shape: f32[64,1], index: 8, kind: input, shape index: {}]
  %s9 = inlined_call_operand.vmem [shape: f32[2,64,512], index: 9, kind: output, shape index: {}]
  %s10 = sld [smem:[#allocation0]]
  $region69: #{inception_a.1} parent=0
    _
  %s12 = ssub.s32 1, %s10
  %s13 = scalar_select 0, %s12, %s10
  loop: start=0, step=1, limit=4
  $region2: #{inception_a.1} parent=0 // loop_pre_header
    _
  $region3: #{inception_a.1} parent=0 // loop_header
    %s15 = sphi 0, %s19
    %p16 = scmp.ge.s32.totalorder %s15, 4
    %s25 = sphi 0, %s27
    %s28 = sphi 0, %s25
    %s29 = sphi 0, %s28
    %s45 = sphi 0, %s29
    %s49 = sphi 0, %s49
    %s51 = sphi 0, %s49
    %s52 = sphi 0, %s51
    %s66 = sphi 0, %s52
    %s70 = sphi 0, %s70
    %s72 = sphi 0, %s70
    %s73 = sphi 0, %s72
    %s87 = sphi 0, %s73
    %s91 = sphi 0, %s91
    %s93 = sphi 0, %s91
    %s94 = sphi 0, %s93
    %s108 = sphi 0, %s94
    %s112 = sphi 0, %s112
    %s114 = sphi 0, %s112
    %s115 = sphi 0, %s114
    %s129 = sphi 0, %s115
    %s133 = sphi 0, %s133
    %s135 = sphi 0, %s133
    %s136 = sphi 0, %s135
    %s150 = sphi 0, %s136
    %s154 = sphi 0, %s154
    %s156 = sphi 0, %s154
    %s157 = sphi 0, %s156
    %s171 = sphi 0, %s157
    %s175 = sphi 0, %s175
    %s177 = sphi 0, %s175
    %s178 = sphi 0, %s177
    %s192 = sphi 0, %s178
    %s196 = sphi 0, %s196
    %s198 = sphi 0, %s196
    %s199 = sphi 0, %s198
    %s213 = sphi 0, %s199
    %s219 = sphi 0, %s221
    %s222 = sphi 0, %s219
    %s223 = sphi 0, %s222
    %s239 = sphi 0, %s223
  $region4: #{inception_a.1} parent=0 // loop_header_branch
    %18 = sbr.rel (%p16) target = $region8
  $region5: #{inception_a.1} parent=0 // loop_body
    %s20 = ssub.s32 %s15, 1
    %s21 = ssub.s32 %s15, 2
    %s22 = sadd.s32 %s15, 1
    %s23 = ssub.s32 %s15, %s22
    %p24 = scmp.eq.s32.totalorder %s23, 0
    %s26 = sadd.s32 %s25, 1
    %s27 = scalar_select %p24, %s25, %s26
    %p30 = pneg %p24
    %p31 = scmp.eq.s32.totalorder %s15, 1
    %p32 = por %p30, %p31
    %p33 = scmp.ne.s32.totalorder %s25, %s28
    %p34 = scmp.eq.s32.totalorder %s15, 0
    %p35 = por %p33, %p34
    %p36 = scmp.ne.s32.totalorder %s25, %s28
    %p37 = scmp.eq.s32.totalorder %s20, 1
    %p38 = por %p36, %p37
    %p39 = scmp.ne.s32.totalorder %s28, %s29
    %p40 = scmp.eq.s32.totalorder %s20, 0
    %p41 = por %p39, %p40
    %p42 = scmp.ne.s32.totalorder %s28, %s29
    %p43 = scmp.eq.s32.totalorder %s21, 1
    %p44 = por %p42, %p43
    %p46 = scmp.ne.s32.totalorder %s29, %s45
    %p47 = scmp.eq.s32.totalorder %s21, 0
    %p48 = por %p46, %p47
    %s50 = sadd.s32 %s49, 1
    %p53 = scmp.eq.s32.totalorder %s15, 1
    %p54 = scmp.ne.s32.totalorder %s49, %s51
    %p55 = scmp.eq.s32.totalorder %s15, 0
    %p56 = por %p54, %p55
    %p57 = scmp.ne.s32.totalorder %s49, %s51
    %p58 = scmp.eq.s32.totalorder %s20, 1
    %p59 = por %p57, %p58
    %p60 = scmp.ne.s32.totalorder %s51, %s52
    %p61 = scmp.eq.s32.totalorder %s20, 0
    %p62 = por %p60, %p61
    %p63 = scmp.ne.s32.totalorder %s51, %s52
    %p64 = scmp.eq.s32.totalorder %s21, 1
    %p65 = por %p63, %p64
    %p67 = scmp.ne.s32.totalorder %s52, %s66
    %p68 = scmp.eq.s32.totalorder %s21, 0
    %p69 = por %p67, %p68
    %s71 = sadd.s32 %s70, 1
    %p74 = scmp.eq.s32.totalorder %s15, 1
    %p75 = scmp.ne.s32.totalorder %s70, %s72
    %p76 = scmp.eq.s32.totalorder %s15, 0
    %p77 = por %p75, %p76
    %p78 = scmp.ne.s32.totalorder %s70, %s72
    %p79 = scmp.eq.s32.totalorder %s20, 1
    %p80 = por %p78, %p79
    %p81 = scmp.ne.s32.totalorder %s72, %s73
    %p82 = scmp.eq.s32.totalorder %s20, 0
    %p83 = por %p81, %p82
    %p84 = scmp.ne.s32.totalorder %s72, %s73
    %p85 = scmp.eq.s32.totalorder %s21, 1
    %p86 = por %p84, %p85
    %p88 = scmp.ne.s32.totalorder %s73, %s87
    %p89 = scmp.eq.s32.totalorder %s21, 0
    %p90 = por %p88, %p89
    %s92 = sadd.s32 %s91, 1
    %p95 = scmp.eq.s32.totalorder %s15, 1
    %p96 = scmp.ne.s32.totalorder %s91, %s93
    %p97 = scmp.eq.s32.totalorder %s15, 0
    %p98 = por %p96, %p97
    %p99 = scmp.ne.s32.totalorder %s91, %s93
    %p100 = scmp.eq.s32.totalorder %s20, 1
    %p101 = por %p99, %p100
    %p102 = scmp.ne.s32.totalorder %s93, %s94
    %p103 = scmp.eq.s32.totalorder %s20, 0
    %p104 = por %p102, %p103
    %p105 = scmp.ne.s32.totalorder %s93, %s94
    %p106 = scmp.eq.s32.totalorder %s21, 1
    %p107 = por %p105, %p106
    %p109 = scmp.ne.s32.totalorder %s94, %s108
    %p110 = scmp.eq.s32.totalorder %s21, 0
    %p111 = por %p109, %p110
    %s113 = sadd.s32 %s112, 1
    %p116 = scmp.eq.s32.totalorder %s15, 1
    %p117 = scmp.ne.s32.totalorder %s112, %s114
    %p118 = scmp.eq.s32.totalorder %s15, 0
    %p119 = por %p117, %p118
    %p120 = scmp.ne.s32.totalorder %s112, %s114
    %p121 = scmp.eq.s32.totalorder %s20, 1
    %p122 = por %p120, %p121
    %p123 = scmp.ne.s32.totalorder %s114, %s115
    %p124 = scmp.eq.s32.totalorder %s20, 0
    %p125 = por %p123, %p124
    %p126 = scmp.ne.s32.totalorder %s114, %s115
    %p127 = scmp.eq.s32.totalorder %s21, 1
    %p128 = por %p126, %p127
    %p130 = scmp.ne.s32.totalorder %s115, %s129
    %p131 = scmp.eq.s32.totalorder %s21, 0
    %p132 = por %p130, %p131
    %s134 = sadd.s32 %s133, 1
    %p137 = scmp.eq.s32.totalorder %s15, 1
    %p138 = scmp.ne.s32.totalorder %s133, %s135
    %p139 = scmp.eq.s32.totalorder %s15, 0
    %p140 = por %p138, %p139
    %p141 = scmp.ne.s32.totalorder %s133, %s135
    %p142 = scmp.eq.s32.totalorder %s20, 1
    %p143 = por %p141, %p142
    %p144 = scmp.ne.s32.totalorder %s135, %s136
    %p145 = scmp.eq.s32.totalorder %s20, 0
    %p146 = por %p144, %p145
    %p147 = scmp.ne.s32.totalorder %s135, %s136
    %p148 = scmp.eq.s32.totalorder %s21, 1
    %p149 = por %p147, %p148
    %p151 = scmp.ne.s32.totalorder %s136, %s150
    %p152 = scmp.eq.s32.totalorder %s21, 0
    %p153 = por %p151, %p152
    %s155 = sadd.s32 %s154, 1
    %p158 = scmp.eq.s32.totalorder %s15, 1
    %p159 = scmp.ne.s32.totalorder %s154, %s156
    %p160 = scmp.eq.s32.totalorder %s15, 0
    %p161 = por %p159, %p160
    %p162 = scmp.ne.s32.totalorder %s154, %s156
    %p163 = scmp.eq.s32.totalorder %s20, 1
    %p164 = por %p162, %p163
    %p165 = scmp.ne.s32.totalorder %s156, %s157
    %p166 = scmp.eq.s32.totalorder %s20, 0
    %p167 = por %p165, %p166
    %p168 = scmp.ne.s32.totalorder %s156, %s157
    %p169 = scmp.eq.s32.totalorder %s21, 1
    %p170 = por %p168, %p169
    %p172 = scmp.ne.s32.totalorder %s157, %s171
    %p173 = scmp.eq.s32.totalorder %s21, 0
    %p174 = por %p172, %p173
    %s176 = sadd.s32 %s175, 1
    %p179 = scmp.eq.s32.totalorder %s15, 1
    %p180 = scmp.ne.s32.totalorder %s175, %s177
    %p181 = scmp.eq.s32.totalorder %s15, 0
    %p182 = por %p180, %p181
    %p183 = scmp.ne.s32.totalorder %s175, %s177
    %p184 = scmp.eq.s32.totalorder %s20, 1
    %p185 = por %p183, %p184
    %p186 = scmp.ne.s32.totalorder %s177, %s178
    %p187 = scmp.eq.s32.totalorder %s20, 0
    %p188 = por %p186, %p187
    %p189 = scmp.ne.s32.totalorder %s177, %s178
    %p190 = scmp.eq.s32.totalorder %s21, 1
    %p191 = por %p189, %p190
    %p193 = scmp.ne.s32.totalorder %s178, %s192
    %p194 = scmp.eq.s32.totalorder %s21, 0
    %p195 = por %p193, %p194
    %s197 = sadd.s32 %s196, 1
    %p200 = scmp.eq.s32.totalorder %s15, 1
    %p201 = scmp.ne.s32.totalorder %s196, %s198
    %p202 = scmp.eq.s32.totalorder %s15, 0
    %p203 = por %p201, %p202
    %p204 = scmp.ne.s32.totalorder %s196, %s198
    %p205 = scmp.eq.s32.totalorder %s20, 1
    %p206 = por %p204, %p205
    %p207 = scmp.ne.s32.totalorder %s198, %s199
    %p208 = scmp.eq.s32.totalorder %s20, 0
    %p209 = por %p207, %p208
    %p210 = scmp.ne.s32.totalorder %s198, %s199
    %p211 = scmp.eq.s32.totalorder %s21, 1
    %p212 = por %p210, %p211
    %p214 = scmp.ne.s32.totalorder %s199, %s213
    %p215 = scmp.eq.s32.totalorder %s21, 0
    %p216 = por %p214, %p215
    %s217 = ssub.s32 %s15, %s22
    %p218 = scmp.eq.s32.totalorder %s217, 0
    %s220 = sadd.s32 %s219, 1
    %s221 = scalar_select %p218, %s219, %s220
    %p224 = pneg %p218
    %p225 = scmp.eq.s32.totalorder %s15, 1
    %p226 = por %p224, %p225
    %p227 = scmp.ne.s32.totalorder %s219, %s222
    %p228 = scmp.eq.s32.totalorder %s15, 0
    %p229 = por %p227, %p228
    %p230 = scmp.ne.s32.totalorder %s219, %s222
    %p231 = scmp.eq.s32.totalorder %s20, 1
    %p232 = por %p230, %p231
    %p233 = scmp.ne.s32.totalorder %s222, %s223
    %p234 = scmp.eq.s32.totalorder %s20, 0
    %p235 = por %p233, %p234
    %p236 = scmp.ne.s32.totalorder %s222, %s223
    %p237 = scmp.eq.s32.totalorder %s21, 1
    %p238 = por %p236, %p237
    %p240 = scmp.ne.s32.totalorder %s223, %s239
    %p241 = scmp.eq.s32.totalorder %s21, 0
    %p242 = por %p240, %p241
    %p243 = scmp.le.s32.totalorder 1, %s15
    %p244 = scmp.lt.s32.totalorder %s15, 3
    %p245 = pnand %p243, %p244
    %p246 = pneg %p245
    // Predicated region
    $region9: #{inception_a.1} parent=5 // pred_check
      _
    $region10: #{inception_a.1} parent=5 // pred_check_branch
      %248 = sbr.rel (%p245) target = $region12
    $region11: #{inception_a.1} parent=5 // pred_region
      %s249 = ssub.s32 %s15, 1
      // Predicated region
      $region13: #{inception_a.1} parent=11 // pred_check
        %p250 = pneg %p62
      $region14: #{inception_a.1} parent=11 // pred_check_branch
        %252 = sbr.rel (%p250) target = $region16
      $region15: #{inception_a.1} parent=11 // pred_region
        _
      $region16: #{inception_a.1} parent=11 // pred_fallthru
        _
      // Predicated region
      $region17: #{inception_a.1} parent=11 // pred_check
        %p253 = pneg %p83
      $region18: #{inception_a.1} parent=11 // pred_check_branch
        %255 = sbr.rel (%p253) target = $region20
      $region19: #{inception_a.1} parent=11 // pred_region
        _
      $region20: #{inception_a.1} parent=11 // pred_fallthru
        _
      // Predicated region
      $region21: #{inception_a.1} parent=11 // pred_check
        %p256 = pneg %p104
      $region22: #{inception_a.1} parent=11 // pred_check_branch
        %258 = sbr.rel (%p256) target = $region24
      $region23: #{inception_a.1} parent=11 // pred_region
        _
      $region24: #{inception_a.1} parent=11 // pred_fallthru
        _
      // Predicated region
      $region25: #{inception_a.1} parent=11 // pred_check
        %p259 = pneg %p125
      $region26: #{inception_a.1} parent=11 // pred_check_branch
        %261 = sbr.rel (%p259) target = $region28
      $region27: #{inception_a.1} parent=11 // pred_region
        _
      $region28: #{inception_a.1} parent=11 // pred_fallthru
        _
      // Predicated region
      $region29: #{inception_a.1} parent=11 // pred_check
        %p262 = pneg %p146
      $region30: #{inception_a.1} parent=11 // pred_check_branch
        %264 = sbr.rel (%p262) target = $region32
      $region31: #{inception_a.1} parent=11 // pred_region
        _
      $region32: #{inception_a.1} parent=11 // pred_fallthru
        _
      // Predicated region
      $region33: #{inception_a.1} parent=11 // pred_check
        %p265 = pneg %p167
      $region34: #{inception_a.1} parent=11 // pred_check_branch
        %267 = sbr.rel (%p265) target = $region36
      $region35: #{inception_a.1} parent=11 // pred_region
        _
      $region36: #{inception_a.1} parent=11 // pred_fallthru
        _
      // Predicated region
      $region37: #{inception_a.1} parent=11 // pred_check
        %p268 = pneg %p188
      $region38: #{inception_a.1} parent=11 // pred_check_branch
        %270 = sbr.rel (%p268) target = $region40
      $region39: #{inception_a.1} parent=11 // pred_region
        _
      $region40: #{inception_a.1} parent=11 // pred_fallthru
        _
      // Predicated region
      $region41: #{inception_a.1} parent=11 // pred_check
        %p271 = pneg %p209
      $region42: #{inception_a.1} parent=11 // pred_check_branch
        %273 = sbr.rel (%p271) target = $region44
      $region43: #{inception_a.1} parent=11 // pred_region
        _
      $region44: #{inception_a.1} parent=11 // pred_fallthru
        _
    $region12: #{inception_a.1} parent=5 // pred_fallthru
      _
    %p274 = scmp.lt.s32.totalorder %s15, 2
    // Predicated region
    $region45: #{inception_a.1} parent=5 // pred_check
      %p275 = pneg %p274
    $region46: #{inception_a.1} parent=5 // pred_check_branch
      %277 = sbr.rel (%p275) target = $region48
    $region47: #{inception_a.1} parent=5 // pred_region
      // Predicated region
      $region49: #{inception_a.1} parent=47 // pred_check
        %p278 = pneg %p35
      $region50: #{inception_a.1} parent=47 // pred_check_branch
        %280 = sbr.rel (%p278) target = $region52
      $region51: #{inception_a.1} parent=47 // pred_region
        %p281 = scmp.lt.s32.totalorder %s15, 1
        %s282 = scalar_select %p281, %s15, 1
        %s283 = smul.addr %s282, 6
        %s284 = smul.addr %s283, 4
        %s285 = scalar_lea.vmem %s0, %s284
      $region52: #{inception_a.1} parent=47 // pred_fallthru
        _
    $region48: #{inception_a.1} parent=5 // pred_fallthru
      _
    %p286 = scmp.le.s32.totalorder 1, %s15
    %p287 = scmp.lt.s32.totalorder %s15, 3
    %p288 = pnand %p286, %p287
    %p289 = pneg %p288
    // Predicated region
    $region53: #{inception_a.1} parent=5 // pred_check
      _
    $region54: #{inception_a.1} parent=5 // pred_check_branch
      %291 = sbr.rel (%p288) target = $region56
    $region55: #{inception_a.1} parent=5 // pred_region
      %s292 = ssub.s32 %s15, 1
      %p293 = scmp.lt.s32.totalorder %s20, 1
      %s294 = scalar_select %p293, %s20, 1
      %s295 = smul.addr %s294, 6
      %s296 = smul.addr %s295, 4
      %s297 = scalar_lea.vmem %s0, %s296
      %p298 = pneg %p41
      %p299 = pneg %p38
      %p300 = pneg %p62
      %p301 = pneg %p59
      %p302 = pneg %p83
      %p303 = pneg %p80
      %p304 = pneg %p104
      %p305 = pneg %p101
      %p306 = pneg %p125
      %p307 = pneg %p122
      %p308 = pneg %p146
      %p309 = pneg %p143
      %p310 = pneg %p167
      %p311 = pneg %p164
      %p312 = pneg %p188
      %p313 = pneg %p185
      %p314 = pneg %p209
      %p315 = pneg %p206
      %p316 = pneg %p235
      %p317 = pneg %p232
      %p318 = scmp.lt.s32.totalorder %s20, 1
      %s319 = scalar_select %p318, %s20, 1
      %s320 = smul.addr %s319, 32
      %s321 = smul.addr %s320, 8
      %s322 = scalar_lea.vmem %s9, %s321
      %p323 = scmp.lt.s32.totalorder %s20, 1
      %s324 = scalar_select %p323, %s20, 1
      %s325 = smul.addr %s324, 6
      %s326 = smul.addr %s325, 4
      %s327 = scalar_lea.vmem %s0, %s326
      %p328 = scmp.lt.s32.totalorder %s20, 1
      %s329 = scalar_select %p328, %s20, 1
      %s330 = smul.addr %s329, 32
      %s331 = smul.addr %s330, 8
      %s332 = scalar_lea.vmem %s9, %s331
      %v334 = vld [vmem:[%s1] sm:$0xf]
      %335 = vst [vmem:[#allocation2] sm:$0xf] 0
      %336 = vst [vmem:[#allocation2 + $0x14] sm:$0xf] 0
      %337 = vst [vmem:[#allocation3] sm:$0xf] 0
      %338 = vst [vmem:[#allocation3 + $0x14] sm:$0xf] 0
      %339 = vst [vmem:[#allocation4] sm:$0xff] 0
      %340 = vst [vmem:[#allocation4 + $0x28] sm:$0xff] 0
      %v341 = vld [vmem:[%s2] sm:$0xf]
      %v342 = vld [vmem:[%s2 + $0x4] sm:$0xf]
      %v343 = vld [vmem:[%s2 + $0x8] sm:$0xf]
      %v344 = vld [vmem:[%s327 + $0x4] sm:$0xff]
      %v345 = vld [vmem:[%s327 + $0xc] sm:$0xff]
      %v349 = vunpack.c.l.b16 %v341
      %v350 = vunpack.c.l.b16 %v342
      %v351 = vunpack.c.l.b16 %v343
      %v352 = vpack.c.b16 %v350, %v349
      %v353 = vpack.c.b16 %v351, %v351
      %v356 = vunpack.c.l.b16 %v344
      %v357 = vunpack.c.h.b16 %v344
      %v358 = vunpack.c.l.b16 %v345
      %v359 = vunpack.c.h.b16 %v345
      %v360 = vpack.c.b16 %v356, %v356
      %v361 = vpack.c.b16 %v357, %v357
      %v362 = vpack.c.b16 %v358, %v358
      %v363 = vpack.c.b16 %v359, %v359
      %vm364 = vcmask 64512
      %v366 = vsel %vm364, %v352, 0
      %v369 = vsel %vm364, %v353, 0
      %vm371 = vcmask 1043456
      %v373 = vsel %vm371, %v360, 0
      %v376 = vsel %vm371, %v361, 0
      %v379 = vsel %vm371, %v362, 0
      %v382 = vsel %vm371, %v363, 0
      %384 = vmatprep.subr.bf16.mxu0 %v376
      %385 = vmatpush1.bf16.msra.mxu0 %v373
      %386 = vmatprep.subr.bf16.mxu0 0
      %387 = vmatpush1.bf16.msra.mxu0 0
      %388 = vmatprep.subr.bf16.mxu0 0
      %389 = vmatpush1.bf16.msra.mxu0 0
      %390 = vmatprep.subr.bf16.mxu0 0
      %391 = vmatpush1.bf16.msra.mxu0 0
      %392 = vmatprep.subr.bf16.mxu0 0
      %393 = vmatpush1.bf16.msra.mxu0 0
      %394 = vmatprep.subr.bf16.mxu0 0
      %395 = vmatpush1.bf16.msra.mxu0 0
      %396 = vmatprep.subr.bf16.mxu0 0
      %397 = vmatpush1.bf16.msra.mxu0 0
      %398 = vmatprep.subr.bf16.mxu0 0
      %399 = vmatpush1.bf16.msra.mxu0 0
      %400 = vmatprep.subr.bf16.mxu0 0
      %401 = vmatpush1.bf16.msra.mxu0 0
      %402 = vmatprep.subr.bf16.mxu0 0
      %403 = vmatpush1.bf16.msra.mxu0 0
      %404 = vmatprep.subr.bf16.mxu0 0
      %405 = vmatpush1.bf16.msra.mxu0 0
      %406 = vmatprep.subr.bf16.mxu0 0
      %407 = vmatpush1.bf16.msra.mxu0 0
      %408 = vmatprep.subr.bf16.mxu0 0
      %409 = vmatpush1.bf16.msra.mxu0 0
      %410 = vmatprep.subr.bf16.mxu0 0
      %411 = vmatpush1.bf16.msra.mxu0 0
      %412 = vmatprep.subr.bf16.mxu0 0
      %413 = vmatpush1.bf16.msra.mxu0 0
      %414 = vmatprep.subr.bf16.mxu0 0
      %415 = vmatpush1.bf16.msra.mxu0 0
      %416 = vmatprep.mubr.bf16.mxu0 0
      %417 = vmatmul.mubr.bf16.gmra.mrb[0].mxu0 %v366
      %v418 = vpop.f32.mrb[0].mxu0
      %v419 = vadd.f32 0.0, %v418
      %v420 = vpop.f32.mrb[0].mxu0
      %v421 = vadd.f32 0.0, %v420
      %v422 = vpop.f32.mrb[0].mxu0
      %v423 = vadd.f32 0.0, %v422
      %v424 = vpop.f32.mrb[0].mxu0
      %v425 = vadd.f32 0.0, %v424
      %426 = vmatprep.mubr.bf16.mxu0 0
      %427 = vmatmul.mubr.bf16.gmra.mrb[0].mxu0 %v369
      %v428 = vpop.f32.mrb[0].mxu0
      %v429 = vadd.f32 0.0, %v428
      %v430 = vpop.f32.mrb[0].mxu0
      %v431 = vadd.f32 0.0, %v430
      %v432 = vpop.f32.mrb[0].mxu0
      %v433 = vpop.f32.mrb[0].mxu0
      %434 = vdwg.mxu0
      %435 = vmatprep.subr.bf16.mxu0 %v382
      %436 = vmatpush1.bf16.msra.mxu0 %v379
      %437 = vmatprep.subr.bf16.mxu0 0
      %438 = vmatpush1.bf16.msra.mxu0 0
      %439 = vmatprep.subr.bf16.mxu0 0
      %440 = vmatpush1.bf16.msra.mxu0 0
      %441 = vmatprep.subr.bf16.mxu0 0
      %442 = vmatpush1.bf16.msra.mxu0 0
      %443 = vmatprep.subr.bf16.mxu0 0
      %444 = vmatpush1.bf16.msra.mxu0 0
      %445 = vmatprep.subr.bf16.mxu0 0
      %446 = vmatpush1.bf16.msra.mxu0 0
      %447 = vmatprep.subr.bf16.mxu0 0
      %448 = vmatpush1.bf16.msra.mxu0 0
      %449 = vmatprep.subr.bf16.mxu0 0
      %450 = vmatpush1.bf16.msra.mxu0 0
      %451 = vmatprep.subr.bf16.mxu0 0
      %452 = vmatpush1.bf16.msra.mxu0 0
      %453 = vmatprep.subr.bf16.mxu0 0
      %454 = vmatpush1.bf16.msra.mxu0 0
      %455 = vmatprep.subr.bf16.mxu0 0
      %456 = vmatpush1.bf16.msra.mxu0 0
      %457 = vmatprep.subr.bf16.mxu0 0
      %458 = vmatpush1.bf16.msra.mxu0 0
      %459 = vmatprep.subr.bf16.mxu0 0
      %460 = vmatpush1.bf16.msra.mxu0 0
      %461 = vmatprep.subr.bf16.mxu0 0
      %462 = vmatpush1.bf16.msra.mxu0 0
      %463 = vmatprep.subr.bf16.mxu0 0
      %464 = vmatpush1.bf16.msra.mxu0 0
      %465 = vmatprep.subr.bf16.mxu0 0
      %466 = vmatpush1.bf16.msra.mxu0 0
      %467 = vmatprep.mubr.bf16.mxu0 0
      %468 = vmatmul.mubr.bf16.gmra.mrb[0].mxu0 %v366
      %v469 = vpop.f32.mrb[0].mxu0
      %v470 = vadd.f32 0.0, %v469
      %v471 = vpop.f32.mrb[0].mxu0
      %v472 = vadd.f32 0.0, %v471
      %v473 = vpop.f32.mrb[0].mxu0
      %v474 = vadd.f32 0.0, %v473
      %v475 = vpop.f32.mrb[0].mxu0
      %v476 = vadd.f32 0.0, %v475
      %477 = vmatprep.mubr.bf16.mxu0 0
      %478 = vmatmul.mubr.bf16.gmra.mrb[0].mxu0 %v369
      %v479 = vpop.f32.mrb[0].mxu0
      %v480 = vadd.f32 0.0, %v479
      %v481 = vpop.f32.mrb[0].mxu0
      %v482 = vadd.f32 0.0, %v481
      %v483 = vpop.f32.mrb[0].mxu0
      %v484 = vpop.f32.mrb[0].mxu0
      %485 = vdwg.mxu0
      %v486 = vld [vmem:[%s8] sm:$0xff]
      %488 = vset.pattern.permute.xlu0 0
      %489 = vperm.xlu0 %488, %v486
      %v490 = vpop.permute.xlu0 %489
      %v492 = vadd.f32 %v419, %v490
      %v493 = vadd.f32 %v421, %v490
      %v494 = vadd.f32 %v470, %v490
      %v495 = vadd.f32 %v472, %v490
      %v496 = vmax.f32 %v492, 0.0
      %v497 = vmax.f32 %v493, 0.0
      %v498 = vmax.f32 %v494, 0.0
      %v499 = vmax.f32 %v495, 0.0
      %500 = vst [vmem:[%s332] sm:$0xff] %v496
      %501 = vst [vmem:[%s332 + $0x8] sm:$0xff] %v497
      %502 = vst [vmem:[%s332 + $0x10] sm:$0xff] %v498
      %503 = vst [vmem:[%s332 + $0x18] sm:$0xff] %v499
      %v504 = vld [vmem:[%s7] sm:$0xff]
      %506 = vset.pattern.permute.xlu0 0
      %507 = vperm.xlu0 %506, %v504
      %v508 = vpop.permute.xlu0 %507
      %v510 = vadd.f32 %v423, %v508
      %v511 = vadd.f32 %v425, %v508
      %v512 = vadd.f32 %v474, %v508
      %v513 = vadd.f32 %v476, %v508
      %v514 = vmax.f32 %v510, 0.0
      %v515 = vmax.f32 %v511, 0.0
      %v516 = vmax.f32 %v512, 0.0
      %v517 = vmax.f32 %v513, 0.0
      %v519 = vlaneseq
      %v520 = vshrl.u32 %v519, 7
      %v521 = vsub.s32 0, %v520
      %v522 = vrot.slane %v334, %v521
      %v523 = vlaneseq
      %v524 = vshrl.u32 %v523, 7
      %v525 = vsub.s32 1, %v524
      %v526 = vrot.slane %v334, %v525
      %v527 = vlaneseq
      %v528 = vshrl.u32 %v527, 7
      %v529 = vsub.s32 2, %v528
      %v530 = vrot.slane %v334, %v529
      %v531 = vlaneseq
      %v532 = vshrl.u32 %v531, 7
      %v533 = vsub.s32 3, %v532
      %v534 = vrot.slane %v334, %v533
      %v539 = vmul.f32 %v522, %v514
      %v540 = vmul.f32 %v526, %v515
      %v541 = vmul.f32 %v530, %v516
      %v542 = vmul.f32 %v534, %v517
      %v543 = vld [vmem:[%s7 + $0x8] sm:$0xff]
      %545 = vset.pattern.permute.xlu0 0
      %546 = vperm.xlu0 %545, %v543
      %v547 = vpop.permute.xlu0 %546
      %v549 = vadd.f32 %v429, %v547
      %v550 = vadd.f32 %v431, %v547
      %v551 = vadd.f32 %v480, %v547
      %v552 = vadd.f32 %v482, %v547
      %v553 = vmax.f32 %v549, 0.0
      %v554 = vmax.f32 %v550, 0.0
      %v555 = vmax.f32 %v551, 0.0
      %v556 = vmax.f32 %v552, 0.0
      %v557 = vmul.f32 %v522, %v553
      %v558 = vmul.f32 %v526, %v554
      %v559 = vmul.f32 %v530, %v555
      %v560 = vmul.f32 %v534, %v556
      %v561 = vld [vmem:[%s327] sm:$0xff]
      %v562 = vld [vmem:[%s327 + $0x8] sm:$0xff]
      %v563 = vld [vmem:[%s327 + $0x10] sm:$0xf]
      %567 = vrot.lane.b32.xlu0 %v561, 21
      %v568 = vpop.permute.xlu0 %567
      %569 = vrot.lane.b32.xlu0 %v562, 21
      %v570 = vpop.permute.xlu0 %569
      %571 = vrot.lane.b32.xlu0 %v563, 21
      %v572 = vpop.permute.xlu0 %571
      %v573 = vrot.slane %v568, 4
      %v574 = vrot.slane %v570, 4
      %v575 = vrot.slane %v572, 4
      %vm576 = vcmask 1043456
      %v577 = vsel %vm576, %v573, %v574
      %vm578 = vcmask 171008
      %v579 = vsel %vm578, %v568, %v577
      %v580 = vsel %vm576, %v574, %v575
      %v581 = vsel %vm578, %v570, %v580
      %584 = vst [vmem:[#allocation5] sm:$0xff] %v579
      %585 = vst [vmem:[#allocation5 + $0x8] sm:$0xff] %v581
      %v586 = vld [vmem:[%s327] sm:$0xff]
      %v587 = vld [vmem:[%s327 + $0x8] sm:$0xff]
      %v588 = vld [vmem:[%s327 + $0x10] sm:$0xf]
      %592 = vrot.lane.b32.xlu0 %v586, 20
      %v593 = vpop.permute.xlu0 %592
      %594 = vrot.lane.b32.xlu0 %v587, 20
      %v595 = vpop.permute.xlu0 %594
      %596 = vrot.lane.b32.xlu0 %v588, 20
      %v597 = vpop.permute.xlu0 %596
      %v598 = vrot.slane %v593, 4
      %v599 = vrot.slane %v595, 4
      %v600 = vrot.slane %v597, 4
      %v601 = vsel %vm576, %v598, %v599
      %vm602 = vcmask 162816
      %v603 = vsel %vm602, %v593, %v601
      %v604 = vsel %vm576, %v599, %v600
      %v605 = vsel %vm602, %v595, %v604
      %608 = vst [vmem:[#allocation5 + $0x10] sm:$0xff] %v603
      %609 = vst [vmem:[#allocation5 + $0x18] sm:$0xff] %v605
      %v610 = vld [vmem:[%s327] sm:$0xff]
      %v611 = vld [vmem:[%s327 + $0x8] sm:$0xff]
      %v612 = vld [vmem:[%s327 + $0x10] sm:$0xf]
      %616 = vrot.lane.b32.xlu0 %v610, 19
      %v617 = vpop.permute.xlu0 %616
      %618 = vrot.lane.b32.xlu0 %v611, 19
      %v619 = vpop.permute.xlu0 %618
      %620 = vrot.lane.b32.xlu0 %v612, 19
      %v621 = vpop.permute.xlu0 %620
      %v622 = vrot.slane %v617, 4
      %v623 = vrot.slane %v619, 4
      %v624 = vrot.slane %v621, 4
      %v625 = vsel %vm576, %v622, %v623
      %vm626 = vcmask 154624
      %v627 = vsel %vm626, %v617, %v625
      %v628 = vsel %vm576, %v623, %v624
      %v629 = vsel %vm626, %v619, %v628
      %632 = vst [vmem:[#allocation5 + $0x20] sm:$0xff] %v627
      %633 = vst [vmem:[#allocation5 + $0x28] sm:$0xff] %v629
      %v634 = vld [vmem:[%s327] sm:$0xff]
      %v635 = vld [vmem:[%s327 + $0x8] sm:$0xff]
      %v636 = vld [vmem:[%s327 + $0x10] sm:$0xf]
      %640 = vrot.lane.b32.xlu0 %v634, 1
      %v641 = vpop.permute.xlu0 %640
      %642 = vrot.lane.b32.xlu0 %v635, 1
      %v643 = vpop.permute.xlu0 %642
      %644 = vrot.lane.b32.xlu0 %v636, 1
      %v645 = vpop.permute.xlu0 %644
      %v646 = vrot.slane %v641, 4
      %v647 = vrot.slane %v643, 4
      %v648 = vrot.slane %v645, 4
      %v649 = vsel %vm576, %v646, %v647
      %vm650 = vcmask 7168
      %v651 = vsel %vm650, %v641, %v649
      %v652 = vsel %vm576, %v647, %v648
      %v653 = vsel %vm650, %v643, %v652
      %656 = vst [vmem:[#allocation5 + $0x30] sm:$0xff] %v651
      %657 = vst [vmem:[#allocation5 + $0x38] sm:$0xff] %v653
      %v658 = vld [vmem:[%s327 + $0x4] sm:$0xff]
      %v659 = vld [vmem:[%s327 + $0xc] sm:$0xff]
      %660 = vst [vmem:[#allocation5 + $0x40] sm:$0xff] %v658
      %661 = vst [vmem:[#allocation5 + $0x48] sm:$0xff] %v659
      %v662 = vld [vmem:[%s327 + $0x4] sm:$0xff]
      %v663 = vld [vmem:[%s327 + $0xc] sm:$0xff]
      %v664 = vld [vmem:[%s327 + $0x14] sm:$0xf]
      %668 = vrot.lane.b32.xlu0 %v662, 127
      %v669 = vpop.permute.xlu0 %668
      %670 = vrot.lane.b32.xlu0 %v663, 127
      %v671 = vpop.permute.xlu0 %670
      %672 = vrot.lane.b32.xlu0 %v664, 127
      %v673 = vpop.permute.xlu0 %672
      %v674 = vrot.slane %v669, 4
      %v675 = vrot.slane %v671, 4
      %v676 = vrot.slane %v673, 4
      %v677 = vsel %vm576, %v674, %v675
      %vm678 = vcmask 1039360
      %v679 = vsel %vm678, %v669, %v677
      %v680 = vsel %vm576, %v675, %v676
      %v681 = vsel %vm678, %v671, %v680
      %684 = vst [vmem:[#allocation5 + $0x50] sm:$0xff] %v679
      %685 = vst [vmem:[#allocation5 + $0x58] sm:$0xff] %v681
      %v686 = vld [vmem:[%s327 + $0x4] sm:$0xff]
      %v687 = vld [vmem:[%s327 + $0xc] sm:$0xff]
      %v688 = vld [vmem:[%s327 + $0x14] sm:$0xf]
      %692 = vrot.lane.b32.xlu0 %v686, 109
      %v693 = vpop.permute.xlu0 %692
      %694 = vrot.lane.b32.xlu0 %v687, 109
      %v695 = vpop.permute.xlu0 %694
      %696 = vrot.lane.b32.xlu0 %v688, 109
      %v697 = vpop.permute.xlu0 %696
      %v698 = vrot.slane %v693, 4
      %v699 = vrot.slane %v695, 4
      %v700 = vrot.slane %v697, 4
      %v701 = vsel %vm576, %v698, %v699
      %vm702 = vcmask 891904
      %v703 = vsel %vm702, %v693, %v701
      %v704 = vsel %vm576, %v699, %v700
      %v705 = vsel %vm702, %v695, %v704
      %708 = vst [vmem:[#allocation5 + $0x60] sm:$0xff] %v703
      %709 = vst [vmem:[#allocation5 + $0x68] sm:$0xff] %v705
      %v710 = vld [vmem:[%s327 + $0x4] sm:$0xff]
      %v711 = vld [vmem:[%s327 + $0xc] sm:$0xff]
      %v712 = vld [vmem:[%s327 + $0x14] sm:$0xf]
      %716 = vrot.lane.b32.xlu0 %v710, 108
      %v717 = vpop.permute.xlu0 %716
      %718 = vrot.lane.b32.xlu0 %v711, 108
      %v719 = vpop.permute.xlu0 %718
      %720 = vrot.lane.b32.xlu0 %v712, 108
      %v721 = vpop.permute.xlu0 %720
      %v722 = vrot.slane %v717, 4
      %v723 = vrot.slane %v719, 4
      %v724 = vrot.slane %v721, 4
      %v725 = vsel %vm576, %v722, %v723
      %vm726 = vcmask 883712
      %v727 = vsel %vm726, %v717, %v725
      %v728 = vsel %vm576, %v723, %v724
      %v729 = vsel %vm726, %v719, %v728
      %732 = vst [vmem:[#allocation5 + $0x70] sm:$0xff] %v727
      %733 = vst [vmem:[#allocation5 + $0x78] sm:$0xff] %v729
      %v734 = vld [vmem:[%s327 + $0x4] sm:$0xff]
      %v735 = vld [vmem:[%s327 + $0xc] sm:$0xff]
      %v736 = vld [vmem:[%s327 + $0x14] sm:$0xf]
      %740 = vrot.lane.b32.xlu0 %v734, 107
      %v741 = vpop.permute.xlu0 %740
      %742 = vrot.lane.b32.xlu0 %v735, 107
      %v743 = vpop.permute.xlu0 %742
      %744 = vrot.lane.b32.xlu0 %v736, 107
      %v745 = vpop.permute.xlu0 %744
      %v746 = vrot.slane %v741, 4
      %v747 = vrot.slane %v743, 4
      %v748 = vrot.slane %v745, 4
      %v749 = vsel %vm576, %v746, %v747
      %vm750 = vcmask 875520
      %v751 = vsel %vm750, %v741, %v749
      %v752 = vsel %vm576, %v747, %v748
      %v753 = vsel %vm750, %v743, %v752
      %756 = vst [vmem:[#allocation5 + $0x80] sm:$0xff] %v751
      %757 = vst [vmem:[#allocation5 + $0x88] sm:$0xff] %v753
      %v758 = vld [vmem:[%s3] sm:$0xf]
      %v759 = vld [vmem:[#allocation5] sm:$0xff]
      %v760 = vld [vmem:[#allocation5 + $0x8] sm:$0xff]
      %v761 = vld [vmem:[#allocation5 + $0x10] sm:$0xff]
      %v762 = vld [vmem:[#allocation5 + $0x18] sm:$0xff]
      %v763 = vld [vmem:[#allocation5 + $0x20] sm:$0xff]
      %v764 = vld [vmem:[#allocation5 + $0x28] sm:$0xff]
      %v765 = vld [vmem:[#allocation5 + $0x30] sm:$0xff]
      %v766 = vld [vmem:[#allocation5 + $0x38] sm:$0xff]
      %v767 = vld [vmem:[#allocation5 + $0x40] sm:$0xff]
      %v768 = vld [vmem:[#allocation5 + $0x48] sm:$0xff]
      %v769 = vld [vmem:[#allocation5 + $0x50] sm:$0xff]
      %v770 = vld [vmem:[#allocation5 + $0x58] sm:$0xff]
      %v771 = vld [vmem:[#allocation5 + $0x60] sm:$0xff]
      %v772 = vld [vmem:[#allocation5 + $0x68] sm:$0xff]
      %v773 = vld [vmem:[#allocation5 + $0x70] sm:$0xff]
      %v774 = vld [vmem:[#allocation5 + $0x78] sm:$0xff]
      %v775 = vld [vmem:[#allocation5 + $0x80] sm:$0xff]
      %v776 = vld [vmem:[#allocation5 + $0x88] sm:$0xff]
      %v777 = vld [vmem:[%s8 + $0x38] sm:$0xff]
      %779 = vset.pattern.permute.xlu0 0
      %780 = vperm.xlu0 %779, %v777
      %v781 = vpop.permute.xlu0 %780
      %v801 = vunpack.c.l.b16 %v759
      %v802 = vunpack.c.h.b16 %v759
      %v803 = vunpack.c.l.b16 %v760
      %v804 = vunpack.c.h.b16 %v760
      %v805 = vunpack.c.l.b16 %v761
      %v806 = vunpack.c.h.b16 %v761
      %v807 = vunpack.c.l.b16 %v762
      %v808 = vunpack.c.h.b16 %v762
      %v809 = vunpack.c.l.b16 %v763
      %v810 = vunpack.c.h.b16 %v763
      %v811 = vunpack.c.l.b16 %v764
      %v812 = vunpack.c.h.b16 %v764
      %v813 = vunpack.c.l.b16 %v765
      %v814 = vunpack.c.h.b16 %v765
      %v815 = vunpack.c.l.b16 %v766
      %v816 = vunpack.c.h.b16 %v766
      %v817 = vunpack.c.l.b16 %v767
      %v818 = vunpack.c.h.b16 %v767
      %v819 = vunpack.c.l.b16 %v768
      %v820 = vunpack.c.h.b16 %v768
      %v821 = vunpack.c.l.b16 %v769
      %v822 = vunpack.c.h.b16 %v769
      %v823 = vunpack.c.l.b16 %v770
      %v824 = vunpack.c.h.b16 %v770
      %v825 = vunpack.c.l.b16 %v771
      %v826 = vunpack.c.h.b16 %v771
      %v827 = vunpack.c.l.b16 %v772
      %v828 = vunpack.c.h.b16 %v772
      %v829 = vunpack.c.l.b16 %v773
      %v830 = vunpack.c.h.b16 %v773
      %v831 = vunpack.c.l.b16 %v774
      %v832 = vunpack.c.h.b16 %v774
      %v833 = vunpack.c.l.b16 %v775
      %v834 = vunpack.c.h.b16 %v775
      %v835 = vunpack.c.l.b16 %v776
      %v836 = vunpack.c.h.b16 %v776
      %v837 = vpack.c.b16 %v805, %v801
      %v838 = vpack.c.b16 %v806, %v802
      %v839 = vpack.c.b16 %v807, %v803
      %v840 = vpack.c.b16 %v808, %v804
      %v841 = vpack.c.b16 %v813, %v809
      %v842 = vpack.c.b16 %v814, %v810
      %v843 = vpack.c.b16 %v815, %v811
      %v844 = vpack.c.b16 %v816, %v812
      %v845 = vpack.c.b16 %v821, %v817
      %v846 = vpack.c.b16 %v822, %v818
      %v847 = vpack.c.b16 %v823, %v819
      %v848 = vpack.c.b16 %v824, %v820
      %v849 = vpack.c.b16 %v829, %v825
      %v850 = vpack.c.b16 %v830, %v826
      %v851 = vpack.c.b16 %v831, %v827
      %v852 = vpack.c.b16 %v832, %v828
      %v853 = vpack.c.b16 %v833, %v833
      %v854 = vpack.c.b16 %v834, %v834
      %v855 = vpack.c.b16 %v835, %v835
      %v856 = vpack.c.b16 %v836, %v836
      %vm873 = vcmask 588800
      %v875 = vsel %vm873, %v758, 0
      %v878 = vsel %vm371, %v853, 0
      %v881 = vsel %vm371, %v854, 0
      %v884 = vsel %vm371, %v855, 0
      %v887 = vsel %vm371, %v856, 0
      %889 = vmatprep.subr.bf16.mxu0 %v838
      %890 = vmatpush1.bf16.msra.mxu0 %v837
      %891 = vmatprep.subr.bf16.mxu0 %v842
      %892 = vmatpush1.bf16.msra.mxu0 %v841
      %893 = vmatprep.subr.bf16.mxu0 %v846
      %894 = vmatpush1.bf16.msra.mxu0 %v845
      %895 = vmatprep.subr.bf16.mxu0 %v850
      %896 = vmatpush1.bf16.msra.mxu0 %v849
      %897 = vmatprep.subr.bf16.mxu0 %v881
      %898 = vmatpush1.bf16.msra.mxu0 %v878
      %899 = vmatprep.subr.bf16.mxu0 0
      %900 = vmatpush1.bf16.msra.mxu0 0
      %901 = vmatprep.subr.bf16.mxu0 0
      %902 = vmatpush1.bf16.msra.mxu0 0
      %903 = vmatprep.subr.bf16.mxu0 0
      %904 = vmatpush1.bf16.msra.mxu0 0
      %905 = vmatprep.subr.bf16.mxu0 0
      %906 = vmatpush1.bf16.msra.mxu0 0
      %907 = vmatprep.subr.bf16.mxu0 0
      %908 = vmatpush1.bf16.msra.mxu0 0
      %909 = vmatprep.subr.bf16.mxu0 0
      %910 = vmatpush1.bf16.msra.mxu0 0
      %911 = vmatprep.subr.bf16.mxu0 0
      %912 = vmatpush1.bf16.msra.mxu0 0
      %913 = vmatprep.subr.bf16.mxu0 0
      %914 = vmatpush1.bf16.msra.mxu0 0
      %915 = vmatprep.subr.bf16.mxu0 0
      %916 = vmatpush1.bf16.msra.mxu0 0
      %917 = vmatprep.subr.bf16.mxu0 0
      %918 = vmatpush1.bf16.msra.mxu0 0
      %919 = vmatprep.subr.bf16.mxu0 0
      %920 = vmatpush1.bf16.msra.mxu0 0
      %921 = vmatprep.mubr.bf16.mxu0 0
      %922 = vmatmul.mubr.bf16.gmra.mrb[0].mxu0 %v875
      %v923 = vpop.f32.mrb[0].mxu0
      %v924 = vadd.f32 %v781, %v923
      %v925 = vpop.f32.mrb[0].mxu0
      %v926 = vadd.f32 %v781, %v925
      %v927 = vpop.f32.mrb[0].mxu0
      %v928 = vpop.f32.mrb[0].mxu0
      %929 = vdwg.mxu0
      %930 = vmatprep.subr.bf16.mxu0 %v840
      %931 = vmatpush1.bf16.msra.mxu0 %v839
      %932 = vmatprep.subr.bf16.mxu0 %v844
      %933 = vmatpush1.bf16.msra.mxu0 %v843
      %934 = vmatprep.subr.bf16.mxu0 %v848
      %935 = vmatpush1.bf16.msra.mxu0 %v847
      %936 = vmatprep.subr.bf16.mxu0 %v852
      %937 = vmatpush1.bf16.msra.mxu0 %v851
      %938 = vmatprep.subr.bf16.mxu0 %v887
      %939 = vmatpush1.bf16.msra.mxu0 %v884
      %940 = vmatprep.subr.bf16.mxu0 0
      %941 = vmatpush1.bf16.msra.mxu0 0
      %942 = vmatprep.subr.bf16.mxu0 0
      %943 = vmatpush1.bf16.msra.mxu0 0
      %944 = vmatprep.subr.bf16.mxu0 0
      %945 = vmatpush1.bf16.msra.mxu0 0
      %946 = vmatprep.subr.bf16.mxu0 0
      %947 = vmatpush1.bf16.msra.mxu0 0
      %948 = vmatprep.subr.bf16.mxu0 0
      %949 = vmatpush1.bf16.msra.mxu0 0
      %950 = vmatprep.subr.bf16.mxu0 0
      %951 = vmatpush1.bf16.msra.mxu0 0
      %952 = vmatprep.subr.bf16.mxu0 0
      %953 = vmatpush1.bf16.msra.mxu0 0
      %954 = vmatprep.subr.bf16.mxu0 0
      %955 = vmatpush1.bf16.msra.mxu0 0
      %956 = vmatprep.subr.bf16.mxu0 0
      %957 = vmatpush1.bf16.msra.mxu0 0
      %958 = vmatprep.subr.bf16.mxu0 0
      %959 = vmatpush1.bf16.msra.mxu0 0
      %960 = vmatprep.subr.bf16.mxu0 0
      %961 = vmatpush1.bf16.msra.mxu0 0
      %962 = vmatprep.mubr.bf16.mxu0 0
      %963 = vmatmul.mubr.bf16.gmra.mrb[0].mxu0 %v875
      %v964 = vpop.f32.mrb[0].mxu0
      %v965 = vadd.f32 %v781, %v964
      %v966 = vpop.f32.mrb[0].mxu0
      %v967 = vadd.f32 %v781, %v966
      %v968 = vpop.f32.mrb[0].mxu0
      %v969 = vpop.f32.mrb[0].mxu0
      %970 = vdwg.mxu0
      %v971 = vmax.f32 %v924, 0.0
      %v972 = vmax.f32 %v926, 0.0
      %v973 = vmax.f32 %v965, 0.0
      %v974 = vmax.f32 %v967, 0.0
      %975 = vst [vmem:[%s332 + $0xe0] sm:$0xff] %v971
      %976 = vst [vmem:[%s332 + $0xe8] sm:$0xff] %v972
      %977 = vst [vmem:[%s332 + $0xf0] sm:$0xff] %v973
      %978 = vst [vmem:[%s332 + $0xf8] sm:$0xff] %v974
      %v979 = vpack.c.bf16 %v539, %v539
      %v980 = vpack.c.bf16 %v540, %v540
      %v981 = vpack.c.bf16 %v541, %v541
      %v982 = vpack.c.bf16 %v542, %v542
      %v987 = vunpack.c.l.b16 %v979
      %v988 = vunpack.c.l.b16 %v980
      %v989 = vunpack.c.l.b16 %v981
      %v990 = vunpack.c.l.b16 %v982
      %v991 = vpack.c.b16 %v988, %v987
      %v992 = vpack.c.b16 %v990, %v989
      %995 = vst [vmem:[#allocation2 + $0x4] sm:$0xff] %v991
      %996 = vst [vmem:[#allocation2 + $0xc] sm:$0xff] %v992
      %v997 = vld [vmem:[#allocation2] sm:$0xff]
      %v998 = vld [vmem:[#allocation2 + $0x8] sm:$0xff]
      %v999 = vld [vmem:[#allocation2 + $0x10] sm:$0xf]
      %1003 = vrot.lane.b32.xlu0 %v997, 42
      %v1004 = vpop.permute.xlu0 %1003
      %1005 = vrot.lane.b32.xlu0 %v998, 42
      %v1006 = vpop.permute.xlu0 %1005
      %1007 = vrot.lane.b32.xlu0 %v999, 42
      %v1008 = vpop.permute.xlu0 %1007
      %v1009 = vrot.slane %v1004, 4
      %v1010 = vrot.slane %v1006, 4
      %v1011 = vrot.slane %v1008, 4
      %v1012 = vsel %vm576, %v1009, %v1010
      %vm1013 = vcmask 343040
      %v1014 = vsel %vm1013, %v1004, %v1012
      %v1015 = vsel %vm576, %v1010, %v1011
      %v1016 = vsel %vm1013, %v1006, %v1015
      %1019 = vst [vmem:[#allocation5] sm:$0xff] %v1014
      %1020 = vst [vmem:[#allocation5 + $0x8] sm:$0xff] %v1016
      %v1021 = vld [vmem:[#allocation2] sm:$0xff]
      %v1022 = vld [vmem:[#allocation2 + $0x8] sm:$0xff]
      %v1023 = vld [vmem:[#allocation2 + $0x10] sm:$0xf]
      %1027 = vrot.lane.b32.xlu0 %v1021, 41
      %v1028 = vpop.permute.xlu0 %1027
      %1029 = vrot.lane.b32.xlu0 %v1022, 41
      %v1030 = vpop.permute.xlu0 %1029
      %1031 = vrot.lane.b32.xlu0 %v1023, 41
      %v1032 = vpop.permute.xlu0 %1031
      %v1033 = vrot.slane %v1028, 4
      %v1034 = vrot.slane %v1030, 4
      %v1035 = vrot.slane %v1032, 4
      %v1036 = vsel %vm576, %v1033, %v1034
      %vm1037 = vcmask 334848
      %v1038 = vsel %vm1037, %v1028, %v1036
      %v1039 = vsel %vm576, %v1034, %v1035
      %v1040 = vsel %vm1037, %v1030, %v1039
      %1043 = vst [vmem:[#allocation5 + $0x10] sm:$0xff] %v1038
      %1044 = vst [vmem:[#allocation5 + $0x18] sm:$0xff] %v1040
      %v1045 = vld [vmem:[#allocation2] sm:$0xff]
      %v1046 = vld [vmem:[#allocation2 + $0x8] sm:$0xff]
      %v1047 = vld [vmem:[#allocation2 + $0x10] sm:$0xf]
      %1051 = vrot.lane.b32.xlu0 %v1045, 40
      %v1052 = vpop.permute.xlu0 %1051
      %1053 = vrot.lane.b32.xlu0 %v1046, 40
      %v1054 = vpop.permute.xlu0 %1053
      %1055 = vrot.lane.b32.xlu0 %v1047, 40
      %v1056 = vpop.permute.xlu0 %1055
      %v1057 = vrot.slane %v1052, 4
      %v1058 = vrot.slane %v1054, 4
      %v1059 = vrot.slane %v1056, 4
      %v1060 = vsel %vm576, %v1057, %v1058
      %vm1061 = vcmask 326656
      %v1062 = vsel %vm1061, %v1052, %v1060
      %v1063 = vsel %vm576, %v1058, %v1059
      %v1064 = vsel %vm1061, %v1054, %v1063
      %1067 = vst [vmem:[#allocation5 + $0x20] sm:$0xff] %v1062
      %1068 = vst [vmem:[#allocation5 + $0x28] sm:$0xff] %v1064
      %v1069 = vld [vmem:[#allocation2] sm:$0xff]
      %v1070 = vld [vmem:[#allocation2 + $0x8] sm:$0xff]
      %v1071 = vld [vmem:[#allocation2 + $0x10] sm:$0xf]
      %1075 = vrot.lane.b32.xlu0 %v1069, 39
      %v1076 = vpop.permute.xlu0 %1075
      %1077 = vrot.lane.b32.xlu0 %v1070, 39
      %v1078 = vpop.permute.xlu0 %1077
      %1079 = vrot.lane.b32.xlu0 %v1071, 39
      %v1080 = vpop.permute.xlu0 %1079
      %v1081 = vrot.slane %v1076, 4
      %v1082 = vrot.slane %v1078, 4
      %v1083 = vrot.slane %v1080, 4
      %v1084 = vsel %vm576, %v1081, %v1082
      %vm1085 = vcmask 318464
      %v1086 = vsel %vm1085, %v1076, %v1084
      %v1087 = vsel %vm576, %v1082, %v1083
      %v1088 = vsel %vm1085, %v1078, %v1087
      %1091 = vst [vmem:[#allocation5 + $0x30] sm:$0xff] %v1086
      %1092 = vst [vmem:[#allocation5 + $0x38] sm:$0xff] %v1088
      %v1093 = vld [vmem:[#allocation2] sm:$0xff]
      %v1094 = vld [vmem:[#allocation2 + $0x8] sm:$0xff]
      %v1095 = vld [vmem:[#allocation2 + $0x10] sm:$0xf]
      %1099 = vrot.lane.b32.xlu0 %v1093, 38
      %v1100 = vpop.permute.xlu0 %1099
      %1101 = vrot.lane.b32.xlu0 %v1094, 38
      %v1102 = vpop.permute.xlu0 %1101
      %1103 = vrot.lane.b32.xlu0 %v1095, 38
      %v1104 = vpop.permute.xlu0 %1103
      %v1105 = vrot.slane %v1100, 4
      %v1106 = vrot.slane %v1102, 4
      %v1107 = vrot.slane %v1104, 4
      %v1108 = vsel %vm576, %v1105, %v1106
      %vm1109 = vcmask 310272
      %v1110 = vsel %vm1109, %v1100, %v1108
      %v1111 = vsel %vm576, %v1106, %v1107
      %v1112 = vsel %vm1109, %v1102, %v1111
      %1115 = vst [vmem:[#allocation5 + $0x40] sm:$0xff] %v1110
      %1116 = vst [vmem:[#allocation5 + $0x48] sm:$0xff] %v1112
      %v1117 = vld [vmem:[#allocation2] sm:$0xff]
      %v1118 = vld [vmem:[#allocation2 + $0x8] sm:$0xff]
      %v1119 = vld [vmem:[#allocation2 + $0x10] sm:$0xf]
      %1123 = vrot.lane.b32.xlu0 %v1117, 22
      %v1124 = vpop.permute.xlu0 %1123
      %1125 = vrot.lane.b32.xlu0 %v1118, 22
      %v1126 = vpop.permute.xlu0 %1125
      %1127 = vrot.lane.b32.xlu0 %v1119, 22
      %v1128 = vpop.permute.xlu0 %1127
      %v1129 = vrot.slane %v1124, 4
      %v1130 = vrot.slane %v1126, 4
      %v1131 = vrot.slane %v1128, 4
      %v1132 = vsel %vm576, %v1129, %v1130
      %vm1133 = vcmask 179200
      %v1134 = vsel %vm1133, %v1124, %v1132
      %v1135 = vsel %vm576, %v1130, %v1131
      %v1136 = vsel %vm1133, %v1126, %v1135
      %1139 = vst [vmem:[#allocation5 + $0x50] sm:$0xff] %v1134
      %1140 = vst [vmem:[#allocation5 + $0x58] sm:$0xff] %v1136
      %v1141 = vld [vmem:[#allocation2] sm:$0xff]
      %v1142 = vld [vmem:[#allocation2 + $0x8] sm:$0xff]
      %v1143 = vld [vmem:[#allocation2 + $0x10] sm:$0xf]
      %1147 = vrot.lane.b32.xlu0 %v1141, 21
      %v1148 = vpop.permute.xlu0 %1147
      %1149 = vrot.lane.b32.xlu0 %v1142, 21
      %v1150 = vpop.permute.xlu0 %1149
      %1151 = vrot.lane.b32.xlu0 %v1143, 21
      %v1152 = vpop.permute.xlu0 %1151
      %v1153 = vrot.slane %v1148, 4
      %v1154 = vrot.slane %v1150, 4
      %v1155 = vrot.slane %v1152, 4
      %v1156 = vsel %vm576, %v1153, %v1154
      %v1157 = vsel %vm578, %v1148, %v1156
      %v1158 = vsel %vm576, %v1154, %v1155
      %v1159 = vsel %vm578, %v1150, %v1158
      %1162 = vst [vmem:[#allocation5 + $0x60] sm:$0xff] %v1157
      %1163 = vst [vmem:[#allocation5 + $0x68] sm:$0xff] %v1159
      %v1164 = vld [vmem:[#allocation2] sm:$0xff]
      %v1165 = vld [vmem:[#allocation2 + $0x8] sm:$0xff]
      %v1166 = vld [vmem:[#allocation2 + $0x10] sm:$0xf]
      %1170 = vrot.lane.b32.xlu0 %v1164, 20
      %v1171 = vpop.permute.xlu0 %1170
      %1172 = vrot.lane.b32.xlu0 %v1165, 20
      %v1173 = vpop.permute.xlu0 %1172
      %1174 = vrot.lane.b32.xlu0 %v1166, 20
      %v1175 = vpop.permute.xlu0 %1174
      %v1176 = vrot.slane %v1171, 4
      %v1177 = vrot.slane %v1173, 4
      %v1178 = vrot.slane %v1175, 4
      %v1179 = vsel %vm576, %v1176, %v1177
      %v1180 = vsel %vm602, %v1171, %v1179
      %v1181 = vsel %vm576, %v1177, %v1178
      %v1182 = vsel %vm602, %v1173, %v1181
      %1185 = vst [vmem:[#allocation5 + $0x70] sm:$0xff] %v1180
      %1186 = vst [vmem:[#allocation5 + $0x78] sm:$0xff] %v1182
      %v1187 = vld [vmem:[#allocation2] sm:$0xff]
      %v1188 = vld [vmem:[#allocation2 + $0x8] sm:$0xff]
      %v1189 = vld [vmem:[#allocation2 + $0x10] sm:$0xf]
      %1193 = vrot.lane.b32.xlu0 %v1187, 19
      %v1194 = vpop.permute.xlu0 %1193
      %1195 = vrot.lane.b32.xlu0 %v1188, 19
      %v1196 = vpop.permute.xlu0 %1195
      %1197 = vrot.lane.b32.xlu0 %v1189, 19
      %v1198 = vpop.permute.xlu0 %1197
      %v1199 = vrot.slane %v1194, 4
      %v1200 = vrot.slane %v1196, 4
      %v1201 = vrot.slane %v1198, 4
      %v1202 = vsel %vm576, %v1199, %v1200
      %v1203 = vsel %vm626, %v1194, %v1202
      %v1204 = vsel %vm576, %v1200, %v1201
      %v1205 = vsel %vm626, %v1196, %v1204
      %1208 = vst [vmem:[#allocation5 + $0x80] sm:$0xff] %v1203
      %1209 = vst [vmem:[#allocation5 + $0x88] sm:$0xff] %v1205
      %v1210 = vld [vmem:[#allocation2] sm:$0xff]
      %v1211 = vld [vmem:[#allocation2 + $0x8] sm:$0xff]
      %v1212 = vld [vmem:[#allocation2 + $0x10] sm:$0xf]
      %1216 = vrot.lane.b32.xlu0 %v1210, 18
      %v1217 = vpop.permute.xlu0 %1216
      %1218 = vrot.lane.b32.xlu0 %v1211, 18
      %v1219 = vpop.permute.xlu0 %1218
      %1220 = vrot.lane.b32.xlu0 %v1212, 18
      %v1221 = vpop.permute.xlu0 %1220
      %v1222 = vrot.slane %v1217, 4
      %v1223 = vrot.slane %v1219, 4
      %v1224 = vrot.slane %v1221, 4
      %v1225 = vsel %vm576, %v1222, %v1223
      %vm1226 = vcmask 146432
      %v1227 = vsel %vm1226, %v1217, %v1225
      %v1228 = vsel %vm576, %v1223, %v1224
      %v1229 = vsel %vm1226, %v1219, %v1228
      %1232 = vst [vmem:[#allocation5 + $0x90] sm:$0xff] %v1227
      %1233 = vst [vmem:[#allocation5 + $0x98] sm:$0xff] %v1229
      %v1234 = vld [vmem:[#allocation2] sm:$0xff]
      %v1235 = vld [vmem:[#allocation2 + $0x8] sm:$0xff]
      %v1236 = vld [vmem:[#allocation2 + $0x10] sm:$0xf]
      %1240 = vrot.lane.b32.xlu0 %v1234, 2
      %v1241 = vpop.permute.xlu0 %1240
      %1242 = vrot.lane.b32.xlu0 %v1235, 2
      %v1243 = vpop.permute.xlu0 %1242
      %1244 = vrot.lane.b32.xlu0 %v1236, 2
      %v1245 = vpop.permute.xlu0 %1244
      %v1246 = vrot.slane %v1241, 4
      %v1247 = vrot.slane %v1243, 4
      %v1248 = vrot.slane %v1245, 4
      %v1249 = vsel %vm576, %v1246, %v1247
      %vm1250 = vcmask 15360
      %v1251 = vsel %vm1250, %v1241, %v1249
      %v1252 = vsel %vm576, %v1247, %v1248
      %v1253 = vsel %vm1250, %v1243, %v1252
      %1256 = vst [vmem:[#allocation5 + $0xa0] sm:$0xff] %v1251
      %1257 = vst [vmem:[#allocation5 + $0xa8] sm:$0xff] %v1253
      %v1258 = vld [vmem:[#allocation2] sm:$0xff]
      %v1259 = vld [vmem:[#allocation2 + $0x8] sm:$0xff]
      %v1260 = vld [vmem:[#allocation2 + $0x10] sm:$0xf]
      %1264 = vrot.lane.b32.xlu0 %v1258, 1
      %v1265 = vpop.permute.xlu0 %1264
      %1266 = vrot.lane.b32.xlu0 %v1259, 1
      %v1267 = vpop.permute.xlu0 %1266
      %1268 = vrot.lane.b32.xlu0 %v1260, 1
      %v1269 = vpop.permute.xlu0 %1268
      %v1270 = vrot.slane %v1265, 4
      %v1271 = vrot.slane %v1267, 4
      %v1272 = vrot.slane %v1269, 4
      %v1273 = vsel %vm576, %v1270, %v1271
      %v1274 = vsel %vm650, %v1265, %v1273
      %v1275 = vsel %vm576, %v1271, %v1272
      %v1276 = vsel %vm650, %v1267, %v1275
      %1279 = vst [vmem:[#allocation5 + $0xb0] sm:$0xff] %v1274
      %1280 = vst [vmem:[#allocation5 + $0xb8] sm:$0xff] %v1276
      %v1281 = vld [vmem:[#allocation2 + $0x4] sm:$0xff]
      %v1282 = vld [vmem:[#allocation2 + $0xc] sm:$0xff]
      %1283 = vst [vmem:[#allocation5 + $0xc0] sm:$0xff] %v1281
      %1284 = vst [vmem:[#allocation5 + $0xc8] sm:$0xff] %v1282
      %v1285 = vld [vmem:[#allocation2 + $0x4] sm:$0xff]
      %v1286 = vld [vmem:[#allocation2 + $0xc] sm:$0xff]
      %v1287 = vld [vmem:[#allocation2 + $0x14] sm:$0xf]
      %1291 = vrot.lane.b32.xlu0 %v1285, 127
      %v1292 = vpop.permute.xlu0 %1291
      %1293 = vrot.lane.b32.xlu0 %v1286, 127
      %v1294 = vpop.permute.xlu0 %1293
      %1295 = vrot.lane.b32.xlu0 %v1287, 127
      %v1296 = vpop.permute.xlu0 %1295
      %v1297 = vrot.slane %v1292, 4
      %v1298 = vrot.slane %v1294, 4
      %v1299 = vrot.slane %v1296, 4
      %v1300 = vsel %vm576, %v1297, %v1298
      %v1301 = vsel %vm678, %v1292, %v1300
      %v1302 = vsel %vm576, %v1298, %v1299
      %v1303 = vsel %vm678, %v1294, %v1302
      %1306 = vst [vmem:[#allocation5 + $0xd0] sm:$0xff] %v1301
      %1307 = vst [vmem:[#allocation5 + $0xd8] sm:$0xff] %v1303
      %v1308 = vld [vmem:[#allocation2 + $0x4] sm:$0xff]
      %v1309 = vld [vmem:[#allocation2 + $0xc] sm:$0xff]
      %v1310 = vld [vmem:[#allocation2 + $0x14] sm:$0xf]
      %1314 = vrot.lane.b32.xlu0 %v1308, 126
      %v1315 = vpop.permute.xlu0 %1314
      %1316 = vrot.lane.b32.xlu0 %v1309, 126
      %v1317 = vpop.permute.xlu0 %1316
      %1318 = vrot.lane.b32.xlu0 %v1310, 126
      %v1319 = vpop.permute.xlu0 %1318
      %v1320 = vrot.slane %v1315, 4
      %v1321 = vrot.slane %v1317, 4
      %v1322 = vrot.slane %v1319, 4
      %v1323 = vsel %vm576, %v1320, %v1321
      %vm1324 = vcmask 1031168
      %v1325 = vsel %vm1324, %v1315, %v1323
      %v1326 = vsel %vm576, %v1321, %v1322
      %v1327 = vsel %vm1324, %v1317, %v1326
      %1330 = vst [vmem:[#allocation5 + $0xe0] sm:$0xff] %v1325
      %1331 = vst [vmem:[#allocation5 + $0xe8] sm:$0xff] %v1327
      %v1332 = vld [vmem:[#allocation2 + $0x4] sm:$0xff]
      %v1333 = vld [vmem:[#allocation2 + $0xc] sm:$0xff]
      %v1334 = vld [vmem:[#allocation2 + $0x14] sm:$0xf]
      %1338 = vrot.lane.b32.xlu0 %v1332, 110
      %v1339 = vpop.permute.xlu0 %1338
      %1340 = vrot.lane.b32.xlu0 %v1333, 110
      %v1341 = vpop.permute.xlu0 %1340
      %1342 = vrot.lane.b32.xlu0 %v1334, 110
      %v1343 = vpop.permute.xlu0 %1342
      %v1344 = vrot.slane %v1339, 4
      %v1345 = vrot.slane %v1341, 4
      %v1346 = vrot.slane %v1343, 4
      %v1347 = vsel %vm576, %v1344, %v1345
      %vm1348 = vcmask 900096
      %v1349 = vsel %vm1348, %v1339, %v1347
      %v1350 = vsel %vm576, %v1345, %v1346
      %v1351 = vsel %vm1348, %v1341, %v1350
      %1354 = vst [vmem:[#allocation5 + $0xf0] sm:$0xff] %v1349
      %1355 = vst [vmem:[#allocation5 + $0xf8] sm:$0xff] %v1351
      %v1356 = vld [vmem:[#allocation2 + $0x4] sm:$0xff]
      %v1357 = vld [vmem:[#allocation2 + $0xc] sm:$0xff]
      %v1358 = vld [vmem:[#allocation2 + $0x14] sm:$0xf]
      %1362 = vrot.lane.b32.xlu0 %v1356, 109
      %v1363 = vpop.permute.xlu0 %1362
      %1364 = vrot.lane.b32.xlu0 %v1357, 109
      %v1365 = vpop.permute.xlu0 %1364
      %1366 = vrot.lane.b32.xlu0 %v1358, 109
      %v1367 = vpop.permute.xlu0 %1366
      %v1368 = vrot.slane %v1363, 4
      %v1369 = vrot.slane %v1365, 4
      %v1370 = vrot.slane %v1367, 4
      %v1371 = vsel %vm576, %v1368, %v1369
      %v1372 = vsel %vm702, %v1363, %v1371
      %v1373 = vsel %vm576, %v1369, %v1370
      %v1374 = vsel %vm702, %v1365, %v1373
      %1377 = vst [vmem:[#allocation5 + $0x100] sm:$0xff] %v1372
      %1378 = vst [vmem:[#allocation5 + $0x108] sm:$0xff] %v1374
      %v1379 = vld [vmem:[#allocation2 + $0x4] sm:$0xff]
      %v1380 = vld [vmem:[#allocation2 + $0xc] sm:$0xff]
      %v1381 = vld [vmem:[#allocation2 + $0x14] sm:$0xf]
      %1385 = vrot.lane.b32.xlu0 %v1379, 108
      %v1386 = vpop.permute.xlu0 %1385
      %1387 = vrot.lane.b32.xlu0 %v1380, 108
      %v1388 = vpop.permute.xlu0 %1387
      %1389 = vrot.lane.b32.xlu0 %v1381, 108
      %v1390 = vpop.permute.xlu0 %1389
      %v1391 = vrot.slane %v1386, 4
      %v1392 = vrot.slane %v1388, 4
      %v1393 = vrot.slane %v1390, 4
      %v1394 = vsel %vm576, %v1391, %v1392
      %v1395 = vsel %vm726, %v1386, %v1394
      %v1396 = vsel %vm576, %v1392, %v1393
      %v1397 = vsel %vm726, %v1388, %v1396
      %1400 = vst [vmem:[#allocation5 + $0x110] sm:$0xff] %v1395
      %1401 = vst [vmem:[#allocation5 + $0x118] sm:$0xff] %v1397
      %v1402 = vld [vmem:[#allocation2 + $0x4] sm:$0xff]
      %v1403 = vld [vmem:[#allocation2 + $0xc] sm:$0xff]
      %v1404 = vld [vmem:[#allocation2 + $0x14] sm:$0xf]
      %1408 = vrot.lane.b32.xlu0 %v1402, 107
      %v1409 = vpop.permute.xlu0 %1408
      %1410 = vrot.lane.b32.xlu0 %v1403, 107
      %v1411 = vpop.permute.xlu0 %1410
      %1412 = vrot.lane.b32.xlu0 %v1404, 107
      %v1413 = vpop.permute.xlu0 %1412
      %v1414 = vrot.slane %v1409, 4
      %v1415 = vrot.slane %v1411, 4
      %v1416 = vrot.slane %v1413, 4
      %v1417 = vsel %vm576, %v1414, %v1415
      %v1418 = vsel %vm750, %v1409, %v1417
      %v1419 = vsel %vm576, %v1415, %v1416
      %v1420 = vsel %vm750, %v1411, %v1419
      %1423 = vst [vmem:[#allocation5 + $0x120] sm:$0xff] %v1418
      %1424 = vst [vmem:[#allocation5 + $0x128] sm:$0xff] %v1420
      %v1425 = vld [vmem:[#allocation2 + $0x4] sm:$0xff]
      %v1426 = vld [vmem:[#allocation2 + $0xc] sm:$0xff]
      %v1427 = vld [vmem:[#allocation2 + $0x14] sm:$0xf]
      %1431 = vrot.lane.b32.xlu0 %v1425, 106
      %v1432 = vpop.permute.xlu0 %1431
      %1433 = vrot.lane.b32.xlu0 %v1426, 106
      %v1434 = vpop.permute.xlu0 %1433
      %1435 = vrot.lane.b32.xlu0 %v1427, 106
      %v1436 = vpop.permute.xlu0 %1435
      %v1437 = vrot.slane %v1432, 4
      %v1438 = vrot.slane %v1434, 4
      %v1439 = vrot.slane %v1436, 4
      %v1440 = vsel %vm576, %v1437, %v1438
      %vm1441 = vcmask 867328
      %v1442 = vsel %vm1441, %v1432, %v1440
      %v1443 = vsel %vm576, %v1438, %v1439
      %v1444 = vsel %vm1441, %v1434, %v1443
      %1447 = vst [vmem:[#allocation5 + $0x130] sm:$0xff] %v1442
      %1448 = vst [vmem:[#allocation5 + $0x138] sm:$0xff] %v1444
      %v1449 = vld [vmem:[#allocation2 + $0x4] sm:$0xff]
      %v1450 = vld [vmem:[#allocation2 + $0xc] sm:$0xff]
      %v1451 = vld [vmem:[#allocation2 + $0x14] sm:$0xf]
      %1455 = vrot.lane.b32.xlu0 %v1449, 90
      %v1456 = vpop.permute.xlu0 %1455
      %1457 = vrot.lane.b32.xlu0 %v1450, 90
      %v1458 = vpop.permute.xlu0 %1457
      %1459 = vrot.lane.b32.xlu0 %v1451, 90
      %v1460 = vpop.permute.xlu0 %1459
      %v1461 = vrot.slane %v1456, 4
      %v1462 = vrot.slane %v1458, 4
      %v1463 = vrot.slane %v1460, 4
      %v1464 = vsel %vm576, %v1461, %v1462
      %vm1465 = vcmask 736256
      %v1466 = vsel %vm1465, %v1456, %v1464
      %v1467 = vsel %vm576, %v1462, %v1463
      %v1468 = vsel %vm1465, %v1458, %v1467
      %1471 = vst [vmem:[#allocation5 + $0x140] sm:$0xff] %v1466
      %1472 = vst [vmem:[#allocation5 + $0x148] sm:$0xff] %v1468
      %v1473 = vld [vmem:[#allocation2 + $0x4] sm:$0xff]
      %v1474 = vld [vmem:[#allocation2 + $0xc] sm:$0xff]
      %v1475 = vld [vmem:[#allocation2 + $0x14] sm:$0xf]
      %1479 = vrot.lane.b32.xlu0 %v1473, 89
      %v1480 = vpop.permute.xlu0 %1479
      %1481 = vrot.lane.b32.xlu0 %v1474, 89
      %v1482 = vpop.permute.xlu0 %1481
      %1483 = vrot.lane.b32.xlu0 %v1475, 89
      %v1484 = vpop.permute.xlu0 %1483
      %v1485 = vrot.slane %v1480, 4
      %v1486 = vrot.slane %v1482, 4
      %v1487 = vrot.slane %v1484, 4
      %v1488 = vsel %vm576, %v1485, %v1486
      %vm1489 = vcmask 728064
      %v1490 = vsel %vm1489, %v1480, %v1488
      %v1491 = vsel %vm576, %v1486, %v1487
      %v1492 = vsel %vm1489, %v1482, %v1491
      %1495 = vst [vmem:[#allocation5 + $0x150] sm:$0xff] %v1490
      %1496 = vst [vmem:[#allocation5 + $0x158] sm:$0xff] %v1492
      %v1497 = vld [vmem:[#allocation2 + $0x4] sm:$0xff]
      %v1498 = vld [vmem:[#allocation2 + $0xc] sm:$0xff]
      %v1499 = vld [vmem:[#allocation2 + $0x14] sm:$0xf]
      %1503 = vrot.lane.b32.xlu0 %v1497, 88
      %v1504 = vpop.permute.xlu0 %1503
      %1505 = vrot.lane.b32.xlu0 %v1498, 88
      %v1506 = vpop.permute.xlu0 %1505
      %1507 = vrot.lane.b32.xlu0 %v1499, 88
      %v1508 = vpop.permute.xlu0 %1507
      %v1509 = vrot.slane %v1504, 4
      %v1510 = vrot.slane %v1506, 4
      %v1511 = vrot.slane %v1508, 4
      %v1512 = vsel %vm576, %v1509, %v1510
      %vm1513 = vcmask 719872
      %v1514 = vsel %vm1513, %v1504, %v1512
      %v1515 = vsel %vm576, %v1510, %v1511
      %v1516 = vsel %vm1513, %v1506, %v1515
      %1519 = vst [vmem:[#allocation5 + $0x160] sm:$0xff] %v1514
      %1520 = vst [vmem:[#allocation5 + $0x168] sm:$0xff] %v1516
      %v1521 = vld [vmem:[#allocation2 + $0x4] sm:$0xff]
      %v1522 = vld [vmem:[#allocation2 + $0xc] sm:$0xff]
      %v1523 = vld [vmem:[#allocation2 + $0x14] sm:$0xf]
      %1527 = vrot.lane.b32.xlu0 %v1521, 87
      %v1528 = vpop.permute.xlu0 %1527
      %1529 = vrot.lane.b32.xlu0 %v1522, 87
      %v1530 = vpop.permute.xlu0 %1529
      %1531 = vrot.lane.b32.xlu0 %v1523, 87
      %v1532 = vpop.permute.xlu0 %1531
      %v1533 = vrot.slane %v1528, 4
      %v1534 = vrot.slane %v1530, 4
      %v1535 = vrot.slane %v1532, 4
      %v1536 = vsel %vm576, %v1533, %v1534
      %vm1537 = vcmask 711680
      %v1538 = vsel %vm1537, %v1528, %v1536
      %v1539 = vsel %vm576, %v1534, %v1535
      %v1540 = vsel %vm1537, %v1530, %v1539
      %1543 = vst [vmem:[#allocation5 + $0x170] sm:$0xff] %v1538
      %1544 = vst [vmem:[#allocation5 + $0x178] sm:$0xff] %v1540
      %v1545 = vld [vmem:[#allocation2 + $0x4] sm:$0xff]
      %v1546 = vld [vmem:[#allocation2 + $0xc] sm:$0xff]
      %v1547 = vld [vmem:[#allocation2 + $0x14] sm:$0xf]
      %1551 = vrot.lane.b32.xlu0 %v1545, 86
      %v1552 = vpop.permute.xlu0 %1551
      %1553 = vrot.lane.b32.xlu0 %v1546, 86
      %v1554 = vpop.permute.xlu0 %1553
      %1555 = vrot.lane.b32.xlu0 %v1547, 86
      %v1556 = vpop.permute.xlu0 %1555
      %v1557 = vrot.slane %v1552, 4
      %v1558 = vrot.slane %v1554, 4
      %v1559 = vrot.slane %v1556, 4
      %v1560 = vsel %vm576, %v1557, %v1558
      %vm1561 = vcmask 703488
      %v1562 = vsel %vm1561, %v1552, %v1560
      %v1563 = vsel %vm576, %v1558, %v1559
      %v1564 = vsel %vm1561, %v1554, %v1563
      %1567 = vst [vmem:[#allocation5 + $0x180] sm:$0xff] %v1562
      %1568 = vst [vmem:[#allocation5 + $0x188] sm:$0xff] %v1564
      %v1569 = vld [vmem:[%s4] sm:$0xff]
      %v1570 = vld [vmem:[%s4 + $0x8] sm:$0xff]
      %v1571 = vld [vmem:[#allocation5] sm:$0xff]
      %v1572 = vld [vmem:[#allocation5 + $0x8] sm:$0xff]
      %v1573 = vld [vmem:[#allocation5 + $0x10] sm:$0xff]
      %v1574 = vld [vmem:[#allocation5 + $0x18] sm:$0xff]
      %v1575 = vld [vmem:[#allocation5 + $0x20] sm:$0xff]
      %v1576 = vld [vmem:[#allocation5 + $0x28] sm:$0xff]
      %v1577 = vld [vmem:[#allocation5 + $0x30] sm:$0xff]
      %v1578 = vld [vmem:[#allocation5 + $0x38] sm:$0xff]
      %v1579 = vld [vmem:[#allocation5 + $0x40] sm:$0xff]
      %v1580 = vld [vmem:[#allocation5 + $0x48] sm:$0xff]
      %v1581 = vld [vmem:[#allocation5 + $0x50] sm:$0xff]
      %v1582 = vld [vmem:[#allocation5 + $0x58] sm:$0xff]
      %v1583 = vld [vmem:[#allocation5 + $0x60] sm:$0xff]
      %v1584 = vld [vmem:[#allocation5 + $0x68] sm:$0xff]
      %v1585 = vld [vmem:[#allocation5 + $0x70] sm:$0xff]
      %v1586 = vld [vmem:[#allocation5 + $0x78] sm:$0xff]
      %v1587 = vld [vmem:[#allocation5 + $0x80] sm:$0xff]
      %v1588 = vld [vmem:[#allocation5 + $0x88] sm:$0xff]
      %v1589 = vld [vmem:[#allocation5 + $0x90] sm:$0xff]
      %v1590 = vld [vmem:[#allocation5 + $0x98] sm:$0xff]
      %v1591 = vld [vmem:[#allocation5 + $0xa0] sm:$0xff]
      %v1592 = vld [vmem:[#allocation5 + $0xa8] sm:$0xff]
      %v1593 = vld [vmem:[#allocation5 + $0xb0] sm:$0xff]
      %v1594 = vld [vmem:[#allocation5 + $0xb8] sm:$0xff]
      %v1595 = vld [vmem:[#allocation5 + $0xc0] sm:$0xff]
      %v1596 = vld [vmem:[#allocation5 + $0xc8] sm:$0xff]
      %v1597 = vld [vmem:[#allocation5 + $0xd0] sm:$0xff]
      %v1598 = vld [vmem:[#allocation5 + $0xd8] sm:$0xff]
      %v1599 = vld [vmem:[#allocation5 + $0xe0] sm:$0xff]
      %v1600 = vld [vmem:[#allocation5 + $0xe8] sm:$0xff]
      %v1601 = vld [vmem:[#allocation5 + $0xf0] sm:$0xff]
      %v1602 = vld [vmem:[#allocation5 + $0xf8] sm:$0xff]
      %v1603 = vld [vmem:[#allocation5 + $0x100] sm:$0xff]
      %v1604 = vld [vmem:[#allocation5 + $0x108] sm:$0xff]
      %v1605 = vld [vmem:[#allocation5 + $0x110] sm:$0xff]
      %v1606 = vld [vmem:[#allocation5 + $0x118] sm:$0xff]
      %v1607 = vld [vmem:[#allocation5 + $0x120] sm:$0xff]
      %v1608 = vld [vmem:[#allocation5 + $0x128] sm:$0xff]
      %v1609 = vld [vmem:[#allocation5 + $0x130] sm:$0xff]
      %v1610 = vld [vmem:[#allocation5 + $0x138] sm:$0xff]
      %v1611 = vld [vmem:[#allocation5 + $0x140] sm:$0xff]
      %v1612 = vld [vmem:[#allocation5 + $0x148] sm:$0xff]
      %v1613 = vld [vmem:[#allocation5 + $0x150] sm:$0xff]
      %v1614 = vld [vmem:[#allocation5 + $0x158] sm:$0xff]
      %v1615 = vld [vmem:[#allocation5 + $0x160] sm:$0xff]
      %v1616 = vld [vmem:[#allocation5 + $0x168] sm:$0xff]
      %v1617 = vld [vmem:[#allocation5 + $0x170] sm:$0xff]
      %v1618 = vld [vmem:[#allocation5 + $0x178] sm:$0xff]
      %v1619 = vld [vmem:[#allocation5 + $0x180] sm:$0xff]
      %v1620 = vld [vmem:[#allocation5 + $0x188] sm:$0xff]
      %v1621 = vld [vmem:[%s8 + $0x8] sm:$0xff]
      %v1622 = vld [vmem:[%s8 + $0x10] sm:$0xff]
      %1624 = vset.pattern.permute.xlu0 0
      %1625 = vperm.xlu0 %1624, %v1621
      %v1626 = vpop.permute.xlu0 %1625
      %1629 = vset.pattern.permute.xlu0 0
      %1630 = vperm.xlu0 %1629, %v1622
      %v1631 = vpop.permute.xlu0 %1630
      %v1635 = vunpack.c.l.b16 %v1569
      %v1636 = vunpack.c.h.b16 %v1569
      %v1637 = vunpack.c.l.b16 %v1570
      %v1638 = vunpack.c.h.b16 %v1570
      %v1639 = vpack.c.b16 %v1637, %v1635
      %v1640 = vpack.c.b16 %v1638, %v1636
      %v1692 = vunpack.c.l.b16 %v1571
      %v1693 = vunpack.c.h.b16 %v1571
      %v1694 = vunpack.c.l.b16 %v1572
      %v1695 = vunpack.c.h.b16 %v1572
      %v1696 = vunpack.c.l.b16 %v1573
      %v1697 = vunpack.c.h.b16 %v1573
      %v1698 = vunpack.c.l.b16 %v1574
      %v1699 = vunpack.c.h.b16 %v1574
      %v1700 = vunpack.c.l.b16 %v1575
      %v1701 = vunpack.c.h.b16 %v1575
      %v1702 = vunpack.c.l.b16 %v1576
      %v1703 = vunpack.c.h.b16 %v1576
      %v1704 = vunpack.c.l.b16 %v1577
      %v1705 = vunpack.c.h.b16 %v1577
      %v1706 = vunpack.c.l.b16 %v1578
      %v1707 = vunpack.c.h.b16 %v1578
      %v1708 = vunpack.c.l.b16 %v1579
      %v1709 = vunpack.c.h.b16 %v1579
      %v1710 = vunpack.c.l.b16 %v1580
      %v1711 = vunpack.c.h.b16 %v1580
      %v1712 = vunpack.c.l.b16 %v1581
      %v1713 = vunpack.c.h.b16 %v1581
      %v1714 = vunpack.c.l.b16 %v1582
      %v1715 = vunpack.c.h.b16 %v1582
      %v1716 = vunpack.c.l.b16 %v1583
      %v1717 = vunpack.c.h.b16 %v1583
      %v1718 = vunpack.c.l.b16 %v1584
      %v1719 = vunpack.c.h.b16 %v1584
      %v1720 = vunpack.c.l.b16 %v1585
      %v1721 = vunpack.c.h.b16 %v1585
      %v1722 = vunpack.c.l.b16 %v1586
      %v1723 = vunpack.c.h.b16 %v1586
      %v1724 = vunpack.c.l.b16 %v1587
      %v1725 = vunpack.c.h.b16 %v1587
      %v1726 = vunpack.c.l.b16 %v1588
      %v1727 = vunpack.c.h.b16 %v1588
      %v1728 = vunpack.c.l.b16 %v1589
      %v1729 = vunpack.c.h.b16 %v1589
      %v1730 = vunpack.c.l.b16 %v1590
      %v1731 = vunpack.c.h.b16 %v1590
      %v1732 = vunpack.c.l.b16 %v1591
      %v1733 = vunpack.c.h.b16 %v1591
      %v1734 = vunpack.c.l.b16 %v1592
      %v1735 = vunpack.c.h.b16 %v1592
      %v1736 = vunpack.c.l.b16 %v1593
      %v1737 = vunpack.c.h.b16 %v1593
      %v1738 = vunpack.c.l.b16 %v1594
      %v1739 = vunpack.c.h.b16 %v1594
      %v1740 = vunpack.c.l.b16 %v1595
      %v1741 = vunpack.c.h.b16 %v1595
      %v1742 = vunpack.c.l.b16 %v1596
      %v1743 = vunpack.c.h.b16 %v1596
      %v1744 = vunpack.c.l.b16 %v1597
      %v1745 = vunpack.c.h.b16 %v1597
      %v1746 = vunpack.c.l.b16 %v1598
      %v1747 = vunpack.c.h.b16 %v1598
      %v1748 = vunpack.c.l.b16 %v1599
      %v1749 = vunpack.c.h.b16 %v1599
      %v1750 = vunpack.c.l.b16 %v1600
      %v1751 = vunpack.c.h.b16 %v1600
      %v1752 = vunpack.c.l.b16 %v1601
      %v1753 = vunpack.c.h.b16 %v1601
      %v1754 = vunpack.c.l.b16 %v1602
      %v1755 = vunpack.c.h.b16 %v1602
      %v1756 = vunpack.c.l.b16 %v1603
      %v1757 = vunpack.c.h.b16 %v1603
      %v1758 = vunpack.c.l.b16 %v1604
      %v1759 = vunpack.c.h.b16 %v1604
      %v1760 = vunpack.c.l.b16 %v1605
      %v1761 = vunpack.c.h.b16 %v1605
      %v1762 = vunpack.c.l.b16 %v1606
      %v1763 = vunpack.c.h.b16 %v1606
      %v1764 = vunpack.c.l.b16 %v1607
      %v1765 = vunpack.c.h.b16 %v1607
      %v1766 = vunpack.c.l.b16 %v1608
      %v1767 = vunpack.c.h.b16 %v1608
      %v1768 = vunpack.c.l.b16 %v1609
      %v1769 = vunpack.c.h.b16 %v1609
      %v1770 = vunpack.c.l.b16 %v1610
      %v1771 = vunpack.c.h.b16 %v1610
      %v1772 = vunpack.c.l.b16 %v1611
      %v1773 = vunpack.c.h.b16 %v1611
      %v1774 = vunpack.c.l.b16 %v1612
      %v1775 = vunpack.c.h.b16 %v1612
      %v1776 = vunpack.c.l.b16 %v1613
      %v1777 = vunpack.c.h.b16 %v1613
      %v1778 = vunpack.c.l.b16 %v1614
      %v1779 = vunpack.c.h.b16 %v1614
      %v1780 = vunpack.c.l.b16 %v1615
      %v1781 = vunpack.c.h.b16 %v1615
      %v1782 = vunpack.c.l.b16 %v1616
      %v1783 = vunpack.c.h.b16 %v1616
      %v1784 = vunpack.c.l.b16 %v1617
      %v1785 = vunpack.c.h.b16 %v1617
      %v1786 = vunpack.c.l.b16 %v1618
      %v1787 = vunpack.c.h.b16 %v1618
      %v1788 = vunpack.c.l.b16 %v1619
      %v1789 = vunpack.c.h.b16 %v1619
      %v1790 = vunpack.c.l.b16 %v1620
      %v1791 = vunpack.c.h.b16 %v1620
      %v1792 = vpack.c.b16 %v1696, %v1692
      %v1793 = vpack.c.b16 %v1697, %v1693
      %v1794 = vpack.c.b16 %v1698, %v1694
      %v1795 = vpack.c.b16 %v1699, %v1695
      %v1796 = vpack.c.b16 %v1704, %v1700
      %v1797 = vpack.c.b16 %v1705, %v1701
      %v1798 = vpack.c.b16 %v1706, %v1702
      %v1799 = vpack.c.b16 %v1707, %v1703
      %v1800 = vpack.c.b16 %v1712, %v1708
      %v1801 = vpack.c.b16 %v1713, %v1709
      %v1802 = vpack.c.b16 %v1714, %v1710
      %v1803 = vpack.c.b16 %v1715, %v1711
      %v1804 = vpack.c.b16 %v1720, %v1716
      %v1805 = vpack.c.b16 %v1721, %v1717
      %v1806 = vpack.c.b16 %v1722, %v1718
      %v1807 = vpack.c.b16 %v1723, %v1719
      %v1808 = vpack.c.b16 %v1728, %v1724
      %v1809 = vpack.c.b16 %v1729, %v1725
      %v1810 = vpack.c.b16 %v1730, %v1726
      %v1811 = vpack.c.b16 %v1731, %v1727
      %v1812 = vpack.c.b16 %v1736, %v1732
      %v1813 = vpack.c.b16 %v1737, %v1733
      %v1814 = vpack.c.b16 %v1738, %v1734
      %v1815 = vpack.c.b16 %v1739, %v1735
      %v1816 = vpack.c.b16 %v1744, %v1740
      %v1817 = vpack.c.b16 %v1745, %v1741
      %v1818 = vpack.c.b16 %v1746, %v1742
      %v1819 = vpack.c.b16 %v1747, %v1743
      %v1820 = vpack.c.b16 %v1752, %v1748
      %v1821 = vpack.c.b16 %v1753, %v1749
      %v1822 = vpack.c.b16 %v1754, %v1750
      %v1823 = vpack.c.b16 %v1755, %v1751
      %v1824 = vpack.c.b16 %v1760, %v1756
      %v1825 = vpack.c.b16 %v1761, %v1757
      %v1826 = vpack.c.b16 %v1762, %v1758
      %v1827 = vpack.c.b16 %v1763, %v1759
      %v1828 = vpack.c.b16 %v1768, %v1764
      %v1829 = vpack.c.b16 %v1769, %v1765
      %v1830 = vpack.c.b16 %v1770, %v1766
      %v1831 = vpack.c.b16 %v1771, %v1767
      %v1832 = vpack.c.b16 %v1776, %v1772
      %v1833 = vpack.c.b16 %v1777, %v1773
      %v1834 = vpack.c.b16 %v1778, %v1774
      %v1835 = vpack.c.b16 %v1779, %v1775
      %v1836 = vpack.c.b16 %v1784, %v1780
      %v1837 = vpack.c.b16 %v1785, %v1781
      %v1838 = vpack.c.b16 %v1786, %v1782
      %v1839 = vpack.c.b16 %v1787, %v1783
      %v1840 = vpack.c.b16 %v1788, %v1788
      %v1841 = vpack.c.b16 %v1789, %v1789
      %v1842 = vpack.c.b16 %v1790, %v1790
      %v1843 = vpack.c.b16 %v1791, %v1791
      %v1893 = vsel %vm873, %v1640, 0
      %v1896 = vsel %vm371, %v1840, 0
      %v1899 = vsel %vm371, %v1841, 0
      %v1902 = vsel %vm371, %v1842, 0
      %v1905 = vsel %vm371, %v1843, 0
      %1907 = vmatprep.subr.bf16.mxu0 %v1793
      %1908 = vmatpush1.bf16.msra.mxu0 %v1792
      %1909 = vmatprep.subr.bf16.mxu0 %v1797
      %1910 = vmatpush1.bf16.msra.mxu0 %v1796
      %1911 = vmatprep.subr.bf16.mxu0 %v1801
      %1912 = vmatpush1.bf16.msra.mxu0 %v1800
      %1913 = vmatprep.subr.bf16.mxu0 %v1805
      %1914 = vmatpush1.bf16.msra.mxu0 %v1804
      %1915 = vmatprep.subr.bf16.mxu0 %v1809
      %1916 = vmatpush1.bf16.msra.mxu0 %v1808
      %1917 = vmatprep.subr.bf16.mxu0 %v1813
      %1918 = vmatpush1.bf16.msra.mxu0 %v1812
      %1919 = vmatprep.subr.bf16.mxu0 %v1817
      %1920 = vmatpush1.bf16.msra.mxu0 %v1816
      %1921 = vmatprep.subr.bf16.mxu0 %v1821
      %1922 = vmatpush1.bf16.msra.mxu0 %v1820
      %1923 = vmatprep.subr.bf16.mxu0 %v1825
      %1924 = vmatpush1.bf16.msra.mxu0 %v1824
      %1925 = vmatprep.subr.bf16.mxu0 %v1829
      %1926 = vmatpush1.bf16.msra.mxu0 %v1828
      %1927 = vmatprep.subr.bf16.mxu0 %v1833
      %1928 = vmatpush1.bf16.msra.mxu0 %v1832
      %1929 = vmatprep.subr.bf16.mxu0 %v1837
      %1930 = vmatpush1.bf16.msra.mxu0 %v1836
      %1931 = vmatprep.subr.bf16.mxu0 %v1899
      %1932 = vmatpush1.bf16.msra.mxu0 %v1896
      %1933 = vmatprep.subr.bf16.mxu0 0
      %1934 = vmatpush1.bf16.msra.mxu0 0
      %1935 = vmatprep.subr.bf16.mxu0 0
      %1936 = vmatpush1.bf16.msra.mxu0 0
      %1937 = vmatprep.subr.bf16.mxu0 0
      %1938 = vmatpush1.bf16.msra.mxu0 0
      %1939 = vmatprep.mubr.bf16.mxu0 %v1893
      %1940 = vmatmul.mubr.bf16.gmra.mrb[0].mxu0 %v1639
      %v1941 = vpop.f32.mrb[0].mxu0
      %v1942 = vadd.f32 %v1626, %v1941
      %v1943 = vpop.f32.mrb[0].mxu0
      %v1944 = vadd.f32 %v1626, %v1943
      %v1945 = vpop.f32.mrb[0].mxu0
      %v1946 = vadd.f32 %v1631, %v1945
      %v1947 = vpop.f32.mrb[0].mxu0
      %v1948 = vadd.f32 %v1631, %v1947
      %1949 = vdwg.mxu0
      %1950 = vmatprep.subr.bf16.mxu0 %v1795
      %1951 = vmatpush1.bf16.msra.mxu0 %v1794
      %1952 = vmatprep.subr.bf16.mxu0 %v1799
      %1953 = vmatpush1.bf16.msra.mxu0 %v1798
      %1954 = vmatprep.subr.bf16.mxu0 %v1803
      %1955 = vmatpush1.bf16.msra.mxu0 %v1802
      %1956 = vmatprep.subr.bf16.mxu0 %v1807
      %1957 = vmatpush1.bf16.msra.mxu0 %v1806
      %1958 = vmatprep.subr.bf16.mxu0 %v1811
      %1959 = vmatpush1.bf16.msra.mxu0 %v1810
      %1960 = vmatprep.subr.bf16.mxu0 %v1815
      %1961 = vmatpush1.bf16.msra.mxu0 %v1814
      %1962 = vmatprep.subr.bf16.mxu0 %v1819
      %1963 = vmatpush1.bf16.msra.mxu0 %v1818
      %1964 = vmatprep.subr.bf16.mxu0 %v1823
      %1965 = vmatpush1.bf16.msra.mxu0 %v1822
      %1966 = vmatprep.subr.bf16.mxu0 %v1827
      %1967 = vmatpush1.bf16.msra.mxu0 %v1826
      %1968 = vmatprep.subr.bf16.mxu0 %v1831
      %1969 = vmatpush1.bf16.msra.mxu0 %v1830
      %1970 = vmatprep.subr.bf16.mxu0 %v1835
      %1971 = vmatpush1.bf16.msra.mxu0 %v1834
      %1972 = vmatprep.subr.bf16.mxu0 %v1839
      %1973 = vmatpush1.bf16.msra.mxu0 %v1838
      %1974 = vmatprep.subr.bf16.mxu0 %v1905
      %1975 = vmatpush1.bf16.msra.mxu0 %v1902
      %1976 = vmatprep.subr.bf16.mxu0 0
      %1977 = vmatpush1.bf16.msra.mxu0 0
      %1978 = vmatprep.subr.bf16.mxu0 0
      %1979 = vmatpush1.bf16.msra.mxu0 0
      %1980 = vmatprep.subr.bf16.mxu0 0
      %1981 = vmatpush1.bf16.msra.mxu0 0
      %1982 = vmatprep.mubr.bf16.mxu0 %v1893
      %1983 = vmatmul.mubr.bf16.gmra.mrb[0].mxu0 %v1639
      %v1984 = vpop.f32.mrb[0].mxu0
      %v1985 = vadd.f32 %v1626, %v1984
      %v1986 = vpop.f32.mrb[0].mxu0
      %v1987 = vadd.f32 %v1626, %v1986
      %v1988 = vpop.f32.mrb[0].mxu0
      %v1989 = vadd.f32 %v1631, %v1988
      %v1990 = vpop.f32.mrb[0].mxu0
      %v1991 = vadd.f32 %v1631, %v1990
      %1992 = vdwg.mxu0
      %v1993 = vmax.f32 %v1942, 0.0
      %v1994 = vmax.f32 %v1944, 0.0
      %v1995 = vmax.f32 %v1985, 0.0
      %v1996 = vmax.f32 %v1987, 0.0
      %v1997 = vmax.f32 %v1946, 0.0
      %v1998 = vmax.f32 %v1948, 0.0
      %v1999 = vmax.f32 %v1989, 0.0
      %v2000 = vmax.f32 %v1991, 0.0
      %2001 = vst [vmem:[%s332 + $0x20] sm:$0xff] %v1993
      %2002 = vst [vmem:[%s332 + $0x28] sm:$0xff] %v1994
      %2003 = vst [vmem:[%s332 + $0x30] sm:$0xff] %v1995
      %2004 = vst [vmem:[%s332 + $0x38] sm:$0xff] %v1996
      %2005 = vst [vmem:[%s332 + $0x40] sm:$0xff] %v1997
      %2006 = vst [vmem:[%s332 + $0x48] sm:$0xff] %v1998
      %2007 = vst [vmem:[%s332 + $0x50] sm:$0xff] %v1999
      %2008 = vst [vmem:[%s332 + $0x58] sm:$0xff] %v2000
      %v2009 = vpack.c.bf16 %v557, %v557
      %v2010 = vpack.c.bf16 %v558, %v558
      %v2011 = vpack.c.bf16 %v559, %v559
      %v2012 = vpack.c.bf16 %v560, %v560
      %v2017 = vunpack.c.l.b16 %v2009
      %v2018 = vunpack.c.l.b16 %v2010
      %v2019 = vunpack.c.l.b16 %v2011
      %v2020 = vunpack.c.l.b16 %v2012
      %v2021 = vpack.c.b16 %v2018, %v2017
      %v2022 = vpack.c.b16 %v2020, %v2019
      %2025 = vst [vmem:[#allocation3 + $0x4] sm:$0xff] %v2021
      %2026 = vst [vmem:[#allocation3 + $0xc] sm:$0xff] %v2022
      %v2027 = vld [vmem:[#allocation3] sm:$0xff]
      %v2028 = vld [vmem:[#allocation3 + $0x8] sm:$0xff]
      %v2029 = vld [vmem:[#allocation3 + $0x10] sm:$0xf]
      %2033 = vrot.lane.b32.xlu0 %v2027, 21
      %v2034 = vpop.permute.xlu0 %2033
      %2035 = vrot.lane.b32.xlu0 %v2028, 21
      %v2036 = vpop.permute.xlu0 %2035
      %2037 = vrot.lane.b32.xlu0 %v2029, 21
      %v2038 = vpop.permute.xlu0 %2037
      %v2039 = vrot.slane %v2034, 4
      %v2040 = vrot.slane %v2036, 4
      %v2041 = vrot.slane %v2038, 4
      %v2042 = vsel %vm576, %v2039, %v2040
      %v2043 = vsel %vm578, %v2034, %v2042
      %v2044 = vsel %vm576, %v2040, %v2041
      %v2045 = vsel %vm578, %v2036, %v2044
      %2048 = vst [vmem:[#allocation5] sm:$0xff] %v2043
      %2049 = vst [vmem:[#allocation5 + $0x8] sm:$0xff] %v2045
      %v2050 = vld [vmem:[#allocation3] sm:$0xff]
      %v2051 = vld [vmem:[#allocation3 + $0x8] sm:$0xff]
      %v2052 = vld [vmem:[#allocation3 + $0x10] sm:$0xf]
      %2056 = vrot.lane.b32.xlu0 %v2050, 20
      %v2057 = vpop.permute.xlu0 %2056
      %2058 = vrot.lane.b32.xlu0 %v2051, 20
      %v2059 = vpop.permute.xlu0 %2058
      %2060 = vrot.lane.b32.xlu0 %v2052, 20
      %v2061 = vpop.permute.xlu0 %2060
      %v2062 = vrot.slane %v2057, 4
      %v2063 = vrot.slane %v2059, 4
      %v2064 = vrot.slane %v2061, 4
      %v2065 = vsel %vm576, %v2062, %v2063
      %v2066 = vsel %vm602, %v2057, %v2065
      %v2067 = vsel %vm576, %v2063, %v2064
      %v2068 = vsel %vm602, %v2059, %v2067
      %2071 = vst [vmem:[#allocation5 + $0x10] sm:$0xff] %v2066
      %2072 = vst [vmem:[#allocation5 + $0x18] sm:$0xff] %v2068
      %v2073 = vld [vmem:[#allocation3] sm:$0xff]
      %v2074 = vld [vmem:[#allocation3 + $0x8] sm:$0xff]
      %v2075 = vld [vmem:[#allocation3 + $0x10] sm:$0xf]
      %2079 = vrot.lane.b32.xlu0 %v2073, 19
      %v2080 = vpop.permute.xlu0 %2079
      %2081 = vrot.lane.b32.xlu0 %v2074, 19
      %v2082 = vpop.permute.xlu0 %2081
      %2083 = vrot.lane.b32.xlu0 %v2075, 19
      %v2084 = vpop.permute.xlu0 %2083
      %v2085 = vrot.slane %v2080, 4
      %v2086 = vrot.slane %v2082, 4
      %v2087 = vrot.slane %v2084, 4
      %v2088 = vsel %vm576, %v2085, %v2086
      %v2089 = vsel %vm626, %v2080, %v2088
      %v2090 = vsel %vm576, %v2086, %v2087
      %v2091 = vsel %vm626, %v2082, %v2090
      %2094 = vst [vmem:[#allocation5 + $0x20] sm:$0xff] %v2089
      %2095 = vst [vmem:[#allocation5 + $0x28] sm:$0xff] %v2091
      %v2096 = vld [vmem:[#allocation3] sm:$0xff]
      %v2097 = vld [vmem:[#allocation3 + $0x8] sm:$0xff]
      %v2098 = vld [vmem:[#allocation3 + $0x10] sm:$0xf]
      %2102 = vrot.lane.b32.xlu0 %v2096, 1
      %v2103 = vpop.permute.xlu0 %2102
      %2104 = vrot.lane.b32.xlu0 %v2097, 1
      %v2105 = vpop.permute.xlu0 %2104
      %2106 = vrot.lane.b32.xlu0 %v2098, 1
      %v2107 = vpop.permute.xlu0 %2106
      %v2108 = vrot.slane %v2103, 4
      %v2109 = vrot.slane %v2105, 4
      %v2110 = vrot.slane %v2107, 4
      %v2111 = vsel %vm576, %v2108, %v2109
      %v2112 = vsel %vm650, %v2103, %v2111
      %v2113 = vsel %vm576, %v2109, %v2110
      %v2114 = vsel %vm650, %v2105, %v2113
      %2117 = vst [vmem:[#allocation5 + $0x30] sm:$0xff] %v2112
      %2118 = vst [vmem:[#allocation5 + $0x38] sm:$0xff] %v2114
      %v2119 = vld [vmem:[#allocation3 + $0x4] sm:$0xff]
      %v2120 = vld [vmem:[#allocation3 + $0xc] sm:$0xff]
      %2121 = vst [vmem:[#allocation5 + $0x40] sm:$0xff] %v2119
      %2122 = vst [vmem:[#allocation5 + $0x48] sm:$0xff] %v2120
      %v2123 = vld [vmem:[#allocation3 + $0x4] sm:$0xff]
      %v2124 = vld [vmem:[#allocation3 + $0xc] sm:$0xff]
      %v2125 = vld [vmem:[#allocation3 + $0x14] sm:$0xf]
      %2129 = vrot.lane.b32.xlu0 %v2123, 127
      %v2130 = vpop.permute.xlu0 %2129
      %2131 = vrot.lane.b32.xlu0 %v2124, 127
      %v2132 = vpop.permute.xlu0 %2131
      %2133 = vrot.lane.b32.xlu0 %v2125, 127
      %v2134 = vpop.permute.xlu0 %2133
      %v2135 = vrot.slane %v2130, 4
      %v2136 = vrot.slane %v2132, 4
      %v2137 = vrot.slane %v2134, 4
      %v2138 = vsel %vm576, %v2135, %v2136
      %v2139 = vsel %vm678, %v2130, %v2138
      %v2140 = vsel %vm576, %v2136, %v2137
      %v2141 = vsel %vm678, %v2132, %v2140
      %2144 = vst [vmem:[#allocation5 + $0x50] sm:$0xff] %v2139
      %2145 = vst [vmem:[#allocation5 + $0x58] sm:$0xff] %v2141
      %v2146 = vld [vmem:[#allocation3 + $0x4] sm:$0xff]
      %v2147 = vld [vmem:[#allocation3 + $0xc] sm:$0xff]
      %v2148 = vld [vmem:[#allocation3 + $0x14] sm:$0xf]
      %2152 = vrot.lane.b32.xlu0 %v2146, 109
      %v2153 = vpop.permute.xlu0 %2152
      %2154 = vrot.lane.b32.xlu0 %v2147, 109
      %v2155 = vpop.permute.xlu0 %2154
      %2156 = vrot.lane.b32.xlu0 %v2148, 109
      %v2157 = vpop.permute.xlu0 %2156
      %v2158 = vrot.slane %v2153, 4
      %v2159 = vrot.slane %v2155, 4
      %v2160 = vrot.slane %v2157, 4
      %v2161 = vsel %vm576, %v2158, %v2159
      %v2162 = vsel %vm702, %v2153, %v2161
      %v2163 = vsel %vm576, %v2159, %v2160
      %v2164 = vsel %vm702, %v2155, %v2163
      %2167 = vst [vmem:[#allocation5 + $0x60] sm:$0xff] %v2162
      %2168 = vst [vmem:[#allocation5 + $0x68] sm:$0xff] %v2164
      %v2169 = vld [vmem:[#allocation3 + $0x4] sm:$0xff]
      %v2170 = vld [vmem:[#allocation3 + $0xc] sm:$0xff]
      %v2171 = vld [vmem:[#allocation3 + $0x14] sm:$0xf]
      %2175 = vrot.lane.b32.xlu0 %v2169, 108
      %v2176 = vpop.permute.xlu0 %2175
      %2177 = vrot.lane.b32.xlu0 %v2170, 108
      %v2178 = vpop.permute.xlu0 %2177
      %2179 = vrot.lane.b32.xlu0 %v2171, 108
      %v2180 = vpop.permute.xlu0 %2179
      %v2181 = vrot.slane %v2176, 4
      %v2182 = vrot.slane %v2178, 4
      %v2183 = vrot.slane %v2180, 4
      %v2184 = vsel %vm576, %v2181, %v2182
      %v2185 = vsel %vm726, %v2176, %v2184
      %v2186 = vsel %vm576, %v2182, %v2183
      %v2187 = vsel %vm726, %v2178, %v2186
      %2190 = vst [vmem:[#allocation5 + $0x70] sm:$0xff] %v2185
      %2191 = vst [vmem:[#allocation5 + $0x78] sm:$0xff] %v2187
      %v2192 = vld [vmem:[#allocation3 + $0x4] sm:$0xff]
      %v2193 = vld [vmem:[#allocation3 + $0xc] sm:$0xff]
      %v2194 = vld [vmem:[#allocation3 + $0x14] sm:$0xf]
      %2198 = vrot.lane.b32.xlu0 %v2192, 107
      %v2199 = vpop.permute.xlu0 %2198
      %2200 = vrot.lane.b32.xlu0 %v2193, 107
      %v2201 = vpop.permute.xlu0 %2200
      %2202 = vrot.lane.b32.xlu0 %v2194, 107
      %v2203 = vpop.permute.xlu0 %2202
      %v2204 = vrot.slane %v2199, 4
      %v2205 = vrot.slane %v2201, 4
      %v2206 = vrot.slane %v2203, 4
      %v2207 = vsel %vm576, %v2204, %v2205
      %v2208 = vsel %vm750, %v2199, %v2207
      %v2209 = vsel %vm576, %v2205, %v2206
      %v2210 = vsel %vm750, %v2201, %v2209
      %2213 = vst [vmem:[#allocation5 + $0x80] sm:$0xff] %v2208
      %2214 = vst [vmem:[#allocation5 + $0x88] sm:$0xff] %v2210
      %v2215 = vld [vmem:[%s5] sm:$0xf]
      %v2216 = vld [vmem:[%s5 + $0x4] sm:$0xf]
      %v2217 = vld [vmem:[#allocation5] sm:$0xff]
      %v2218 = vld [vmem:[#allocation5 + $0x8] sm:$0xff]
      %v2219 = vld [vmem:[#allocation5 + $0x10] sm:$0xff]
      %v2220 = vld [vmem:[#allocation5 + $0x18] sm:$0xff]
      %v2221 = vld [vmem:[#allocation5 + $0x20] sm:$0xff]
      %v2222 = vld [vmem:[#allocation5 + $0x28] sm:$0xff]
      %v2223 = vld [vmem:[#allocation5 + $0x30] sm:$0xff]
      %v2224 = vld [vmem:[#allocation5 + $0x38] sm:$0xff]
      %v2225 = vld [vmem:[#allocation5 + $0x40] sm:$0xff]
      %v2226 = vld [vmem:[#allocation5 + $0x48] sm:$0xff]
      %v2227 = vld [vmem:[#allocation5 + $0x50] sm:$0xff]
      %v2228 = vld [vmem:[#allocation5 + $0x58] sm:$0xff]
      %v2229 = vld [vmem:[#allocation5 + $0x60] sm:$0xff]
      %v2230 = vld [vmem:[#allocation5 + $0x68] sm:$0xff]
      %v2231 = vld [vmem:[#allocation5 + $0x70] sm:$0xff]
      %v2232 = vld [vmem:[#allocation5 + $0x78] sm:$0xff]
      %v2233 = vld [vmem:[#allocation5 + $0x80] sm:$0xff]
      %v2234 = vld [vmem:[#allocation5 + $0x88] sm:$0xff]
      %v2235 = vld [vmem:[%s7 + $0x10] sm:$0xff]
      %v2236 = vld [vmem:[%s7 + $0x18] sm:$0xff]
      %2238 = vset.pattern.permute.xlu0 0
      %2239 = vperm.xlu0 %2238, %v2235
      %v2240 = vpop.permute.xlu0 %2239
      %2243 = vset.pattern.permute.xlu0 0
      %2244 = vperm.xlu0 %2243, %v2236
      %v2245 = vpop.permute.xlu0 %2244
      %v2249 = vunpack.c.l.b16 %v2215
      %v2250 = vunpack.c.l.b16 %v2216
      %v2251 = vpack.c.b16 %v2250, %v2249
      %v2270 = vunpack.c.l.b16 %v2217
      %v2271 = vunpack.c.h.b16 %v2217
      %v2272 = vunpack.c.l.b16 %v2218
      %v2273 = vunpack.c.h.b16 %v2218
      %v2274 = vunpack.c.l.b16 %v2219
      %v2275 = vunpack.c.h.b16 %v2219
      %v2276 = vunpack.c.l.b16 %v2220
      %v2277 = vunpack.c.h.b16 %v2220
      %v2278 = vunpack.c.l.b16 %v2221
      %v2279 = vunpack.c.h.b16 %v2221
      %v2280 = vunpack.c.l.b16 %v2222
      %v2281 = vunpack.c.h.b16 %v2222
      %v2282 = vunpack.c.l.b16 %v2223
      %v2283 = vunpack.c.h.b16 %v2223
      %v2284 = vunpack.c.l.b16 %v2224
      %v2285 = vunpack.c.h.b16 %v2224
      %v2286 = vunpack.c.l.b16 %v2225
      %v2287 = vunpack.c.h.b16 %v2225
      %v2288 = vunpack.c.l.b16 %v2226
      %v2289 = vunpack.c.h.b16 %v2226
      %v2290 = vunpack.c.l.b16 %v2227
      %v2291 = vunpack.c.h.b16 %v2227
      %v2292 = vunpack.c.l.b16 %v2228
      %v2293 = vunpack.c.h.b16 %v2228
      %v2294 = vunpack.c.l.b16 %v2229
      %v2295 = vunpack.c.h.b16 %v2229
      %v2296 = vunpack.c.l.b16 %v2230
      %v2297 = vunpack.c.h.b16 %v2230
      %v2298 = vunpack.c.l.b16 %v2231
      %v2299 = vunpack.c.h.b16 %v2231
      %v2300 = vunpack.c.l.b16 %v2232
      %v2301 = vunpack.c.h.b16 %v2232
      %v2302 = vunpack.c.l.b16 %v2233
      %v2303 = vunpack.c.h.b16 %v2233
      %v2304 = vunpack.c.l.b16 %v2234
      %v2305 = vunpack.c.h.b16 %v2234
      %v2306 = vpack.c.b16 %v2274, %v2270
      %v2307 = vpack.c.b16 %v2275, %v2271
      %v2308 = vpack.c.b16 %v2276, %v2272
      %v2309 = vpack.c.b16 %v2277, %v2273
      %v2310 = vpack.c.b16 %v2282, %v2278
      %v2311 = vpack.c.b16 %v2283, %v2279
      %v2312 = vpack.c.b16 %v2284, %v2280
      %v2313 = vpack.c.b16 %v2285, %v2281
      %v2314 = vpack.c.b16 %v2290, %v2286
      %v2315 = vpack.c.b16 %v2291, %v2287
      %v2316 = vpack.c.b16 %v2292, %v2288
      %v2317 = vpack.c.b16 %v2293, %v2289
      %v2318 = vpack.c.b16 %v2298, %v2294
      %v2319 = vpack.c.b16 %v2299, %v2295
      %v2320 = vpack.c.b16 %v2300, %v2296
      %v2321 = vpack.c.b16 %v2301, %v2297
      %v2322 = vpack.c.b16 %v2302, %v2302
      %v2323 = vpack.c.b16 %v2303, %v2303
      %v2324 = vpack.c.b16 %v2304, %v2304
      %v2325 = vpack.c.b16 %v2305, %v2305
      %v2343 = vsel %vm873, %v2251, 0
      %v2346 = vsel %vm371, %v2322, 0
      %v2349 = vsel %vm371, %v2323, 0
      %v2352 = vsel %vm371, %v2324, 0
      %v2355 = vsel %vm371, %v2325, 0
      %2357 = vmatprep.subr.bf16.mxu0 %v2307
      %2358 = vmatpush1.bf16.msra.mxu0 %v2306
      %2359 = vmatprep.subr.bf16.mxu0 %v2311
      %2360 = vmatpush1.bf16.msra.mxu0 %v2310
      %2361 = vmatprep.subr.bf16.mxu0 %v2315
      %2362 = vmatpush1.bf16.msra.mxu0 %v2314
      %2363 = vmatprep.subr.bf16.mxu0 %v2319
      %2364 = vmatpush1.bf16.msra.mxu0 %v2318
      %2365 = vmatprep.subr.bf16.mxu0 %v2349
      %2366 = vmatpush1.bf16.msra.mxu0 %v2346
      %2367 = vmatprep.subr.bf16.mxu0 0
      %2368 = vmatpush1.bf16.msra.mxu0 0
      %2369 = vmatprep.subr.bf16.mxu0 0
      %2370 = vmatpush1.bf16.msra.mxu0 0
      %2371 = vmatprep.subr.bf16.mxu0 0
      %2372 = vmatpush1.bf16.msra.mxu0 0
      %2373 = vmatprep.subr.bf16.mxu0 0
      %2374 = vmatpush1.bf16.msra.mxu0 0
      %2375 = vmatprep.subr.bf16.mxu0 0
      %2376 = vmatpush1.bf16.msra.mxu0 0
      %2377 = vmatprep.subr.bf16.mxu0 0
      %2378 = vmatpush1.bf16.msra.mxu0 0
      %2379 = vmatprep.subr.bf16.mxu0 0
      %2380 = vmatpush1.bf16.msra.mxu0 0
      %2381 = vmatprep.subr.bf16.mxu0 0
      %2382 = vmatpush1.bf16.msra.mxu0 0
      %2383 = vmatprep.subr.bf16.mxu0 0
      %2384 = vmatpush1.bf16.msra.mxu0 0
      %2385 = vmatprep.subr.bf16.mxu0 0
      %2386 = vmatpush1.bf16.msra.mxu0 0
      %2387 = vmatprep.subr.bf16.mxu0 0
      %2388 = vmatpush1.bf16.msra.mxu0 0
      %2389 = vmatprep.mubr.bf16.mxu0 0
      %2390 = vmatmul.mubr.bf16.gmra.mrb[0].mxu0 %v2343
      %v2391 = vpop.f32.mrb[0].mxu0
      %v2392 = vadd.f32 %v2240, %v2391
      %v2393 = vpop.f32.mrb[0].mxu0
      %v2394 = vadd.f32 %v2240, %v2393
      %v2395 = vpop.f32.mrb[0].mxu0
      %v2396 = vadd.f32 %v2245, %v2395
      %v2397 = vpop.f32.mrb[0].mxu0
      %v2398 = vadd.f32 %v2245, %v2397
      %2399 = vdwg.mxu0
      %2400 = vmatprep.subr.bf16.mxu0 %v2309
      %2401 = vmatpush1.bf16.msra.mxu0 %v2308
      %2402 = vmatprep.subr.bf16.mxu0 %v2313
      %2403 = vmatpush1.bf16.msra.mxu0 %v2312
      %2404 = vmatprep.subr.bf16.mxu0 %v2317
      %2405 = vmatpush1.bf16.msra.mxu0 %v2316
      %2406 = vmatprep.subr.bf16.mxu0 %v2321
      %2407 = vmatpush1.bf16.msra.mxu0 %v2320
      %2408 = vmatprep.subr.bf16.mxu0 %v2355
      %2409 = vmatpush1.bf16.msra.mxu0 %v2352
      %2410 = vmatprep.subr.bf16.mxu0 0
      %2411 = vmatpush1.bf16.msra.mxu0 0
      %2412 = vmatprep.subr.bf16.mxu0 0
      %2413 = vmatpush1.bf16.msra.mxu0 0
      %2414 = vmatprep.subr.bf16.mxu0 0
      %2415 = vmatpush1.bf16.msra.mxu0 0
      %2416 = vmatprep.subr.bf16.mxu0 0
      %2417 = vmatpush1.bf16.msra.mxu0 0
      %2418 = vmatprep.subr.bf16.mxu0 0
      %2419 = vmatpush1.bf16.msra.mxu0 0
      %2420 = vmatprep.subr.bf16.mxu0 0
      %2421 = vmatpush1.bf16.msra.mxu0 0
      %2422 = vmatprep.subr.bf16.mxu0 0
      %2423 = vmatpush1.bf16.msra.mxu0 0
      %2424 = vmatprep.subr.bf16.mxu0 0
      %2425 = vmatpush1.bf16.msra.mxu0 0
      %2426 = vmatprep.subr.bf16.mxu0 0
      %2427 = vmatpush1.bf16.msra.mxu0 0
      %2428 = vmatprep.subr.bf16.mxu0 0
      %2429 = vmatpush1.bf16.msra.mxu0 0
      %2430 = vmatprep.subr.bf16.mxu0 0
      %2431 = vmatpush1.bf16.msra.mxu0 0
      %2432 = vmatprep.mubr.bf16.mxu0 0
      %2433 = vmatmul.mubr.bf16.gmra.mrb[0].mxu0 %v2343
      %v2434 = vpop.f32.mrb[0].mxu0
      %v2435 = vadd.f32 %v2240, %v2434
      %v2436 = vpop.f32.mrb[0].mxu0
      %v2437 = vadd.f32 %v2240, %v2436
      %v2438 = vpop.f32.mrb[0].mxu0
      %v2439 = vadd.f32 %v2245, %v2438
      %v2440 = vpop.f32.mrb[0].mxu0
      %v2441 = vadd.f32 %v2245, %v2440
      %2442 = vdwg.mxu0
      %v2443 = vmax.f32 %v2392, 0.0
      %v2444 = vmax.f32 %v2394, 0.0
      %v2445 = vmax.f32 %v2435, 0.0
      %v2446 = vmax.f32 %v2437, 0.0
      %v2447 = vmax.f32 %v2396, 0.0
      %v2448 = vmax.f32 %v2398, 0.0
      %v2449 = vmax.f32 %v2439, 0.0
      %v2450 = vmax.f32 %v2441, 0.0
      %v2451 = vmul.f32 %v522, %v2443
      %v2452 = vmul.f32 %v526, %v2444
      %v2453 = vmul.f32 %v530, %v2445
      %v2454 = vmul.f32 %v534, %v2446
      %v2455 = vmul.f32 %v522, %v2447
      %v2456 = vmul.f32 %v526, %v2448
      %v2457 = vmul.f32 %v530, %v2449
      %v2458 = vmul.f32 %v534, %v2450
      %v2459 = vpack.c.bf16 %v2455, %v2451
      %v2460 = vpack.c.bf16 %v2456, %v2452
      %v2461 = vpack.c.bf16 %v2457, %v2453
      %v2462 = vpack.c.bf16 %v2458, %v2454
      %2463 = vst [vmem:[#allocation4 + $0x8] sm:$0xff] %v2459
      %2464 = vst [vmem:[#allocation4 + $0x10] sm:$0xff] %v2460
      %2465 = vst [vmem:[#allocation4 + $0x18] sm:$0xff] %v2461
      %2466 = vst [vmem:[#allocation4 + $0x20] sm:$0xff] %v2462
      %v2467 = vld [vmem:[#allocation4] sm:$0xff]
      %v2468 = vld [vmem:[#allocation4 + $0x8] sm:$0xff]
      %v2469 = vld [vmem:[#allocation4 + $0x10] sm:$0xff]
      %v2470 = vld [vmem:[#allocation4 + $0x18] sm:$0xff]
      %v2471 = vld [vmem:[#allocation4 + $0x20] sm:$0xff]
      %v2477 = vunpack.c.l.b16 %v2467
      %v2478 = vunpack.c.l.b16 %v2468
      %v2479 = vunpack.c.l.b16 %v2469
      %v2480 = vunpack.c.l.b16 %v2470
      %v2481 = vunpack.c.l.b16 %v2471
      %v2482 = vunpack.c.h.b16 %v2467
      %v2483 = vunpack.c.h.b16 %v2468
      %v2484 = vunpack.c.h.b16 %v2469
      %v2485 = vunpack.c.h.b16 %v2470
      %v2486 = vunpack.c.h.b16 %v2471
      %v2487 = vpack.c.b16 %v2478, %v2477
      %v2488 = vpack.c.b16 %v2480, %v2479
      %v2489 = vpack.c.b16 %v2481, %v2481
      %v2490 = vpack.c.b16 %v2483, %v2482
      %v2491 = vpack.c.b16 %v2485, %v2484
      %v2492 = vpack.c.b16 %v2486, %v2486
      %2493 = vrot.lane.b32.xlu0 %v2487, 21
      %v2494 = vpop.permute.xlu0 %2493
      %2495 = vrot.lane.b32.xlu0 %v2488, 21
      %v2496 = vpop.permute.xlu0 %2495
      %2497 = vrot.lane.b32.xlu0 %v2489, 21
      %v2498 = vpop.permute.xlu0 %2497
      %2499 = vrot.lane.b32.xlu0 %v2490, 21
      %v2500 = vpop.permute.xlu0 %2499
      %2501 = vrot.lane.b32.xlu0 %v2491, 21
      %v2502 = vpop.permute.xlu0 %2501
      %2503 = vrot.lane.b32.xlu0 %v2492, 21
      %v2504 = vpop.permute.xlu0 %2503
      %v2505 = vrot.slane %v2494, 4
      %v2506 = vrot.slane %v2496, 4
      %v2507 = vrot.slane %v2498, 4
      %v2508 = vrot.slane %v2500, 4
      %v2509 = vrot.slane %v2502, 4
      %v2510 = vrot.slane %v2504, 4
      %v2511 = vsel %vm576, %v2505, %v2506
      %v2512 = vsel %vm578, %v2494, %v2511
      %v2513 = vsel %vm576, %v2506, %v2507
      %v2514 = vsel %vm578, %v2496, %v2513
      %v2515 = vsel %vm576, %v2508, %v2509
      %v2516 = vsel %vm578, %v2500, %v2515
      %v2517 = vsel %vm576, %v2509, %v2510
      %v2518 = vsel %vm578, %v2502, %v2517
      %2523 = vst [vmem:[#allocation5] sm:$0xff] %v2512
      %2524 = vst [vmem:[#allocation5 + $0x8] sm:$0xff] %v2514
      %2525 = vst [vmem:[#allocation5 + $0x10] sm:$0xff] %v2516
      %2526 = vst [vmem:[#allocation5 + $0x18] sm:$0xff] %v2518
      %v2527 = vld [vmem:[#allocation4] sm:$0xff]
      %v2528 = vld [vmem:[#allocation4 + $0x8] sm:$0xff]
      %v2529 = vld [vmem:[#allocation4 + $0x10] sm:$0xff]
      %v2530 = vld [vmem:[#allocation4 + $0x18] sm:$0xff]
      %v2531 = vld [vmem:[#allocation4 + $0x20] sm:$0xff]
      %v2537 = vunpack.c.l.b16 %v2527
      %v2538 = vunpack.c.l.b16 %v2528
      %v2539 = vunpack.c.l.b16 %v2529
      %v2540 = vunpack.c.l.b16 %v2530
      %v2541 = vunpack.c.l.b16 %v2531
      %v2542 = vunpack.c.h.b16 %v2527
      %v2543 = vunpack.c.h.b16 %v2528
      %v2544 = vunpack.c.h.b16 %v2529
      %v2545 = vunpack.c.h.b16 %v2530
      %v2546 = vunpack.c.h.b16 %v2531
      %v2547 = vpack.c.b16 %v2538, %v2537
      %v2548 = vpack.c.b16 %v2540, %v2539
      %v2549 = vpack.c.b16 %v2541, %v2541
      %v2550 = vpack.c.b16 %v2543, %v2542
      %v2551 = vpack.c.b16 %v2545, %v2544
      %v2552 = vpack.c.b16 %v2546, %v2546
      %2553 = vrot.lane.b32.xlu0 %v2547, 20
      %v2554 = vpop.permute.xlu0 %2553
      %2555 = vrot.lane.b32.xlu0 %v2548, 20
      %v2556 = vpop.permute.xlu0 %2555
      %2557 = vrot.lane.b32.xlu0 %v2549, 20
      %v2558 = vpop.permute.xlu0 %2557
      %2559 = vrot.lane.b32.xlu0 %v2550, 20
      %v2560 = vpop.permute.xlu0 %2559
      %2561 = vrot.lane.b32.xlu0 %v2551, 20
      %v2562 = vpop.permute.xlu0 %2561
      %2563 = vrot.lane.b32.xlu0 %v2552, 20
      %v2564 = vpop.permute.xlu0 %2563
      %v2565 = vrot.slane %v2554, 4
      %v2566 = vrot.slane %v2556, 4
      %v2567 = vrot.slane %v2558, 4
      %v2568 = vrot.slane %v2560, 4
      %v2569 = vrot.slane %v2562, 4
      %v2570 = vrot.slane %v2564, 4
      %v2571 = vsel %vm576, %v2565, %v2566
      %v2572 = vsel %vm602, %v2554, %v2571
      %v2573 = vsel %vm576, %v2566, %v2567
      %v2574 = vsel %vm602, %v2556, %v2573
      %v2575 = vsel %vm576, %v2568, %v2569
      %v2576 = vsel %vm602, %v2560, %v2575
      %v2577 = vsel %vm576, %v2569, %v2570
      %v2578 = vsel %vm602, %v2562, %v2577
      %2583 = vst [vmem:[#allocation5 + $0x20] sm:$0xff] %v2572
      %2584 = vst [vmem:[#allocation5 + $0x28] sm:$0xff] %v2574
      %2585 = vst [vmem:[#allocation5 + $0x30] sm:$0xff] %v2576
      %2586 = vst [vmem:[#allocation5 + $0x38] sm:$0xff] %v2578
      %v2587 = vld [vmem:[#allocation4] sm:$0xff]
      %v2588 = vld [vmem:[#allocation4 + $0x8] sm:$0xff]
      %v2589 = vld [vmem:[#allocation4 + $0x10] sm:$0xff]
      %v2590 = vld [vmem:[#allocation4 + $0x18] sm:$0xff]
      %v2591 = vld [vmem:[#allocation4 + $0x20] sm:$0xff]
      %v2597 = vunpack.c.l.b16 %v2587
      %v2598 = vunpack.c.l.b16 %v2588
      %v2599 = vunpack.c.l.b16 %v2589
      %v2600 = vunpack.c.l.b16 %v2590
      %v2601 = vunpack.c.l.b16 %v2591
      %v2602 = vunpack.c.h.b16 %v2587
      %v2603 = vunpack.c.h.b16 %v2588
      %v2604 = vunpack.c.h.b16 %v2589
      %v2605 = vunpack.c.h.b16 %v2590
      %v2606 = vunpack.c.h.b16 %v2591
      %v2607 = vpack.c.b16 %v2598, %v2597
      %v2608 = vpack.c.b16 %v2600, %v2599
      %v2609 = vpack.c.b16 %v2601, %v2601
      %v2610 = vpack.c.b16 %v2603, %v2602
      %v2611 = vpack.c.b16 %v2605, %v2604
      %v2612 = vpack.c.b16 %v2606, %v2606
      %2613 = vrot.lane.b32.xlu0 %v2607, 19
      %v2614 = vpop.permute.xlu0 %2613
      %2615 = vrot.lane.b32.xlu0 %v2608, 19
      %v2616 = vpop.permute.xlu0 %2615
      %2617 = vrot.lane.b32.xlu0 %v2609, 19
      %v2618 = vpop.permute.xlu0 %2617
      %2619 = vrot.lane.b32.xlu0 %v2610, 19
      %v2620 = vpop.permute.xlu0 %2619
      %2621 = vrot.lane.b32.xlu0 %v2611, 19
      %v2622 = vpop.permute.xlu0 %2621
      %2623 = vrot.lane.b32.xlu0 %v2612, 19
      %v2624 = vpop.permute.xlu0 %2623
      %v2625 = vrot.slane %v2614, 4
      %v2626 = vrot.slane %v2616, 4
      %v2627 = vrot.slane %v2618, 4
      %v2628 = vrot.slane %v2620, 4
      %v2629 = vrot.slane %v2622, 4
      %v2630 = vrot.slane %v2624, 4
      %v2631 = vsel %vm576, %v2625, %v2626
      %v2632 = vsel %vm626, %v2614, %v2631
      %v2633 = vsel %vm576, %v2626, %v2627
      %v2634 = vsel %vm626, %v2616, %v2633
      %v2635 = vsel %vm576, %v2628, %v2629
      %v2636 = vsel %vm626, %v2620, %v2635
      %v2637 = vsel %vm576, %v2629, %v2630
      %v2638 = vsel %vm626, %v2622, %v2637
      %2643 = vst [vmem:[#allocation5 + $0x40] sm:$0xff] %v2632
      %2644 = vst [vmem:[#allocation5 + $0x48] sm:$0xff] %v2634
      %2645 = vst [vmem:[#allocation5 + $0x50] sm:$0xff] %v2636
      %2646 = vst [vmem:[#allocation5 + $0x58] sm:$0xff] %v2638
      %v2647 = vld [vmem:[#allocation4] sm:$0xff]
      %v2648 = vld [vmem:[#allocation4 + $0x8] sm:$0xff]
      %v2649 = vld [vmem:[#allocation4 + $0x10] sm:$0xff]
      %v2650 = vld [vmem:[#allocation4 + $0x18] sm:$0xff]
      %v2651 = vld [vmem:[#allocation4 + $0x20] sm:$0xff]
      %v2657 = vunpack.c.l.b16 %v2647
      %v2658 = vunpack.c.l.b16 %v2648
      %v2659 = vunpack.c.l.b16 %v2649
      %v2660 = vunpack.c.l.b16 %v2650
      %v2661 = vunpack.c.l.b16 %v2651
      %v2662 = vunpack.c.h.b16 %v2647
      %v2663 = vunpack.c.h.b16 %v2648
      %v2664 = vunpack.c.h.b16 %v2649
      %v2665 = vunpack.c.h.b16 %v2650
      %v2666 = vunpack.c.h.b16 %v2651
      %v2667 = vpack.c.b16 %v2658, %v2657
      %v2668 = vpack.c.b16 %v2660, %v2659
      %v2669 = vpack.c.b16 %v2661, %v2661
      %v2670 = vpack.c.b16 %v2663, %v2662
      %v2671 = vpack.c.b16 %v2665, %v2664
      %v2672 = vpack.c.b16 %v2666, %v2666
      %2673 = vrot.lane.b32.xlu0 %v2667, 1
      %v2674 = vpop.permute.xlu0 %2673
      %2675 = vrot.lane.b32.xlu0 %v2668, 1
      %v2676 = vpop.permute.xlu0 %2675
      %2677 = vrot.lane.b32.xlu0 %v2669, 1
      %v2678 = vpop.permute.xlu0 %2677
      %2679 = vrot.lane.b32.xlu0 %v2670, 1
      %v2680 = vpop.permute.xlu0 %2679
      %2681 = vrot.lane.b32.xlu0 %v2671, 1
      %v2682 = vpop.permute.xlu0 %2681
      %2683 = vrot.lane.b32.xlu0 %v2672, 1
      %v2684 = vpop.permute.xlu0 %2683
      %v2685 = vrot.slane %v2674, 4
      %v2686 = vrot.slane %v2676, 4
      %v2687 = vrot.slane %v2678, 4
      %v2688 = vrot.slane %v2680, 4
      %v2689 = vrot.slane %v2682, 4
      %v2690 = vrot.slane %v2684, 4
      %v2691 = vsel %vm576, %v2685, %v2686
      %v2692 = vsel %vm650, %v2674, %v2691
      %v2693 = vsel %vm576, %v2686, %v2687
      %v2694 = vsel %vm650, %v2676, %v2693
      %v2695 = vsel %vm576, %v2688, %v2689
      %v2696 = vsel %vm650, %v2680, %v2695
      %v2697 = vsel %vm576, %v2689, %v2690
      %v2698 = vsel %vm650, %v2682, %v2697
      %2703 = vst [vmem:[#allocation5 + $0x60] sm:$0xff] %v2692
      %2704 = vst [vmem:[#allocation5 + $0x68] sm:$0xff] %v2694
      %2705 = vst [vmem:[#allocation5 + $0x70] sm:$0xff] %v2696
      %2706 = vst [vmem:[#allocation5 + $0x78] sm:$0xff] %v2698
      %v2707 = vld [vmem:[#allocation4 + $0x8] sm:$0xff]
      %v2708 = vld [vmem:[#allocation4 + $0x10] sm:$0xff]
      %v2709 = vld [vmem:[#allocation4 + $0x18] sm:$0xff]
      %v2710 = vld [vmem:[#allocation4 + $0x20] sm:$0xff]
      %v2715 = vunpack.c.l.b16 %v2707
      %v2716 = vunpack.c.l.b16 %v2708
      %v2717 = vunpack.c.l.b16 %v2709
      %v2718 = vunpack.c.l.b16 %v2710
      %v2719 = vunpack.c.h.b16 %v2707
      %v2720 = vunpack.c.h.b16 %v2708
      %v2721 = vunpack.c.h.b16 %v2709
      %v2722 = vunpack.c.h.b16 %v2710
      %v2723 = vpack.c.b16 %v2716, %v2715
      %v2724 = vpack.c.b16 %v2718, %v2717
      %v2725 = vpack.c.b16 %v2720, %v2719
      %v2726 = vpack.c.b16 %v2722, %v2721
      %2731 = vst [vmem:[#allocation5 + $0x80] sm:$0xff] %v2723
      %2732 = vst [vmem:[#allocation5 + $0x88] sm:$0xff] %v2724
      %2733 = vst [vmem:[#allocation5 + $0x90] sm:$0xff] %v2725
      %2734 = vst [vmem:[#allocation5 + $0x98] sm:$0xff] %v2726
      %v2735 = vld [vmem:[#allocation4 + $0x8] sm:$0xff]
      %v2736 = vld [vmem:[#allocation4 + $0x10] sm:$0xff]
      %v2737 = vld [vmem:[#allocation4 + $0x18] sm:$0xff]
      %v2738 = vld [vmem:[#allocation4 + $0x20] sm:$0xff]
      %v2739 = vld [vmem:[#allocation4 + $0x28] sm:$0xff]
      %v2745 = vunpack.c.l.b16 %v2735
      %v2746 = vunpack.c.l.b16 %v2736
      %v2747 = vunpack.c.l.b16 %v2737
      %v2748 = vunpack.c.l.b16 %v2738
      %v2749 = vunpack.c.l.b16 %v2739
      %v2750 = vunpack.c.h.b16 %v2735
      %v2751 = vunpack.c.h.b16 %v2736
      %v2752 = vunpack.c.h.b16 %v2737
      %v2753 = vunpack.c.h.b16 %v2738
      %v2754 = vunpack.c.h.b16 %v2739
      %v2755 = vpack.c.b16 %v2746, %v2745
      %v2756 = vpack.c.b16 %v2748, %v2747
      %v2757 = vpack.c.b16 %v2749, %v2749
      %v2758 = vpack.c.b16 %v2751, %v2750
      %v2759 = vpack.c.b16 %v2753, %v2752
      %v2760 = vpack.c.b16 %v2754, %v2754
      %2761 = vrot.lane.b32.xlu0 %v2755, 127
      %v2762 = vpop.permute.xlu0 %2761
      %2763 = vrot.lane.b32.xlu0 %v2756, 127
      %v2764 = vpop.permute.xlu0 %2763
      %2765 = vrot.lane.b32.xlu0 %v2757, 127
      %v2766 = vpop.permute.xlu0 %2765
      %2767 = vrot.lane.b32.xlu0 %v2758, 127
      %v2768 = vpop.permute.xlu0 %2767
      %2769 = vrot.lane.b32.xlu0 %v2759, 127
      %v2770 = vpop.permute.xlu0 %2769
      %2771 = vrot.lane.b32.xlu0 %v2760, 127
      %v2772 = vpop.permute.xlu0 %2771
      %v2773 = vrot.slane %v2762, 4
      %v2774 = vrot.slane %v2764, 4
      %v2775 = vrot.slane %v2766, 4
      %v2776 = vrot.slane %v2768, 4
      %v2777 = vrot.slane %v2770, 4
      %v2778 = vrot.slane %v2772, 4
      %v2779 = vsel %vm576, %v2773, %v2774
      %v2780 = vsel %vm678, %v2762, %v2779
      %v2781 = vsel %vm576, %v2774, %v2775
      %v2782 = vsel %vm678, %v2764, %v2781
      %v2783 = vsel %vm576, %v2776, %v2777
      %v2784 = vsel %vm678, %v2768, %v2783
      %v2785 = vsel %vm576, %v2777, %v2778
      %v2786 = vsel %vm678, %v2770, %v2785
      %2791 = vst [vmem:[#allocation5 + $0xa0] sm:$0xff] %v2780
      %2792 = vst [vmem:[#allocation5 + $0xa8] sm:$0xff] %v2782
      %2793 = vst [vmem:[#allocation5 + $0xb0] sm:$0xff] %v2784
      %2794 = vst [vmem:[#allocation5 + $0xb8] sm:$0xff] %v2786
      %v2795 = vld [vmem:[#allocation4 + $0x8] sm:$0xff]
      %v2796 = vld [vmem:[#allocation4 + $0x10] sm:$0xff]
      %v2797 = vld [vmem:[#allocation4 + $0x18] sm:$0xff]
      %v2798 = vld [vmem:[#allocation4 + $0x20] sm:$0xff]
      %v2799 = vld [vmem:[#allocation4 + $0x28] sm:$0xff]
      %v2805 = vunpack.c.l.b16 %v2795
      %v2806 = vunpack.c.l.b16 %v2796
      %v2807 = vunpack.c.l.b16 %v2797
      %v2808 = vunpack.c.l.b16 %v2798
      %v2809 = vunpack.c.l.b16 %v2799
      %v2810 = vunpack.c.h.b16 %v2795
      %v2811 = vunpack.c.h.b16 %v2796
      %v2812 = vunpack.c.h.b16 %v2797
      %v2813 = vunpack.c.h.b16 %v2798
      %v2814 = vunpack.c.h.b16 %v2799
      %v2815 = vpack.c.b16 %v2806, %v2805
      %v2816 = vpack.c.b16 %v2808, %v2807
      %v2817 = vpack.c.b16 %v2809, %v2809
      %v2818 = vpack.c.b16 %v2811, %v2810
      %v2819 = vpack.c.b16 %v2813, %v2812
      %v2820 = vpack.c.b16 %v2814, %v2814
      %2821 = vrot.lane.b32.xlu0 %v2815, 109
      %v2822 = vpop.permute.xlu0 %2821
      %2823 = vrot.lane.b32.xlu0 %v2816, 109
      %v2824 = vpop.permute.xlu0 %2823
      %2825 = vrot.lane.b32.xlu0 %v2817, 109
      %v2826 = vpop.permute.xlu0 %2825
      %2827 = vrot.lane.b32.xlu0 %v2818, 109
      %v2828 = vpop.permute.xlu0 %2827
      %2829 = vrot.lane.b32.xlu0 %v2819, 109
      %v2830 = vpop.permute.xlu0 %2829
      %2831 = vrot.lane.b32.xlu0 %v2820, 109
      %v2832 = vpop.permute.xlu0 %2831
      %v2833 = vrot.slane %v2822, 4
      %v2834 = vrot.slane %v2824, 4
      %v2835 = vrot.slane %v2826, 4
      %v2836 = vrot.slane %v2828, 4
      %v2837 = vrot.slane %v2830, 4
      %v2838 = vrot.slane %v2832, 4
      %v2839 = vsel %vm576, %v2833, %v2834
      %v2840 = vsel %vm702, %v2822, %v2839
      %v2841 = vsel %vm576, %v2834, %v2835
      %v2842 = vsel %vm702, %v2824, %v2841
      %v2843 = vsel %vm576, %v2836, %v2837
      %v2844 = vsel %vm702, %v2828, %v2843
      %v2845 = vsel %vm576, %v2837, %v2838
      %v2846 = vsel %vm702, %v2830, %v2845
      %2851 = vst [vmem:[#allocation5 + $0xc0] sm:$0xff] %v2840
      %2852 = vst [vmem:[#allocation5 + $0xc8] sm:$0xff] %v2842
      %2853 = vst [vmem:[#allocation5 + $0xd0] sm:$0xff] %v2844
      %2854 = vst [vmem:[#allocation5 + $0xd8] sm:$0xff] %v2846
      %v2855 = vld [vmem:[#allocation4 + $0x8] sm:$0xff]
      %v2856 = vld [vmem:[#allocation4 + $0x10] sm:$0xff]
      %v2857 = vld [vmem:[#allocation4 + $0x18] sm:$0xff]
      %v2858 = vld [vmem:[#allocation4 + $0x20] sm:$0xff]
      %v2859 = vld [vmem:[#allocation4 + $0x28] sm:$0xff]
      %v2865 = vunpack.c.l.b16 %v2855
      %v2866 = vunpack.c.l.b16 %v2856
      %v2867 = vunpack.c.l.b16 %v2857
      %v2868 = vunpack.c.l.b16 %v2858
      %v2869 = vunpack.c.l.b16 %v2859
      %v2870 = vunpack.c.h.b16 %v2855
      %v2871 = vunpack.c.h.b16 %v2856
      %v2872 = vunpack.c.h.b16 %v2857
      %v2873 = vunpack.c.h.b16 %v2858
      %v2874 = vunpack.c.h.b16 %v2859
      %v2875 = vpack.c.b16 %v2866, %v2865
      %v2876 = vpack.c.b16 %v2868, %v2867
      %v2877 = vpack.c.b16 %v2869, %v2869
      %v2878 = vpack.c.b16 %v2871, %v2870
      %v2879 = vpack.c.b16 %v2873, %v2872
      %v2880 = vpack.c.b16 %v2874, %v2874
      %2881 = vrot.lane.b32.xlu0 %v2875, 108
      %v2882 = vpop.permute.xlu0 %2881
      %2883 = vrot.lane.b32.xlu0 %v2876, 108
      %v2884 = vpop.permute.xlu0 %2883
      %2885 = vrot.lane.b32.xlu0 %v2877, 108
      %v2886 = vpop.permute.xlu0 %2885
      %2887 = vrot.lane.b32.xlu0 %v2878, 108
      %v2888 = vpop.permute.xlu0 %2887
      %2889 = vrot.lane.b32.xlu0 %v2879, 108
      %v2890 = vpop.permute.xlu0 %2889
      %2891 = vrot.lane.b32.xlu0 %v2880, 108
      %v2892 = vpop.permute.xlu0 %2891
      %v2893 = vrot.slane %v2882, 4
      %v2894 = vrot.slane %v2884, 4
      %v2895 = vrot.slane %v2886, 4
      %v2896 = vrot.slane %v2888, 4
      %v2897 = vrot.slane %v2890, 4
      %v2898 = vrot.slane %v2892, 4
      %v2899 = vsel %vm576, %v2893, %v2894
      %v2900 = vsel %vm726, %v2882, %v2899
      %v2901 = vsel %vm576, %v2894, %v2895
      %v2902 = vsel %vm726, %v2884, %v2901
      %v2903 = vsel %vm576, %v2896, %v2897
      %v2904 = vsel %vm726, %v2888, %v2903
      %v2905 = vsel %vm576, %v2897, %v2898
      %v2906 = vsel %vm726, %v2890, %v2905
      %2911 = vst [vmem:[#allocation5 + $0xe0] sm:$0xff] %v2900
      %2912 = vst [vmem:[#allocation5 + $0xe8] sm:$0xff] %v2902
      %2913 = vst [vmem:[#allocation5 + $0xf0] sm:$0xff] %v2904
      %2914 = vst [vmem:[#allocation5 + $0xf8] sm:$0xff] %v2906
      %v2915 = vld [vmem:[#allocation4 + $0x8] sm:$0xff]
      %v2916 = vld [vmem:[#allocation4 + $0x10] sm:$0xff]
      %v2917 = vld [vmem:[#allocation4 + $0x18] sm:$0xff]
      %v2918 = vld [vmem:[#allocation4 + $0x20] sm:$0xff]
      %v2919 = vld [vmem:[#allocation4 + $0x28] sm:$0xff]
      %v2925 = vunpack.c.l.b16 %v2915
      %v2926 = vunpack.c.l.b16 %v2916
      %v2927 = vunpack.c.l.b16 %v2917
      %v2928 = vunpack.c.l.b16 %v2918
      %v2929 = vunpack.c.l.b16 %v2919
      %v2930 = vunpack.c.h.b16 %v2915
      %v2931 = vunpack.c.h.b16 %v2916
      %v2932 = vunpack.c.h.b16 %v2917
      %v2933 = vunpack.c.h.b16 %v2918
      %v2934 = vunpack.c.h.b16 %v2919
      %v2935 = vpack.c.b16 %v2926, %v2925
      %v2936 = vpack.c.b16 %v2928, %v2927
      %v2937 = vpack.c.b16 %v2929, %v2929
      %v2938 = vpack.c.b16 %v2931, %v2930
      %v2939 = vpack.c.b16 %v2933, %v2932
      %v2940 = vpack.c.b16 %v2934, %v2934
      %2941 = vrot.lane.b32.xlu0 %v2935, 107
      %v2942 = vpop.permute.xlu0 %2941
      %2943 = vrot.lane.b32.xlu0 %v2936, 107
      %v2944 = vpop.permute.xlu0 %2943
      %2945 = vrot.lane.b32.xlu0 %v2937, 107
      %v2946 = vpop.permute.xlu0 %2945
      %2947 = vrot.lane.b32.xlu0 %v2938, 107
      %v2948 = vpop.permute.xlu0 %2947
      %2949 = vrot.lane.b32.xlu0 %v2939, 107
      %v2950 = vpop.permute.xlu0 %2949
      %2951 = vrot.lane.b32.xlu0 %v2940, 107
      %v2952 = vpop.permute.xlu0 %2951
      %v2953 = vrot.slane %v2942, 4
      %v2954 = vrot.slane %v2944, 4
      %v2955 = vrot.slane %v2946, 4
      %v2956 = vrot.slane %v2948, 4
      %v2957 = vrot.slane %v2950, 4
      %v2958 = vrot.slane %v2952, 4
      %v2959 = vsel %vm576, %v2953, %v2954
      %v2960 = vsel %vm750, %v2942, %v2959
      %v2961 = vsel %vm576, %v2954, %v2955
      %v2962 = vsel %vm750, %v2944, %v2961
      %v2963 = vsel %vm576, %v2956, %v2957
      %v2964 = vsel %vm750, %v2948, %v2963
      %v2965 = vsel %vm576, %v2957, %v2958
      %v2966 = vsel %vm750, %v2950, %v2965
      %2971 = vst [vmem:[#allocation5 + $0x100] sm:$0xff] %v2960
      %2972 = vst [vmem:[#allocation5 + $0x108] sm:$0xff] %v2962
      %2973 = vst [vmem:[#allocation5 + $0x110] sm:$0xff] %v2964
      %2974 = vst [vmem:[#allocation5 + $0x118] sm:$0xff] %v2966
      %v2975 = vld [vmem:[%s6] sm:$0xff]
      %v2976 = vld [vmem:[%s6 + $0x8] sm:$0xff]
      %v2977 = vld [vmem:[%s6 + $0x10] sm:$0xff]
      %v2978 = vld [vmem:[%s6 + $0x18] sm:$0xff]
      %v2979 = vld [vmem:[#allocation5] sm:$0xff]
      %v2980 = vld [vmem:[#allocation5 + $0x8] sm:$0xff]
      %v2981 = vld [vmem:[#allocation5 + $0x10] sm:$0xff]
      %v2982 = vld [vmem:[#allocation5 + $0x18] sm:$0xff]
      %v2983 = vld [vmem:[#allocation5 + $0x20] sm:$0xff]
      %v2984 = vld [vmem:[#allocation5 + $0x28] sm:$0xff]
      %v2985 = vld [vmem:[#allocation5 + $0x30] sm:$0xff]
      %v2986 = vld [vmem:[#allocation5 + $0x38] sm:$0xff]
      %v2987 = vld [vmem:[#allocation5 + $0x40] sm:$0xff]
      %v2988 = vld [vmem:[#allocation5 + $0x48] sm:$0xff]
      %v2989 = vld [vmem:[#allocation5 + $0x50] sm:$0xff]
      %v2990 = vld [vmem:[#allocation5 + $0x58] sm:$0xff]
      %v2991 = vld [vmem:[#allocation5 + $0x60] sm:$0xff]
      %v2992 = vld [vmem:[#allocation5 + $0x68] sm:$0xff]
      %v2993 = vld [vmem:[#allocation5 + $0x70] sm:$0xff]
      %v2994 = vld [vmem:[#allocation5 + $0x78] sm:$0xff]
      %v2995 = vld [vmem:[#allocation5 + $0x80] sm:$0xff]
      %v2996 = vld [vmem:[#allocation5 + $0x88] sm:$0xff]
      %v2997 = vld [vmem:[#allocation5 + $0x90] sm:$0xff]
      %v2998 = vld [vmem:[#allocation5 + $0x98] sm:$0xff]
      %v2999 = vld [vmem:[#allocation5 + $0xa0] sm:$0xff]
      %v3000 = vld [vmem:[#allocation5 + $0xa8] sm:$0xff]
      %v3001 = vld [vmem:[#allocation5 + $0xb0] sm:$0xff]
      %v3002 = vld [vmem:[#allocation5 + $0xb8] sm:$0xff]
      %v3003 = vld [vmem:[#allocation5 + $0xc0] sm:$0xff]
      %v3004 = vld [vmem:[#allocation5 + $0xc8] sm:$0xff]
      %v3005 = vld [vmem:[#allocation5 + $0xd0] sm:$0xff]
      %v3006 = vld [vmem:[#allocation5 + $0xd8] sm:$0xff]
      %v3007 = vld [vmem:[#allocation5 + $0xe0] sm:$0xff]
      %v3008 = vld [vmem:[#allocation5 + $0xe8] sm:$0xff]
      %v3009 = vld [vmem:[#allocation5 + $0xf0] sm:$0xff]
      %v3010 = vld [vmem:[#allocation5 + $0xf8] sm:$0xff]
      %v3011 = vld [vmem:[#allocation5 + $0x100] sm:$0xff]
      %v3012 = vld [vmem:[#allocation5 + $0x108] sm:$0xff]
      %v3013 = vld [vmem:[#allocation5 + $0x110] sm:$0xff]
      %v3014 = vld [vmem:[#allocation5 + $0x118] sm:$0xff]
      %v3015 = vld [vmem:[%s8 + $0x18] sm:$0xff]
      %v3016 = vld [vmem:[%s8 + $0x20] sm:$0xff]
      %v3017 = vld [vmem:[%s8 + $0x28] sm:$0xff]
      %v3018 = vld [vmem:[%s8 + $0x30] sm:$0xff]
      %3020 = vset.pattern.permute.xlu0 0
      %3021 = vperm.xlu0 %3020, %v3015
      %v3022 = vpop.permute.xlu0 %3021
      %3025 = vset.pattern.permute.xlu0 0
      %3026 = vperm.xlu0 %3025, %v3016
      %v3027 = vpop.permute.xlu0 %3026
      %3030 = vset.pattern.permute.xlu0 0
      %3031 = vperm.xlu0 %3030, %v3017
      %v3032 = vpop.permute.xlu0 %3031
      %3035 = vset.pattern.permute.xlu0 0
      %3036 = vperm.xlu0 %3035, %v3018
      %v3037 = vpop.permute.xlu0 %3036
      %v3043 = vunpack.c.l.b16 %v2975
      %v3044 = vunpack.c.h.b16 %v2975
      %v3045 = vunpack.c.l.b16 %v2976
      %v3046 = vunpack.c.h.b16 %v2976
      %v3047 = vunpack.c.l.b16 %v2977
      %v3048 = vunpack.c.h.b16 %v2977
      %v3049 = vunpack.c.l.b16 %v2978
      %v3050 = vunpack.c.h.b16 %v2978
      %v3051 = vpack.c.b16 %v3045, %v3043
      %v3052 = vpack.c.b16 %v3046, %v3044
      %v3053 = vpack.c.b16 %v3049, %v3047
      %v3054 = vpack.c.b16 %v3050, %v3048
      %v3093 = vunpack.c.l.b16 %v2979
      %v3094 = vunpack.c.h.b16 %v2979
      %v3095 = vunpack.c.l.b16 %v2980
      %v3096 = vunpack.c.h.b16 %v2980
      %v3097 = vunpack.c.l.b16 %v2981
      %v3098 = vunpack.c.h.b16 %v2981
      %v3099 = vunpack.c.l.b16 %v2982
      %v3100 = vunpack.c.h.b16 %v2982
      %v3101 = vunpack.c.l.b16 %v2983
      %v3102 = vunpack.c.h.b16 %v2983
      %v3103 = vunpack.c.l.b16 %v2984
      %v3104 = vunpack.c.h.b16 %v2984
      %v3105 = vunpack.c.l.b16 %v2985
      %v3106 = vunpack.c.h.b16 %v2985
      %v3107 = vunpack.c.l.b16 %v2986
      %v3108 = vunpack.c.h.b16 %v2986
      %v3109 = vunpack.c.l.b16 %v2987
      %v3110 = vunpack.c.h.b16 %v2987
      %v3111 = vunpack.c.l.b16 %v2988
      %v3112 = vunpack.c.h.b16 %v2988
      %v3113 = vunpack.c.l.b16 %v2989
      %v3114 = vunpack.c.h.b16 %v2989
      %v3115 = vunpack.c.l.b16 %v2990
      %v3116 = vunpack.c.h.b16 %v2990
      %v3117 = vunpack.c.l.b16 %v2991
      %v3118 = vunpack.c.h.b16 %v2991
      %v3119 = vunpack.c.l.b16 %v2992
      %v3120 = vunpack.c.h.b16 %v2992
      %v3121 = vunpack.c.l.b16 %v2993
      %v3122 = vunpack.c.h.b16 %v2993
      %v3123 = vunpack.c.l.b16 %v2994
      %v3124 = vunpack.c.h.b16 %v2994
      %v3125 = vunpack.c.l.b16 %v2995
      %v3126 = vunpack.c.h.b16 %v2995
      %v3127 = vunpack.c.l.b16 %v2996
      %v3128 = vunpack.c.h.b16 %v2996
      %v3129 = vunpack.c.l.b16 %v2997
      %v3130 = vunpack.c.h.b16 %v2997
      %v3131 = vunpack.c.l.b16 %v2998
      %v3132 = vunpack.c.h.b16 %v2998
      %v3133 = vunpack.c.l.b16 %v2999
      %v3134 = vunpack.c.h.b16 %v2999
      %v3135 = vunpack.c.l.b16 %v3000
      %v3136 = vunpack.c.h.b16 %v3000
      %v3137 = vunpack.c.l.b16 %v3001
      %v3138 = vunpack.c.h.b16 %v3001
      %v3139 = vunpack.c.l.b16 %v3002
      %v3140 = vunpack.c.h.b16 %v3002
      %v3141 = vunpack.c.l.b16 %v3003
      %v3142 = vunpack.c.h.b16 %v3003
      %v3143 = vunpack.c.l.b16 %v3004
      %v3144 = vunpack.c.h.b16 %v3004
      %v3145 = vunpack.c.l.b16 %v3005
      %v3146 = vunpack.c.h.b16 %v3005
      %v3147 = vunpack.c.l.b16 %v3006
      %v3148 = vunpack.c.h.b16 %v3006
      %v3149 = vunpack.c.l.b16 %v3007
      %v3150 = vunpack.c.h.b16 %v3007
      %v3151 = vunpack.c.l.b16 %v3008
      %v3152 = vunpack.c.h.b16 %v3008
      %v3153 = vunpack.c.l.b16 %v3009
      %v3154 = vunpack.c.h.b16 %v3009
      %v3155 = vunpack.c.l.b16 %v3010
      %v3156 = vunpack.c.h.b16 %v3010
      %v3157 = vunpack.c.l.b16 %v3011
      %v3158 = vunpack.c.h.b16 %v3011
      %v3159 = vunpack.c.l.b16 %v3012
      %v3160 = vunpack.c.h.b16 %v3012
      %v3161 = vunpack.c.l.b16 %v3013
      %v3162 = vunpack.c.h.b16 %v3013
      %v3163 = vunpack.c.l.b16 %v3014
      %v3164 = vunpack.c.h.b16 %v3014
      %v3165 = vpack.c.b16 %v3097, %v3093
      %v3166 = vpack.c.b16 %v3098, %v3094
      %v3167 = vpack.c.b16 %v3099, %v3095
      %v3168 = vpack.c.b16 %v3100, %v3096
      %v3169 = vpack.c.b16 %v3105, %v3101
      %v3170 = vpack.c.b16 %v3106, %v3102
      %v3171 = vpack.c.b16 %v3107, %v3103
      %v3172 = vpack.c.b16 %v3108, %v3104
      %v3173 = vpack.c.b16 %v3113, %v3109
      %v3174 = vpack.c.b16 %v3114, %v3110
      %v3175 = vpack.c.b16 %v3115, %v3111
      %v3176 = vpack.c.b16 %v3116, %v3112
      %v3177 = vpack.c.b16 %v3121, %v3117
      %v3178 = vpack.c.b16 %v3122, %v3118
      %v3179 = vpack.c.b16 %v3123, %v3119
      %v3180 = vpack.c.b16 %v3124, %v3120
      %v3181 = vpack.c.b16 %v3129, %v3125
      %v3182 = vpack.c.b16 %v3130, %v3126
      %v3183 = vpack.c.b16 %v3131, %v3127
      %v3184 = vpack.c.b16 %v3132, %v3128
      %v3185 = vpack.c.b16 %v3137, %v3133
      %v3186 = vpack.c.b16 %v3138, %v3134
      %v3187 = vpack.c.b16 %v3139, %v3135
      %v3188 = vpack.c.b16 %v3140, %v3136
      %v3189 = vpack.c.b16 %v3145, %v3141
      %v3190 = vpack.c.b16 %v3146, %v3142
      %v3191 = vpack.c.b16 %v3147, %v3143
      %v3192 = vpack.c.b16 %v3148, %v3144
      %v3193 = vpack.c.b16 %v3153, %v3149
      %v3194 = vpack.c.b16 %v3154, %v3150
      %v3195 = vpack.c.b16 %v3155, %v3151
      %v3196 = vpack.c.b16 %v3156, %v3152
      %v3197 = vpack.c.b16 %v3161, %v3157
      %v3198 = vpack.c.b16 %v3162, %v3158
      %v3199 = vpack.c.b16 %v3163, %v3159
      %v3200 = vpack.c.b16 %v3164, %v3160
      %vm3237 = vcmask 130048
      %v3239 = vsel %vm3237, %v3052, 0
      %v3242 = vsel %vm3237, %v3054, 0
      %3244 = vmatprep.subr.bf16.mxu0 %v3166
      %3245 = vmatpush1.bf16.msra.mxu0 %v3165
      %3246 = vmatprep.subr.bf16.mxu0 %v3170
      %3247 = vmatpush1.bf16.msra.mxu0 %v3169
      %3248 = vmatprep.subr.bf16.mxu0 %v3174
      %3249 = vmatpush1.bf16.msra.mxu0 %v3173
      %3250 = vmatprep.subr.bf16.mxu0 %v3178
      %3251 = vmatpush1.bf16.msra.mxu0 %v3177
      %3252 = vmatprep.subr.bf16.mxu0 %v3182
      %3253 = vmatpush1.bf16.msra.mxu0 %v3181
      %3254 = vmatprep.subr.bf16.mxu0 %v3186
      %3255 = vmatpush1.bf16.msra.mxu0 %v3185
      %3256 = vmatprep.subr.bf16.mxu0 %v3190
      %3257 = vmatpush1.bf16.msra.mxu0 %v3189
      %3258 = vmatprep.subr.bf16.mxu0 %v3194
      %3259 = vmatpush1.bf16.msra.mxu0 %v3193
      %3260 = vmatprep.subr.bf16.mxu0 %v3198
      %3261 = vmatpush1.bf16.msra.mxu0 %v3197
      %3262 = vmatprep.subr.bf16.mxu0 0
      %3263 = vmatpush1.bf16.msra.mxu0 0
      %3264 = vmatprep.subr.bf16.mxu0 0
      %3265 = vmatpush1.bf16.msra.mxu0 0
      %3266 = vmatprep.subr.bf16.mxu0 0
      %3267 = vmatpush1.bf16.msra.mxu0 0
      %3268 = vmatprep.subr.bf16.mxu0 0
      %3269 = vmatpush1.bf16.msra.mxu0 0
      %3270 = vmatprep.subr.bf16.mxu0 0
      %3271 = vmatpush1.bf16.msra.mxu0 0
      %3272 = vmatprep.subr.bf16.mxu0 0
      %3273 = vmatpush1.bf16.msra.mxu0 0
      %3274 = vmatprep.subr.bf16.mxu0 0
      %3275 = vmatpush1.bf16.msra.mxu0 0
      %3276 = vmatprep.mubr.bf16.mxu0 %v3239
      %3277 = vmatmul.mubr.bf16.gmra.mrb[0].mxu0 %v3051
      %v3278 = vpop.f32.mrb[0].mxu0
      %v3279 = vadd.f32 %v3022, %v3278
      %v3280 = vpop.f32.mrb[0].mxu0
      %v3281 = vadd.f32 %v3022, %v3280
      %v3282 = vpop.f32.mrb[0].mxu0
      %v3283 = vadd.f32 %v3027, %v3282
      %v3284 = vpop.f32.mrb[0].mxu0
      %v3285 = vadd.f32 %v3027, %v3284
      %3286 = vmatprep.mubr.bf16.mxu0 %v3242
      %3287 = vmatmul.mubr.bf16.gmra.mrb[0].mxu0 %v3053
      %v3288 = vpop.f32.mrb[0].mxu0
      %v3289 = vadd.f32 %v3032, %v3288
      %v3290 = vpop.f32.mrb[0].mxu0
      %v3291 = vadd.f32 %v3032, %v3290
      %v3292 = vpop.f32.mrb[0].mxu0
      %v3293 = vadd.f32 %v3037, %v3292
      %v3294 = vpop.f32.mrb[0].mxu0
      %v3295 = vadd.f32 %v3037, %v3294
      %3296 = vdwg.mxu0
      %3297 = vmatprep.subr.bf16.mxu0 %v3168
      %3298 = vmatpush1.bf16.msra.mxu0 %v3167
      %3299 = vmatprep.subr.bf16.mxu0 %v3172
      %3300 = vmatpush1.bf16.msra.mxu0 %v3171
      %3301 = vmatprep.subr.bf16.mxu0 %v3176
      %3302 = vmatpush1.bf16.msra.mxu0 %v3175
      %3303 = vmatprep.subr.bf16.mxu0 %v3180
      %3304 = vmatpush1.bf16.msra.mxu0 %v3179
      %3305 = vmatprep.subr.bf16.mxu0 %v3184
      %3306 = vmatpush1.bf16.msra.mxu0 %v3183
      %3307 = vmatprep.subr.bf16.mxu0 %v3188
      %3308 = vmatpush1.bf16.msra.mxu0 %v3187
      %3309 = vmatprep.subr.bf16.mxu0 %v3192
      %3310 = vmatpush1.bf16.msra.mxu0 %v3191
      %3311 = vmatprep.subr.bf16.mxu0 %v3196
      %3312 = vmatpush1.bf16.msra.mxu0 %v3195
      %3313 = vmatprep.subr.bf16.mxu0 %v3200
      %3314 = vmatpush1.bf16.msra.mxu0 %v3199
      %3315 = vmatprep.subr.bf16.mxu0 0
      %3316 = vmatpush1.bf16.msra.mxu0 0
      %3317 = vmatprep.subr.bf16.mxu0 0
      %3318 = vmatpush1.bf16.msra.mxu0 0
      %3319 = vmatprep.subr.bf16.mxu0 0
      %3320 = vmatpush1.bf16.msra.mxu0 0
      %3321 = vmatprep.subr.bf16.mxu0 0
      %3322 = vmatpush1.bf16.msra.mxu0 0
      %3323 = vmatprep.subr.bf16.mxu0 0
      %3324 = vmatpush1.bf16.msra.mxu0 0
      %3325 = vmatprep.subr.bf16.mxu0 0
      %3326 = vmatpush1.bf16.msra.mxu0 0
      %3327 = vmatprep.subr.bf16.mxu0 0
      %3328 = vmatpush1.bf16.msra.mxu0 0
      %3329 = vmatprep.mubr.bf16.mxu0 %v3239
      %3330 = vmatmul.mubr.bf16.gmra.mrb[0].mxu0 %v3051
      %v3331 = vpop.f32.mrb[0].mxu0
      %v3332 = vadd.f32 %v3022, %v3331
      %v3333 = vpop.f32.mrb[0].mxu0
      %v3334 = vadd.f32 %v3022, %v3333
      %v3335 = vpop.f32.mrb[0].mxu0
      %v3336 = vadd.f32 %v3027, %v3335
      %v3337 = vpop.f32.mrb[0].mxu0
      %v3338 = vadd.f32 %v3027, %v3337
      %3339 = vmatprep.mubr.bf16.mxu0 %v3242
      %3340 = vmatmul.mubr.bf16.gmra.mrb[0].mxu0 %v3053
      %v3341 = vpop.f32.mrb[0].mxu0
      %v3342 = vadd.f32 %v3032, %v3341
      %v3343 = vpop.f32.mrb[0].mxu0
      %v3344 = vadd.f32 %v3032, %v3343
      %v3345 = vpop.f32.mrb[0].mxu0
      %v3346 = vadd.f32 %v3037, %v3345
      %v3347 = vpop.f32.mrb[0].mxu0
      %v3348 = vadd.f32 %v3037, %v3347
      %3349 = vdwg.mxu0
      %v3350 = vmax.f32 %v3279, 0.0
      %v3351 = vmax.f32 %v3281, 0.0
      %v3352 = vmax.f32 %v3332, 0.0
      %v3353 = vmax.f32 %v3334, 0.0
      %v3354 = vmax.f32 %v3283, 0.0
      %v3355 = vmax.f32 %v3285, 0.0
      %v3356 = vmax.f32 %v3336, 0.0
      %v3357 = vmax.f32 %v3338, 0.0
      %v3358 = vmax.f32 %v3289, 0.0
      %v3359 = vmax.f32 %v3291, 0.0
      %v3360 = vmax.f32 %v3342, 0.0
      %v3361 = vmax.f32 %v3344, 0.0
      %v3362 = vmax.f32 %v3293, 0.0
      %v3363 = vmax.f32 %v3295, 0.0
      %v3364 = vmax.f32 %v3346, 0.0
      %v3365 = vmax.f32 %v3348, 0.0
      %3366 = vst [vmem:[%s332 + $0x60] sm:$0xff] %v3350
      %3367 = vst [vmem:[%s332 + $0x68] sm:$0xff] %v3351
      %3368 = vst [vmem:[%s332 + $0x70] sm:$0xff] %v3352
      %3369 = vst [vmem:[%s332 + $0x78] sm:$0xff] %v3353
      %3370 = vst [vmem:[%s332 + $0x80] sm:$0xff] %v3354
      %3371 = vst [vmem:[%s332 + $0x88] sm:$0xff] %v3355
      %3372 = vst [vmem:[%s332 + $0x90] sm:$0xff] %v3356
      %3373 = vst [vmem:[%s332 + $0x98] sm:$0xff] %v3357
      %3374 = vst [vmem:[%s332 + $0xa0] sm:$0xff] %v3358
      %3375 = vst [vmem:[%s332 + $0xa8] sm:$0xff] %v3359
      %3376 = vst [vmem:[%s332 + $0xb0] sm:$0xff] %v3360
      %3377 = vst [vmem:[%s332 + $0xb8] sm:$0xff] %v3361
      %3378 = vst [vmem:[%s332 + $0xc0] sm:$0xff] %v3362
      %3379 = vst [vmem:[%s332 + $0xc8] sm:$0xff] %v3363
      %3380 = vst [vmem:[%s332 + $0xd0] sm:$0xff] %v3364
      %3381 = vst [vmem:[%s332 + $0xd8] sm:$0xff] %v3365
      %p3382 = scmp.lt.s32.totalorder %s20, 1
      %s3383 = scalar_select %p3382, %s20, 1
      %s3384 = smul.addr %s3383, 32
      %s3385 = smul.addr %s3384, 8
      %s3386 = scalar_lea.vmem %s9, %s3385
      // Predicated region
      $region57: #{inception_a.1} parent=55 // pred_check
        %p3387 = pneg %p232
      $region58: #{inception_a.1} parent=55 // pred_check_branch
        %3389 = sbr.rel (%p3387) target = $region60
      $region59: #{inception_a.1} parent=55 // pred_region
        _
      $region60: #{inception_a.1} parent=55 // pred_fallthru
        _
    $region56: #{inception_a.1} parent=5 // pred_fallthru
      _
    %p3390 = scmp.le.s32.totalorder 2, %s15
    // Predicated region
    $region61: #{inception_a.1} parent=5 // pred_check
      %p3391 = pneg %p3390
    $region62: #{inception_a.1} parent=5 // pred_check_branch
      %3393 = sbr.rel (%p3391) target = $region64
    $region63: #{inception_a.1} parent=5 // pred_region
      %s3394 = ssub.s32 %s15, 2
      // Predicated region
      $region65: #{inception_a.1} parent=63 // pred_check
        %p3395 = pneg %p238
      $region66: #{inception_a.1} parent=63 // pred_check_branch
        %3397 = sbr.rel (%p3395) target = $region68
      $region67: #{inception_a.1} parent=63 // pred_region
        %p3398 = scmp.lt.s32.totalorder %s21, 1
        %s3399 = scalar_select %p3398, %s21, 1
        %s3400 = smul.addr %s3399, 32
        %s3401 = smul.addr %s3400, 8
        %s3402 = scalar_lea.vmem %s9, %s3401
      $region68: #{inception_a.1} parent=63 // pred_fallthru
        _
    $region64: #{inception_a.1} parent=5 // pred_fallthru
      _
  $region6: #{inception_a.1} parent=0 // loop_footer
    %s19 = sadd.s32 1, %s15
  $region7: #{inception_a.1} parent=0 // loop_footer_branch
    %14 = sbr.rel target = $region3
  $region8: #{inception_a.1} parent=0 // loop_exit
    _

</llo_original>
